<compile_context>
chip_gen: v5e
topology: v5e:2x2
jax: 0.10.0
libtpu: 0.0.40
codegen_flags: <defaults>
</compile_context>

<pallas_src>
import math

import jax
import jax.numpy as jnp
from jax.experimental import pallas as pl
from jax.experimental.pallas import tpu as pltpu

# ----------------------- model dimensions (small, synthetic) -----------------------
B = 2          # batch
L = 8          # tgt sequence length
BL = B * L     # rows of the fused (B*L, d) activation
ALPHABET = 21  # dims['alphabet'] == dims['input']
D_MODEL = 32   # hyperparams['transformer']['d_model'] (scaled down)
D_FF = 64      # hyperparams['transformer']['d_ff']    (scaled down)
N_HEADS = 4    # hyperparams['transformer']['num_heads']
N_LAYERS = 2   # hyperparams['transformer']['num_layers']
D_HEAD = D_MODEL // N_HEADS
OUT_PAD = 128  # lane-dense padded logits width (real logits = first 21 columns)

PARAM_ORDER = ('emb_W', 'wqkv', 'bqkv', 'wo', 'bo', 'w1', 'b1', 'w2', 'b2',
               'ln1_g', 'ln1_b', 'ln2_g', 'ln2_b', 'lnf_g', 'lnf_b', 'wout', 'bout')


# ------------------------------- fused Pallas kernel --------------------------------
def _decoder_fr_kernel(tgt_ref, mask_ref, pe_ref,
                       emb_ref, wqkv_ref, bqkv_ref, wo_ref, bo_ref,
                       w1_ref, b1_ref, w2_ref, b2_ref,
                       ln1g_ref, ln1b_ref, ln2g_ref, ln2b_ref,
                       lnfg_ref, lnfb_ref, wout_ref, bout_ref,
                       out_ref):
    """One grid step = one full sub-model ('f' or 'r') forward on VMEM-resident data."""
    f32 = jnp.float32
    scale = 1.0 / math.sqrt(D_HEAD)

    def layer_norm(x, g, b):
        # Annotated-transformer LayerNorm: (x - mean) / (std_unbiased + eps) * a_2 + b_2
        mean = jnp.mean(x, axis=-1, keepdims=True)
        var = jnp.sum((x - mean) ** 2, axis=-1, keepdims=True) / (D_MODEL - 1)
        return g * (x - mean) / (jnp.sqrt(var) + 1e-6) + b

    # ---- embedding: one-hot @ W_emb * sqrt(d_model) + PE (no bias; dropout = eval identity)
    # TODO(synk): replace the one-hot matmul with an id-based row gather if integer token
    # ids become available as inputs (the module's forward receives one-hot tensors).
    x = jnp.dot(tgt_ref[0], emb_ref[0],
                preferred_element_type=f32) * math.sqrt(D_MODEL)
    x = x + pe_ref[...]

    mask = mask_ref[0]                      # (BL, BL) block-diagonal causal mask

    for l in range(N_LAYERS):               # static trip count -> fully unrolled
        # --- self-attention sublayer: x + Wo(SelfAttn(LayerNorm(x))) ---
        h = layer_norm(x, ln1g_ref[0, l], ln1b_ref[0, l])
        qkv = jnp.dot(h, wqkv_ref[0, l],
                      preferred_element_type=f32) + bqkv_ref[0, l]   # (BL, 3d)
        wo_l = wo_ref[0, l]
        attn = jnp.zeros((BL, D_MODEL), f32)
        for hh in range(N_HEADS):
            c0 = hh * D_HEAD
            qh = qkv[:, c0:c0 + D_HEAD]                              # (BL, dk)
            kh = qkv[:, D_MODEL + c0:D_MODEL + c0 + D_HEAD]
            vh = qkv[:, 2 * D_MODEL + c0:2 * D_MODEL + c0 + D_HEAD]
            # scores over all B*L keys; cross-sequence entries are masked to -1e9 below,
            # so exp underflows to exactly 0 -> identical to per-batch attention.
            s = jax.lax.dot_general(qh, kh, (((1,), (1,)), ((), ())),
                                    preferred_element_type=f32) * scale
            s = jnp.where(mask == 0.0, -1e9, s)
            s = s - jnp.max(s, axis=-1, keepdims=True)
            p = jnp.exp(s)
            denom = jnp.sum(p, axis=-1, keepdims=True)
            # approx=True would route to the EUP; kept exact for parity with PyTorch.
            p = p * pl.reciprocal(denom, approx=False)
            ctx = jnp.dot(p, vh, preferred_element_type=f32)         # (BL, dk)
            # Fold the output projection: concat_h(ctx_h) @ Wo == sum_h ctx_h @ Wo[rows_h]
            attn = attn + jnp.dot(ctx, wo_l[c0:c0 + D_HEAD, :],
                                  preferred_element_type=f32)
        x = x + attn + bo_ref[0, l]

        # --- (cross-attention sublayer skipped: src_attn is None, memory is None) ---

        # --- feed-forward sublayer: x + W2(relu(W1(LayerNorm(x)))) ---
        h = layer_norm(x, ln2g_ref[0, l], ln2b_ref[0, l])
        f = jnp.maximum(jnp.dot(h, w1_ref[0, l],
                                preferred_element_type=f32) + b1_ref[0, l], 0.0)
        x = x + jnp.dot(f, w2_ref[0, l],
                        preferred_element_type=f32) + b2_ref[0, l]

    # --- final LayerNorm + padded output projection (lane-dense 128-wide store) ---
    x = layer_norm(x, lnfg_ref[0], lnfb_ref[0])
    out_ref[0] = jnp.dot(x, wout_ref[0], preferred_element_type=f32) + bout_ref[0]


def _mspec(*tail):
    """BlockSpec selecting one sub-model's slab along the leading f/r axis."""
    idx = {2: lambda m: (m, 0, 0),
           3: lambda m: (m, 0, 0, 0)}[len(tail)]
    return pl.BlockSpec((1,) + tuple(tail), idx)


def _fused_pallas_call():
    in_specs = [
        _mspec(BL, ALPHABET),                         # tgt one-hot       (2, BL, V)
        _mspec(BL, BL),                               # block-diag mask   (2, BL, BL)
        pl.BlockSpec((BL, D_MODEL), lambda m: (0, 0)),  # positional enc. (shared)
        _mspec(ALPHABET, D_MODEL),                    # emb_W
        _mspec(N_LAYERS, D_MODEL, 3 * D_MODEL),       # wqkv  (fused q/k/v)
        _mspec(N_LAYERS, 1, 3 * D_MODEL),             # bqkv
        _mspec(N_LAYERS, D_MODEL, D_MODEL),           # wo
        _mspec(N_LAYERS, 1, D_MODEL),                 # bo
        _mspec(N_LAYERS, D_MODEL, D_FF),              # w1
        _mspec(N_LAYERS, 1, D_FF),                    # b1
        _mspec(N_LAYERS, D_FF, D_MODEL),              # w2
        _mspec(N_LAYERS, 1, D_MODEL),                 # b2
        _mspec(N_LAYERS, 1, D_MODEL),                 # ln1_g
        _mspec(N_LAYERS, 1, D_MODEL),                 # ln1_b
        _mspec(N_LAYERS, 1, D_MODEL),                 # ln2_g
        _mspec(N_LAYERS, 1, D_MODEL),                 # ln2_b
        _mspec(1, D_MODEL),                           # lnf_g
        _mspec(1, D_MODEL),                           # lnf_b
        _mspec(D_MODEL, OUT_PAD),                     # wout (zero-padded 21 -> 128)
        _mspec(1, OUT_PAD),                           # bout (zero-padded)
    ]
    return pl.pallas_call(
        _decoder_fr_kernel,
        out_shape=jax.ShapeDtypeStruct((2, BL, OUT_PAD), jnp.float32),
        grid=(2,),                                    # one step per sub-model (f, r)
        in_specs=in_specs,
        out_specs=_mspec(BL, OUT_PAD),
        compiler_params=pltpu.CompilerParams(
            dimension_semantics=("parallel",)),       # v7x: f/r shard across the 2 TCs
    )


# --------------------------- parameter construction --------------------------------
def _xavier(key, shape):
    a = math.sqrt(6.0 / (shape[0] + shape[1]))
    return jax.random.uniform(key, shape, jnp.float32, -a, a)


def init_decoder_params(key):
    """One TransformerDecoder sub-model, already in the fused/stacked kernel layout."""
    d, dff, V = D_MODEL, D_FF, ALPHABET
    keys = iter(jax.random.split(key, 2 + N_LAYERS * 6))
    emb_W = _xavier(next(keys), (V, d))

    wqkv, wo, w1, w2 = [], [], [], []
    for _ in range(N_LAYERS):
        Wq = _xavier(next(keys), (d, d))
        Wk = _xavier(next(keys), (d, d))
        Wv = _xavier(next(keys), (d, d))
        wqkv.append(jnp.concatenate([Wq, Wk, Wv], axis=1))      # (d, 3d)
        wo.append(_xavier(next(keys), (d, d)))
        w1.append(_xavier(next(keys), (d, dff)))
        w2.append(_xavier(next(keys), (dff, d)))

    wout = _xavier(next(keys), (d, V))
    wout_pad = jnp.pad(wout, ((0, 0), (0, OUT_PAD - V)))        # lane-dense padding

    return {
        'emb_W': emb_W,
        'wqkv': jnp.stack(wqkv),                                 # (NL, d, 3d)
        'bqkv': jnp.zeros((N_LAYERS, 1, 3 * d), jnp.float32),
        'wo': jnp.stack(wo),
        'bo': jnp.zeros((N_LAYERS, 1, d), jnp.float32),
        'w1': jnp.stack(w1),
        'b1': jnp.zeros((N_LAYERS, 1, dff), jnp.float32),
        'w2': jnp.stack(w2),
        'b2': jnp.zeros((N_LAYERS, 1, d), jnp.float32),
        'ln1_g': jnp.ones((N_LAYERS, 1, d), jnp.float32),
        'ln1_b': jnp.zeros((N_LAYERS, 1, d), jnp.float32),
        'ln2_g': jnp.ones((N_LAYERS, 1, d), jnp.float32),
        'ln2_b': jnp.zeros((N_LAYERS, 1, d), jnp.float32),
        'lnf_g': jnp.ones((1, d), jnp.float32),
        'lnf_b': jnp.zeros((1, d), jnp.float32),
        'wout': wout_pad,                                        # (d, OUT_PAD)
        'bout': jnp.zeros((1, OUT_PAD), jnp.float32),
    }


def stack_fr(params_f, params_r):
    """Stack f/r parameter trees along a leading axis of 2 (grid / megacore axis)."""
    return jax.tree_util.tree_map(lambda a, b: jnp.stack([a, b], axis=0),
                                  params_f, params_r)


def positional_encoding(length, d_model):
    pos = jnp.arange(length, dtype=jnp.float32)[:, None]
    div = jnp.exp(jnp.arange(0, d_model, 2, dtype=jnp.float32)
                  * (-math.log(10000.0) / d_model))
    pe = jnp.zeros((length, d_model), jnp.float32)
    pe = pe.at[:, 0::2].set(jnp.sin(pos * div))
    pe = pe.at[:, 1::2].set(jnp.cos(pos * div))
    return pe


def _block_diag_mask(mask):
    """(B, L, L) per-sequence mask -> (B*L, B*L) block-diagonal mask (0 = masked)."""
    Bn, Ln, _ = mask.shape
    big = jnp.zeros((Bn * Ln, Bn * Ln), mask.dtype)
    for b in range(Bn):
        big = big.at[b * Ln:(b + 1) * Ln, b * Ln:(b + 1) * Ln].set(mask[b])
    return big


# ------------------------------- model forward --------------------------------------
def transformer_decoder_fr_forward(stacked_params, pe_bl,
                                   src, tgt, src_mask, tgt_mask, tgt_r, tgt_mask_r):
    """Fused FR forward. src / src_mask are unused (None in the reference forward path)."""
    del src, src_mask
    Bn, Ln, V = tgt.shape

    tgt_oh = jnp.stack([tgt.reshape(Bn * Ln, V),
                        tgt_r.reshape(Bn * Ln, V)], axis=0)              # (2, BL, V)
    bigmask = jnp.stack([_block_diag_mask(tgt_mask),
                         _block_diag_mask(tgt_mask_r)], axis=0)          # (2, BL, BL)

    out = _fused_pallas_call()(
        tgt_oh, bigmask, pe_bl, *(stacked_params[k] for k in PARAM_ORDER))

    logits = out[:, :, :ALPHABET].reshape(2, Bn, Ln, ALPHABET)
    return logits[0], logits[1]


# ------------------------------------ main -------------------------------------------
if __name__ == "__main__":
    key = jax.random.PRNGKey(0)
    k_pf, k_pr, k_tok = jax.random.split(key, 3)

    params_f = init_decoder_params(k_pf)
    params_r = init_decoder_params(k_pr)
    stacked = stack_fr(params_f, params_r)

    # deterministic synthetic inputs
    tok = jax.random.randint(k_tok, (B, L), 0, ALPHABET)
    tgt = jax.nn.one_hot(tok, ALPHABET, dtype=jnp.float32)        # (B, L, 21)
    tgt_r = jnp.flip(tgt, axis=1)                                 # reversed sequence
    causal = jnp.tril(jnp.ones((L, L), jnp.float32))              # subsequent mask
    tgt_mask = jnp.broadcast_to(causal, (B, L, L))
    tgt_mask_r = jnp.broadcast_to(causal, (B, L, L))

    # positional encoding precomputed ONCE and tiled to the (B*L, d) activation layout
    pe_bl = jnp.tile(positional_encoding(L, D_MODEL), (B, 1))     # (16, 32)

    fwd = jax.jit(transformer_decoder_fr_forward)
    out_f, out_r = fwd(stacked, pe_bl, None, tgt, None, tgt_mask, tgt_r, tgt_mask_r)
    jax.block_until_ready((out_f, out_r))

    assert out_f.shape == (B, L, ALPHABET) and out_r.shape == (B, L, ALPHABET)
    assert jnp.all(jnp.isfinite(out_f)) and jnp.all(jnp.isfinite(out_r))
    print("KERNEL_OK")
</pallas_src>

<mosaic_0001>
module attributes {stable_mosaic.version = 11 : i64} {
  func.func @_decoder_fr_kernel(%arg0: i32, %arg1: memref<1x16x21xf32, #tpu.memory_space<vmem>>, %arg2: memref<1x16x16xf32, #tpu.memory_space<vmem>>, %arg3: memref<16x32xf32, #tpu.memory_space<vmem>>, %arg4: memref<1x21x32xf32, #tpu.memory_space<vmem>>, %arg5: memref<1x2x32x96xf32, #tpu.memory_space<vmem>>, %arg6: memref<1x2x1x96xf32, #tpu.memory_space<vmem>>, %arg7: memref<1x2x32x32xf32, #tpu.memory_space<vmem>>, %arg8: memref<1x2x1x32xf32, #tpu.memory_space<vmem>>, %arg9: memref<1x2x32x64xf32, #tpu.memory_space<vmem>>, %arg10: memref<1x2x1x64xf32, #tpu.memory_space<vmem>>, %arg11: memref<1x2x64x32xf32, #tpu.memory_space<vmem>>, %arg12: memref<1x2x1x32xf32, #tpu.memory_space<vmem>>, %arg13: memref<1x2x1x32xf32, #tpu.memory_space<vmem>>, %arg14: memref<1x2x1x32xf32, #tpu.memory_space<vmem>>, %arg15: memref<1x2x1x32xf32, #tpu.memory_space<vmem>>, %arg16: memref<1x2x1x32xf32, #tpu.memory_space<vmem>>, %arg17: memref<1x1x32xf32, #tpu.memory_space<vmem>>, %arg18: memref<1x1x32xf32, #tpu.memory_space<vmem>>, %arg19: memref<1x32x128xf32, #tpu.memory_space<vmem>>, %arg20: memref<1x1x128xf32, #tpu.memory_space<vmem>>, %arg21: memref<1x16x128xf32, #tpu.memory_space<vmem>>) attributes {dimension_semantics = [#tpu.dimension_semantics<parallel>], iteration_bounds = array<i64: 2>, scalar_prefetch = 0 : i64, scratch_operands = 0 : i64, tpu.core_type = #tpu.core_type<tc>, window_params = [{transform_indices = @transform_0, window_bounds = array<i64: 1, 16, 21>}, {transform_indices = @transform_1, window_bounds = array<i64: 1, 16, 16>}, {pipeline_mode = #tpu.pipeline_mode<synchronous>, transform_indices = @transform_2, window_bounds = array<i64: 16, 32>}, {transform_indices = @transform_3, window_bounds = array<i64: 1, 21, 32>}, {transform_indices = @transform_4, window_bounds = array<i64: 1, 2, 32, 96>}, {transform_indices = @transform_5, window_bounds = array<i64: 1, 2, 1, 96>}, {transform_indices = @transform_6, window_bounds = array<i64: 1, 2, 32, 32>}, {transform_indices = @transform_7, window_bounds = array<i64: 1, 2, 1, 32>}, {transform_indices = @transform_8, window_bounds = array<i64: 1, 2, 32, 64>}, {transform_indices = @transform_9, window_bounds = array<i64: 1, 2, 1, 64>}, {transform_indices = @transform_10, window_bounds = array<i64: 1, 2, 64, 32>}, {transform_indices = @transform_11, window_bounds = array<i64: 1, 2, 1, 32>}, {transform_indices = @transform_12, window_bounds = array<i64: 1, 2, 1, 32>}, {transform_indices = @transform_13, window_bounds = array<i64: 1, 2, 1, 32>}, {transform_indices = @transform_14, window_bounds = array<i64: 1, 2, 1, 32>}, {transform_indices = @transform_15, window_bounds = array<i64: 1, 2, 1, 32>}, {transform_indices = @transform_16, window_bounds = array<i64: 1, 1, 32>}, {transform_indices = @transform_17, window_bounds = array<i64: 1, 1, 32>}, {transform_indices = @transform_18, window_bounds = array<i64: 1, 32, 128>}, {transform_indices = @transform_19, window_bounds = array<i64: 1, 1, 128>}, {transform_indices = @transform_20, window_bounds = array<i64: 1, 16, 128>}]} {
    %c0 = arith.constant 0 : index
    %c0_0 = arith.constant 0 : index
    %c0_1 = arith.constant 0 : index
    %0 = vector.load %arg1[%c0, %c0_0, %c0_1] : memref<1x16x21xf32, #tpu.memory_space<vmem>>, vector<1x16x21xf32>
    %1 = vector.shape_cast %0 : vector<1x16x21xf32> to vector<16x21xf32>
    %c0_2 = arith.constant 0 : index
    %c0_3 = arith.constant 0 : index
    %c0_4 = arith.constant 0 : index
    %2 = vector.load %arg4[%c0_2, %c0_3, %c0_4] : memref<1x21x32xf32, #tpu.memory_space<vmem>>, vector<1x21x32xf32>
    %3 = vector.shape_cast %2 : vector<1x21x32xf32> to vector<21x32xf32>
    %cst = arith.constant dense<0.000000e+00> : vector<16x32xf32>
    %4 = tpu.matmul %1, %3, %cst {dimension_numbers = #tpu.dot_dimension_numbers<[1], [0], [0], [1], [0, 0, 1, 1], [], []>} : vector<16x21xf32>, vector<21x32xf32>, vector<16x32xf32> -> vector<16x32xf32>
    %cst_5 = arith.constant 5.65685415 : f32
    %5 = vector.broadcast %cst_5 : f32 to vector<16x32xf32>
    %6 = arith.mulf %4, %5 : vector<16x32xf32>
    %c0_6 = arith.constant 0 : index
    %c0_7 = arith.constant 0 : index
    %7 = vector.load %arg3[%c0_6, %c0_7] : memref<16x32xf32, #tpu.memory_space<vmem>>, vector<16x32xf32>
    %8 = arith.addf %6, %7 : vector<16x32xf32>
    %c0_8 = arith.constant 0 : index
    %c0_9 = arith.constant 0 : index
    %c0_10 = arith.constant 0 : index
    %9 = vector.load %arg2[%c0_8, %c0_9, %c0_10] : memref<1x16x16xf32, #tpu.memory_space<vmem>>, vector<1x16x16xf32>
    %10 = vector.shape_cast %9 : vector<1x16x16xf32> to vector<16x16xf32>
    %c0_11 = arith.constant 0 : index
    %c0_12 = arith.constant 0 : index
    %c0_13 = arith.constant 0 : index
    %c0_14 = arith.constant 0 : index
    %11 = vector.load %arg13[%c0_11, %c0_12, %c0_13, %c0_14] : memref<1x2x1x32xf32, #tpu.memory_space<vmem>>, vector<1x1x1x32xf32>
    %12 = vector.shape_cast %11 : vector<1x1x1x32xf32> to vector<1x32xf32>
    %c0_15 = arith.constant 0 : index
    %c0_16 = arith.constant 0 : index
    %c0_17 = arith.constant 0 : index
    %c0_18 = arith.constant 0 : index
    %13 = vector.load %arg14[%c0_15, %c0_16, %c0_17, %c0_18] : memref<1x2x1x32xf32, #tpu.memory_space<vmem>>, vector<1x1x1x32xf32>
    %14 = vector.shape_cast %13 : vector<1x1x1x32xf32> to vector<1x32xf32>
    %cst_19 = arith.constant dense<0.000000e+00> : vector<16xf32>
    %15 = vector.multi_reduction <add>, %8, %cst_19 [1] : vector<16x32xf32> to vector<16xf32>
    %16 = vector.shape_cast %15 : vector<16xf32> to vector<16x1xf32>
    %cst_20 = arith.constant 3.200000e+01 : f32
    %17 = vector.broadcast %cst_20 : f32 to vector<16x1xf32>
    %18 = arith.divf %16, %17 : vector<16x1xf32>
    %19 = vector.broadcast %18 : vector<16x1xf32> to vector<16x32xf32>
    %20 = arith.subf %8, %19 : vector<16x32xf32>
    %21 = arith.mulf %20, %20 : vector<16x32xf32>
    %cst_21 = arith.constant dense<0.000000e+00> : vector<16xf32>
    %22 = vector.multi_reduction <add>, %21, %cst_21 [1] : vector<16x32xf32> to vector<16xf32>
    %23 = vector.shape_cast %22 : vector<16xf32> to vector<16x1xf32>
    %cst_22 = arith.constant 3.100000e+01 : f32
    %24 = vector.broadcast %cst_22 : f32 to vector<16x1xf32>
    %25 = arith.divf %23, %24 : vector<16x1xf32>
    %26 = vector.broadcast %18 : vector<16x1xf32> to vector<16x32xf32>
    %27 = arith.subf %8, %26 : vector<16x32xf32>
    %28 = vector.broadcast %12 : vector<1x32xf32> to vector<16x32xf32>
    %29 = arith.mulf %28, %27 : vector<16x32xf32>
    %30 = math.sqrt %25 : vector<16x1xf32>
    %cst_23 = arith.constant 9.99999997E-7 : f32
    %31 = vector.broadcast %cst_23 : f32 to vector<16x1xf32>
    %32 = arith.addf %30, %31 : vector<16x1xf32>
    %33 = vector.broadcast %32 : vector<16x1xf32> to vector<16x32xf32>
    %34 = arith.divf %29, %33 : vector<16x32xf32>
    %35 = vector.broadcast %14 : vector<1x32xf32> to vector<16x32xf32>
    %36 = arith.addf %34, %35 : vector<16x32xf32>
    %c0_24 = arith.constant 0 : index
    %c0_25 = arith.constant 0 : index
    %c0_26 = arith.constant 0 : index
    %c0_27 = arith.constant 0 : index
    %37 = vector.load %arg5[%c0_24, %c0_25, %c0_26, %c0_27] : memref<1x2x32x96xf32, #tpu.memory_space<vmem>>, vector<1x1x32x96xf32>
    %38 = vector.shape_cast %37 : vector<1x1x32x96xf32> to vector<32x96xf32>
    %cst_28 = arith.constant dense<0.000000e+00> : vector<16x96xf32>
    %39 = tpu.matmul %36, %38, %cst_28 {dimension_numbers = #tpu.dot_dimension_numbers<[1], [0], [0], [1], [0, 0, 1, 1], [], []>} : vector<16x32xf32>, vector<32x96xf32>, vector<16x96xf32> -> vector<16x96xf32>
    %c0_29 = arith.constant 0 : index
    %c0_30 = arith.constant 0 : index
    %c0_31 = arith.constant 0 : index
    %c0_32 = arith.constant 0 : index
    %40 = vector.load %arg6[%c0_29, %c0_30, %c0_31, %c0_32] : memref<1x2x1x96xf32, #tpu.memory_space<vmem>>, vector<1x1x1x96xf32>
    %41 = vector.shape_cast %40 : vector<1x1x1x96xf32> to vector<1x96xf32>
    %42 = vector.broadcast %41 : vector<1x96xf32> to vector<16x96xf32>
    %43 = arith.addf %39, %42 : vector<16x96xf32>
    %c0_33 = arith.constant 0 : index
    %c0_34 = arith.constant 0 : index
    %c0_35 = arith.constant 0 : index
    %c0_36 = arith.constant 0 : index
    %44 = vector.load %arg7[%c0_33, %c0_34, %c0_35, %c0_36] : memref<1x2x32x32xf32, #tpu.memory_space<vmem>>, vector<1x1x32x32xf32>
    %45 = vector.shape_cast %44 : vector<1x1x32x32xf32> to vector<32x32xf32>
    %cst_37 = arith.constant 0.000000e+00 : f32
    %46 = vector.broadcast %cst_37 : f32 to vector<16x32xf32>
    %47 = vector.extract_strided_slice %43 {offsets = [0, 0], sizes = [16, 8], strides = [1, 1]} : vector<16x96xf32> to vector<16x8xf32>
    %48 = vector.extract_strided_slice %43 {offsets = [0, 32], sizes = [16, 8], strides = [1, 1]} : vector<16x96xf32> to vector<16x8xf32>
    %49 = vector.extract_strided_slice %43 {offsets = [0, 64], sizes = [16, 8], strides = [1, 1]} : vector<16x96xf32> to vector<16x8xf32>
    %cst_38 = arith.constant dense<0.000000e+00> : vector<16x16xf32>
    %50 = tpu.matmul %47, %48, %cst_38 {dimension_numbers = #tpu.dot_dimension_numbers<[1], [1], [0], [0], [0, 0, 1, 0], [], []>} : vector<16x8xf32>, vector<16x8xf32>, vector<16x16xf32> -> vector<16x16xf32>
    %cst_39 = arith.constant 0.353553385 : f32
    %51 = vector.broadcast %cst_39 : f32 to vector<16x16xf32>
    %52 = arith.mulf %50, %51 : vector<16x16xf32>
    %cst_40 = arith.constant 0.000000e+00 : f32
    %53 = vector.broadcast %cst_40 : f32 to vector<16x16xf32>
    %54 = arith.cmpf oeq, %10, %53 : vector<16x16xf32>
    %cst_41 = arith.constant -1.000000e+09 : f32
    %55 = vector.broadcast %cst_41 : f32 to vector<16x16xf32>
    %56 = arith.select %54, %55, %52 : vector<16x16xi1>, vector<16x16xf32>
    %cst_42 = arith.constant dense<0xFF800000> : vector<16xf32>
    %57 = vector.multi_reduction <maximumf>, %56, %cst_42 [1] : vector<16x16xf32> to vector<16xf32>
    %58 = vector.shape_cast %57 : vector<16xf32> to vector<16x1xf32>
    %59 = vector.broadcast %58 : vector<16x1xf32> to vector<16x16xf32>
    %60 = arith.subf %56, %59 : vector<16x16xf32>
    %61 = math.exp %60 : vector<16x16xf32>
    %cst_43 = arith.constant dense<0.000000e+00> : vector<16xf32>
    %62 = vector.multi_reduction <add>, %61, %cst_43 [1] : vector<16x16xf32> to vector<16xf32>
    %63 = vector.shape_cast %62 : vector<16xf32> to vector<16x1xf32>
    %64 = tpu.reciprocal %63 : vector<16x1xf32> -> vector<16x1xf32>
    %65 = vector.broadcast %64 : vector<16x1xf32> to vector<16x16xf32>
    %66 = arith.mulf %61, %65 : vector<16x16xf32>
    %cst_44 = arith.constant dense<0.000000e+00> : vector<16x8xf32>
    %67 = tpu.matmul %66, %49, %cst_44 {dimension_numbers = #tpu.dot_dimension_numbers<[1], [0], [0], [1], [0, 0, 1, 1], [], []>} : vector<16x16xf32>, vector<16x8xf32>, vector<16x8xf32> -> vector<16x8xf32>
    %68 = vector.extract_strided_slice %45 {offsets = [0, 0], sizes = [8, 32], strides = [1, 1]} : vector<32x32xf32> to vector<8x32xf32>
    %cst_45 = arith.constant dense<0.000000e+00> : vector<16x32xf32>
    %69 = tpu.matmul %67, %68, %cst_45 {dimension_numbers = #tpu.dot_dimension_numbers<[1], [0], [0], [1], [0, 0, 1, 1], [], []>} : vector<16x8xf32>, vector<8x32xf32>, vector<16x32xf32> -> vector<16x32xf32>
    %70 = arith.addf %46, %69 : vector<16x32xf32>
    %71 = vector.extract_strided_slice %43 {offsets = [0, 8], sizes = [16, 8], strides = [1, 1]} : vector<16x96xf32> to vector<16x8xf32>
    %72 = vector.extract_strided_slice %43 {offsets = [0, 40], sizes = [16, 8], strides = [1, 1]} : vector<16x96xf32> to vector<16x8xf32>
    %73 = vector.extract_strided_slice %43 {offsets = [0, 72], sizes = [16, 8], strides = [1, 1]} : vector<16x96xf32> to vector<16x8xf32>
    %cst_46 = arith.constant dense<0.000000e+00> : vector<16x16xf32>
    %74 = tpu.matmul %71, %72, %cst_46 {dimension_numbers = #tpu.dot_dimension_numbers<[1], [1], [0], [0], [0, 0, 1, 0], [], []>} : vector<16x8xf32>, vector<16x8xf32>, vector<16x16xf32> -> vector<16x16xf32>
    %cst_47 = arith.constant 0.353553385 : f32
    %75 = vector.broadcast %cst_47 : f32 to vector<16x16xf32>
    %76 = arith.mulf %74, %75 : vector<16x16xf32>
    %cst_48 = arith.constant 0.000000e+00 : f32
    %77 = vector.broadcast %cst_48 : f32 to vector<16x16xf32>
    %78 = arith.cmpf oeq, %10, %77 : vector<16x16xf32>
    %cst_49 = arith.constant -1.000000e+09 : f32
    %79 = vector.broadcast %cst_49 : f32 to vector<16x16xf32>
    %80 = arith.select %78, %79, %76 : vector<16x16xi1>, vector<16x16xf32>
    %cst_50 = arith.constant dense<0xFF800000> : vector<16xf32>
    %81 = vector.multi_reduction <maximumf>, %80, %cst_50 [1] : vector<16x16xf32> to vector<16xf32>
    %82 = vector.shape_cast %81 : vector<16xf32> to vector<16x1xf32>
    %83 = vector.broadcast %82 : vector<16x1xf32> to vector<16x16xf32>
    %84 = arith.subf %80, %83 : vector<16x16xf32>
    %85 = math.exp %84 : vector<16x16xf32>
    %cst_51 = arith.constant dense<0.000000e+00> : vector<16xf32>
    %86 = vector.multi_reduction <add>, %85, %cst_51 [1] : vector<16x16xf32> to vector<16xf32>
    %87 = vector.shape_cast %86 : vector<16xf32> to vector<16x1xf32>
    %88 = tpu.reciprocal %87 : vector<16x1xf32> -> vector<16x1xf32>
    %89 = vector.broadcast %88 : vector<16x1xf32> to vector<16x16xf32>
    %90 = arith.mulf %85, %89 : vector<16x16xf32>
    %cst_52 = arith.constant dense<0.000000e+00> : vector<16x8xf32>
    %91 = tpu.matmul %90, %73, %cst_52 {dimension_numbers = #tpu.dot_dimension_numbers<[1], [0], [0], [1], [0, 0, 1, 1], [], []>} : vector<16x16xf32>, vector<16x8xf32>, vector<16x8xf32> -> vector<16x8xf32>
    %92 = vector.extract_strided_slice %45 {offsets = [8, 0], sizes = [8, 32], strides = [1, 1]} : vector<32x32xf32> to vector<8x32xf32>
    %cst_53 = arith.constant dense<0.000000e+00> : vector<16x32xf32>
    %93 = tpu.matmul %91, %92, %cst_53 {dimension_numbers = #tpu.dot_dimension_numbers<[1], [0], [0], [1], [0, 0, 1, 1], [], []>} : vector<16x8xf32>, vector<8x32xf32>, vector<16x32xf32> -> vector<16x32xf32>
    %94 = arith.addf %70, %93 : vector<16x32xf32>
    %95 = vector.extract_strided_slice %43 {offsets = [0, 16], sizes = [16, 8], strides = [1, 1]} : vector<16x96xf32> to vector<16x8xf32>
    %96 = vector.extract_strided_slice %43 {offsets = [0, 48], sizes = [16, 8], strides = [1, 1]} : vector<16x96xf32> to vector<16x8xf32>
    %97 = vector.extract_strided_slice %43 {offsets = [0, 80], sizes = [16, 8], strides = [1, 1]} : vector<16x96xf32> to vector<16x8xf32>
    %cst_54 = arith.constant dense<0.000000e+00> : vector<16x16xf32>
    %98 = tpu.matmul %95, %96, %cst_54 {dimension_numbers = #tpu.dot_dimension_numbers<[1], [1], [0], [0], [0, 0, 1, 0], [], []>} : vector<16x8xf32>, vector<16x8xf32>, vector<16x16xf32> -> vector<16x16xf32>
    %cst_55 = arith.constant 0.353553385 : f32
    %99 = vector.broadcast %cst_55 : f32 to vector<16x16xf32>
    %100 = arith.mulf %98, %99 : vector<16x16xf32>
    %cst_56 = arith.constant 0.000000e+00 : f32
    %101 = vector.broadcast %cst_56 : f32 to vector<16x16xf32>
    %102 = arith.cmpf oeq, %10, %101 : vector<16x16xf32>
    %cst_57 = arith.constant -1.000000e+09 : f32
    %103 = vector.broadcast %cst_57 : f32 to vector<16x16xf32>
    %104 = arith.select %102, %103, %100 : vector<16x16xi1>, vector<16x16xf32>
    %cst_58 = arith.constant dense<0xFF800000> : vector<16xf32>
    %105 = vector.multi_reduction <maximumf>, %104, %cst_58 [1] : vector<16x16xf32> to vector<16xf32>
    %106 = vector.shape_cast %105 : vector<16xf32> to vector<16x1xf32>
    %107 = vector.broadcast %106 : vector<16x1xf32> to vector<16x16xf32>
    %108 = arith.subf %104, %107 : vector<16x16xf32>
    %109 = math.exp %108 : vector<16x16xf32>
    %cst_59 = arith.constant dense<0.000000e+00> : vector<16xf32>
    %110 = vector.multi_reduction <add>, %109, %cst_59 [1] : vector<16x16xf32> to vector<16xf32>
    %111 = vector.shape_cast %110 : vector<16xf32> to vector<16x1xf32>
    %112 = tpu.reciprocal %111 : vector<16x1xf32> -> vector<16x1xf32>
    %113 = vector.broadcast %112 : vector<16x1xf32> to vector<16x16xf32>
    %114 = arith.mulf %109, %113 : vector<16x16xf32>
    %cst_60 = arith.constant dense<0.000000e+00> : vector<16x8xf32>
    %115 = tpu.matmul %114, %97, %cst_60 {dimension_numbers = #tpu.dot_dimension_numbers<[1], [0], [0], [1], [0, 0, 1, 1], [], []>} : vector<16x16xf32>, vector<16x8xf32>, vector<16x8xf32> -> vector<16x8xf32>
    %116 = vector.extract_strided_slice %45 {offsets = [16, 0], sizes = [8, 32], strides = [1, 1]} : vector<32x32xf32> to vector<8x32xf32>
    %cst_61 = arith.constant dense<0.000000e+00> : vector<16x32xf32>
    %117 = tpu.matmul %115, %116, %cst_61 {dimension_numbers = #tpu.dot_dimension_numbers<[1], [0], [0], [1], [0, 0, 1, 1], [], []>} : vector<16x8xf32>, vector<8x32xf32>, vector<16x32xf32> -> vector<16x32xf32>
    %118 = arith.addf %94, %117 : vector<16x32xf32>
    %119 = vector.extract_strided_slice %43 {offsets = [0, 24], sizes = [16, 8], strides = [1, 1]} : vector<16x96xf32> to vector<16x8xf32>
    %120 = vector.extract_strided_slice %43 {offsets = [0, 56], sizes = [16, 8], strides = [1, 1]} : vector<16x96xf32> to vector<16x8xf32>
    %121 = vector.extract_strided_slice %43 {offsets = [0, 88], sizes = [16, 8], strides = [1, 1]} : vector<16x96xf32> to vector<16x8xf32>
    %cst_62 = arith.constant dense<0.000000e+00> : vector<16x16xf32>
    %122 = tpu.matmul %119, %120, %cst_62 {dimension_numbers = #tpu.dot_dimension_numbers<[1], [1], [0], [0], [0, 0, 1, 0], [], []>} : vector<16x8xf32>, vector<16x8xf32>, vector<16x16xf32> -> vector<16x16xf32>
    %cst_63 = arith.constant 0.353553385 : f32
    %123 = vector.broadcast %cst_63 : f32 to vector<16x16xf32>
    %124 = arith.mulf %122, %123 : vector<16x16xf32>
    %cst_64 = arith.constant 0.000000e+00 : f32
    %125 = vector.broadcast %cst_64 : f32 to vector<16x16xf32>
    %126 = arith.cmpf oeq, %10, %125 : vector<16x16xf32>
    %cst_65 = arith.constant -1.000000e+09 : f32
    %127 = vector.broadcast %cst_65 : f32 to vector<16x16xf32>
    %128 = arith.select %126, %127, %124 : vector<16x16xi1>, vector<16x16xf32>
    %cst_66 = arith.constant dense<0xFF800000> : vector<16xf32>
    %129 = vector.multi_reduction <maximumf>, %128, %cst_66 [1] : vector<16x16xf32> to vector<16xf32>
    %130 = vector.shape_cast %129 : vector<16xf32> to vector<16x1xf32>
    %131 = vector.broadcast %130 : vector<16x1xf32> to vector<16x16xf32>
    %132 = arith.subf %128, %131 : vector<16x16xf32>
    %133 = math.exp %132 : vector<16x16xf32>
    %cst_67 = arith.constant dense<0.000000e+00> : vector<16xf32>
    %134 = vector.multi_reduction <add>, %133, %cst_67 [1] : vector<16x16xf32> to vector<16xf32>
    %135 = vector.shape_cast %134 : vector<16xf32> to vector<16x1xf32>
    %136 = tpu.reciprocal %135 : vector<16x1xf32> -> vector<16x1xf32>
    %137 = vector.broadcast %136 : vector<16x1xf32> to vector<16x16xf32>
    %138 = arith.mulf %133, %137 : vector<16x16xf32>
    %cst_68 = arith.constant dense<0.000000e+00> : vector<16x8xf32>
    %139 = tpu.matmul %138, %121, %cst_68 {dimension_numbers = #tpu.dot_dimension_numbers<[1], [0], [0], [1], [0, 0, 1, 1], [], []>} : vector<16x16xf32>, vector<16x8xf32>, vector<16x8xf32> -> vector<16x8xf32>
    %140 = vector.extract_strided_slice %45 {offsets = [24, 0], sizes = [8, 32], strides = [1, 1]} : vector<32x32xf32> to vector<8x32xf32>
    %cst_69 = arith.constant dense<0.000000e+00> : vector<16x32xf32>
    %141 = tpu.matmul %139, %140, %cst_69 {dimension_numbers = #tpu.dot_dimension_numbers<[1], [0], [0], [1], [0, 0, 1, 1], [], []>} : vector<16x8xf32>, vector<8x32xf32>, vector<16x32xf32> -> vector<16x32xf32>
    %142 = arith.addf %118, %141 : vector<16x32xf32>
    %143 = arith.addf %8, %142 : vector<16x32xf32>
    %c0_70 = arith.constant 0 : index
    %c0_71 = arith.constant 0 : index
    %c0_72 = arith.constant 0 : index
    %c0_73 = arith.constant 0 : index
    %144 = vector.load %arg8[%c0_70, %c0_71, %c0_72, %c0_73] : memref<1x2x1x32xf32, #tpu.memory_space<vmem>>, vector<1x1x1x32xf32>
    %145 = vector.shape_cast %144 : vector<1x1x1x32xf32> to vector<1x32xf32>
    %146 = vector.broadcast %145 : vector<1x32xf32> to vector<16x32xf32>
    %147 = arith.addf %143, %146 : vector<16x32xf32>
    %c0_74 = arith.constant 0 : index
    %c0_75 = arith.constant 0 : index
    %c0_76 = arith.constant 0 : index
    %c0_77 = arith.constant 0 : index
    %148 = vector.load %arg15[%c0_74, %c0_75, %c0_76, %c0_77] : memref<1x2x1x32xf32, #tpu.memory_space<vmem>>, vector<1x1x1x32xf32>
    %149 = vector.shape_cast %148 : vector<1x1x1x32xf32> to vector<1x32xf32>
    %c0_78 = arith.constant 0 : index
    %c0_79 = arith.constant 0 : index
    %c0_80 = arith.constant 0 : index
    %c0_81 = arith.constant 0 : index
    %150 = vector.load %arg16[%c0_78, %c0_79, %c0_80, %c0_81] : memref<1x2x1x32xf32, #tpu.memory_space<vmem>>, vector<1x1x1x32xf32>
    %151 = vector.shape_cast %150 : vector<1x1x1x32xf32> to vector<1x32xf32>
    %cst_82 = arith.constant dense<0.000000e+00> : vector<16xf32>
    %152 = vector.multi_reduction <add>, %147, %cst_82 [1] : vector<16x32xf32> to vector<16xf32>
    %153 = vector.shape_cast %152 : vector<16xf32> to vector<16x1xf32>
    %cst_83 = arith.constant 3.200000e+01 : f32
    %154 = vector.broadcast %cst_83 : f32 to vector<16x1xf32>
    %155 = arith.divf %153, %154 : vector<16x1xf32>
    %156 = vector.broadcast %155 : vector<16x1xf32> to vector<16x32xf32>
    %157 = arith.subf %147, %156 : vector<16x32xf32>
    %158 = arith.mulf %157, %157 : vector<16x32xf32>
    %cst_84 = arith.constant dense<0.000000e+00> : vector<16xf32>
    %159 = vector.multi_reduction <add>, %158, %cst_84 [1] : vector<16x32xf32> to vector<16xf32>
    %160 = vector.shape_cast %159 : vector<16xf32> to vector<16x1xf32>
    %cst_85 = arith.constant 3.100000e+01 : f32
    %161 = vector.broadcast %cst_85 : f32 to vector<16x1xf32>
    %162 = arith.divf %160, %161 : vector<16x1xf32>
    %163 = vector.broadcast %155 : vector<16x1xf32> to vector<16x32xf32>
    %164 = arith.subf %147, %163 : vector<16x32xf32>
    %165 = vector.broadcast %149 : vector<1x32xf32> to vector<16x32xf32>
    %166 = arith.mulf %165, %164 : vector<16x32xf32>
    %167 = math.sqrt %162 : vector<16x1xf32>
    %cst_86 = arith.constant 9.99999997E-7 : f32
    %168 = vector.broadcast %cst_86 : f32 to vector<16x1xf32>
    %169 = arith.addf %167, %168 : vector<16x1xf32>
    %170 = vector.broadcast %169 : vector<16x1xf32> to vector<16x32xf32>
    %171 = arith.divf %166, %170 : vector<16x32xf32>
    %172 = vector.broadcast %151 : vector<1x32xf32> to vector<16x32xf32>
    %173 = arith.addf %171, %172 : vector<16x32xf32>
    %c0_87 = arith.constant 0 : index
    %c0_88 = arith.constant 0 : index
    %c0_89 = arith.constant 0 : index
    %c0_90 = arith.constant 0 : index
    %174 = vector.load %arg9[%c0_87, %c0_88, %c0_89, %c0_90] : memref<1x2x32x64xf32, #tpu.memory_space<vmem>>, vector<1x1x32x64xf32>
    %175 = vector.shape_cast %174 : vector<1x1x32x64xf32> to vector<32x64xf32>
    %cst_91 = arith.constant dense<0.000000e+00> : vector<16x64xf32>
    %176 = tpu.matmul %173, %175, %cst_91 {dimension_numbers = #tpu.dot_dimension_numbers<[1], [0], [0], [1], [0, 0, 1, 1], [], []>} : vector<16x32xf32>, vector<32x64xf32>, vector<16x64xf32> -> vector<16x64xf32>
    %c0_92 = arith.constant 0 : index
    %c0_93 = arith.constant 0 : index
    %c0_94 = arith.constant 0 : index
    %c0_95 = arith.constant 0 : index
    %177 = vector.load %arg10[%c0_92, %c0_93, %c0_94, %c0_95] : memref<1x2x1x64xf32, #tpu.memory_space<vmem>>, vector<1x1x1x64xf32>
    %178 = vector.shape_cast %177 : vector<1x1x1x64xf32> to vector<1x64xf32>
    %179 = vector.broadcast %178 : vector<1x64xf32> to vector<16x64xf32>
    %180 = arith.addf %176, %179 : vector<16x64xf32>
    %cst_96 = arith.constant 0.000000e+00 : f32
    %181 = vector.broadcast %cst_96 : f32 to vector<16x64xf32>
    %182 = arith.maximumf %180, %181 : vector<16x64xf32>
    %c0_97 = arith.constant 0 : index
    %c0_98 = arith.constant 0 : index
    %c0_99 = arith.constant 0 : index
    %c0_100 = arith.constant 0 : index
    %183 = vector.load %arg11[%c0_97, %c0_98, %c0_99, %c0_100] : memref<1x2x64x32xf32, #tpu.memory_space<vmem>>, vector<1x1x64x32xf32>
    %184 = vector.shape_cast %183 : vector<1x1x64x32xf32> to vector<64x32xf32>
    %cst_101 = arith.constant dense<0.000000e+00> : vector<16x32xf32>
    %185 = tpu.matmul %182, %184, %cst_101 {dimension_numbers = #tpu.dot_dimension_numbers<[1], [0], [0], [1], [0, 0, 1, 1], [], []>} : vector<16x64xf32>, vector<64x32xf32>, vector<16x32xf32> -> vector<16x32xf32>
    %186 = arith.addf %147, %185 : vector<16x32xf32>
    %c0_102 = arith.constant 0 : index
    %c0_103 = arith.constant 0 : index
    %c0_104 = arith.constant 0 : index
    %c0_105 = arith.constant 0 : index
    %187 = vector.load %arg12[%c0_102, %c0_103, %c0_104, %c0_105] : memref<1x2x1x32xf32, #tpu.memory_space<vmem>>, vector<1x1x1x32xf32>
    %188 = vector.shape_cast %187 : vector<1x1x1x32xf32> to vector<1x32xf32>
    %189 = vector.broadcast %188 : vector<1x32xf32> to vector<16x32xf32>
    %190 = arith.addf %186, %189 : vector<16x32xf32>
    %c0_106 = arith.constant 0 : index
    %c1 = arith.constant 1 : index
    %c0_107 = arith.constant 0 : index
    %c0_108 = arith.constant 0 : index
    %191 = vector.load %arg13[%c0_106, %c1, %c0_107, %c0_108] : memref<1x2x1x32xf32, #tpu.memory_space<vmem>>, vector<1x1x1x32xf32>
    %192 = vector.shape_cast %191 : vector<1x1x1x32xf32> to vector<1x32xf32>
    %c0_109 = arith.constant 0 : index
    %c1_110 = arith.constant 1 : index
    %c0_111 = arith.constant 0 : index
    %c0_112 = arith.constant 0 : index
    %193 = vector.load %arg14[%c0_109, %c1_110, %c0_111, %c0_112] : memref<1x2x1x32xf32, #tpu.memory_space<vmem>>, vector<1x1x1x32xf32>
    %194 = vector.shape_cast %193 : vector<1x1x1x32xf32> to vector<1x32xf32>
    %cst_113 = arith.constant dense<0.000000e+00> : vector<16xf32>
    %195 = vector.multi_reduction <add>, %190, %cst_113 [1] : vector<16x32xf32> to vector<16xf32>
    %196 = vector.shape_cast %195 : vector<16xf32> to vector<16x1xf32>
    %cst_114 = arith.constant 3.200000e+01 : f32
    %197 = vector.broadcast %cst_114 : f32 to vector<16x1xf32>
    %198 = arith.divf %196, %197 : vector<16x1xf32>
    %199 = vector.broadcast %198 : vector<16x1xf32> to vector<16x32xf32>
    %200 = arith.subf %190, %199 : vector<16x32xf32>
    %201 = arith.mulf %200, %200 : vector<16x32xf32>
    %cst_115 = arith.constant dense<0.000000e+00> : vector<16xf32>
    %202 = vector.multi_reduction <add>, %201, %cst_115 [1] : vector<16x32xf32> to vector<16xf32>
    %203 = vector.shape_cast %202 : vector<16xf32> to vector<16x1xf32>
    %cst_116 = arith.constant 3.100000e+01 : f32
    %204 = vector.broadcast %cst_116 : f32 to vector<16x1xf32>
    %205 = arith.divf %203, %204 : vector<16x1xf32>
    %206 = vector.broadcast %198 : vector<16x1xf32> to vector<16x32xf32>
    %207 = arith.subf %190, %206 : vector<16x32xf32>
    %208 = vector.broadcast %192 : vector<1x32xf32> to vector<16x32xf32>
    %209 = arith.mulf %208, %207 : vector<16x32xf32>
    %210 = math.sqrt %205 : vector<16x1xf32>
    %cst_117 = arith.constant 9.99999997E-7 : f32
    %211 = vector.broadcast %cst_117 : f32 to vector<16x1xf32>
    %212 = arith.addf %210, %211 : vector<16x1xf32>
    %213 = vector.broadcast %212 : vector<16x1xf32> to vector<16x32xf32>
    %214 = arith.divf %209, %213 : vector<16x32xf32>
    %215 = vector.broadcast %194 : vector<1x32xf32> to vector<16x32xf32>
    %216 = arith.addf %214, %215 : vector<16x32xf32>
    %c0_118 = arith.constant 0 : index
    %c1_119 = arith.constant 1 : index
    %c0_120 = arith.constant 0 : index
    %c0_121 = arith.constant 0 : index
    %217 = vector.load %arg5[%c0_118, %c1_119, %c0_120, %c0_121] : memref<1x2x32x96xf32, #tpu.memory_space<vmem>>, vector<1x1x32x96xf32>
    %218 = vector.shape_cast %217 : vector<1x1x32x96xf32> to vector<32x96xf32>
    %cst_122 = arith.constant dense<0.000000e+00> : vector<16x96xf32>
    %219 = tpu.matmul %216, %218, %cst_122 {dimension_numbers = #tpu.dot_dimension_numbers<[1], [0], [0], [1], [0, 0, 1, 1], [], []>} : vector<16x32xf32>, vector<32x96xf32>, vector<16x96xf32> -> vector<16x96xf32>
    %c0_123 = arith.constant 0 : index
    %c1_124 = arith.constant 1 : index
    %c0_125 = arith.constant 0 : index
    %c0_126 = arith.constant 0 : index
    %220 = vector.load %arg6[%c0_123, %c1_124, %c0_125, %c0_126] : memref<1x2x1x96xf32, #tpu.memory_space<vmem>>, vector<1x1x1x96xf32>
    %221 = vector.shape_cast %220 : vector<1x1x1x96xf32> to vector<1x96xf32>
    %222 = vector.broadcast %221 : vector<1x96xf32> to vector<16x96xf32>
    %223 = arith.addf %219, %222 : vector<16x96xf32>
    %c0_127 = arith.constant 0 : index
    %c1_128 = arith.constant 1 : index
    %c0_129 = arith.constant 0 : index
    %c0_130 = arith.constant 0 : index
    %224 = vector.load %arg7[%c0_127, %c1_128, %c0_129, %c0_130] : memref<1x2x32x32xf32, #tpu.memory_space<vmem>>, vector<1x1x32x32xf32>
    %225 = vector.shape_cast %224 : vector<1x1x32x32xf32> to vector<32x32xf32>
    %cst_131 = arith.constant 0.000000e+00 : f32
    %226 = vector.broadcast %cst_131 : f32 to vector<16x32xf32>
    %227 = vector.extract_strided_slice %223 {offsets = [0, 0], sizes = [16, 8], strides = [1, 1]} : vector<16x96xf32> to vector<16x8xf32>
    %228 = vector.extract_strided_slice %223 {offsets = [0, 32], sizes = [16, 8], strides = [1, 1]} : vector<16x96xf32> to vector<16x8xf32>
    %229 = vector.extract_strided_slice %223 {offsets = [0, 64], sizes = [16, 8], strides = [1, 1]} : vector<16x96xf32> to vector<16x8xf32>
    %cst_132 = arith.constant dense<0.000000e+00> : vector<16x16xf32>
    %230 = tpu.matmul %227, %228, %cst_132 {dimension_numbers = #tpu.dot_dimension_numbers<[1], [1], [0], [0], [0, 0, 1, 0], [], []>} : vector<16x8xf32>, vector<16x8xf32>, vector<16x16xf32> -> vector<16x16xf32>
    %cst_133 = arith.constant 0.353553385 : f32
    %231 = vector.broadcast %cst_133 : f32 to vector<16x16xf32>
    %232 = arith.mulf %230, %231 : vector<16x16xf32>
    %cst_134 = arith.constant 0.000000e+00 : f32
    %233 = vector.broadcast %cst_134 : f32 to vector<16x16xf32>
    %234 = arith.cmpf oeq, %10, %233 : vector<16x16xf32>
    %cst_135 = arith.constant -1.000000e+09 : f32
    %235 = vector.broadcast %cst_135 : f32 to vector<16x16xf32>
    %236 = arith.select %234, %235, %232 : vector<16x16xi1>, vector<16x16xf32>
    %cst_136 = arith.constant dense<0xFF800000> : vector<16xf32>
    %237 = vector.multi_reduction <maximumf>, %236, %cst_136 [1] : vector<16x16xf32> to vector<16xf32>
    %238 = vector.shape_cast %237 : vector<16xf32> to vector<16x1xf32>
    %239 = vector.broadcast %238 : vector<16x1xf32> to vector<16x16xf32>
    %240 = arith.subf %236, %239 : vector<16x16xf32>
    %241 = math.exp %240 : vector<16x16xf32>
    %cst_137 = arith.constant dense<0.000000e+00> : vector<16xf32>
    %242 = vector.multi_reduction <add>, %241, %cst_137 [1] : vector<16x16xf32> to vector<16xf32>
    %243 = vector.shape_cast %242 : vector<16xf32> to vector<16x1xf32>
    %244 = tpu.reciprocal %243 : vector<16x1xf32> -> vector<16x1xf32>
    %245 = vector.broadcast %244 : vector<16x1xf32> to vector<16x16xf32>
    %246 = arith.mulf %241, %245 : vector<16x16xf32>
    %cst_138 = arith.constant dense<0.000000e+00> : vector<16x8xf32>
    %247 = tpu.matmul %246, %229, %cst_138 {dimension_numbers = #tpu.dot_dimension_numbers<[1], [0], [0], [1], [0, 0, 1, 1], [], []>} : vector<16x16xf32>, vector<16x8xf32>, vector<16x8xf32> -> vector<16x8xf32>
    %248 = vector.extract_strided_slice %225 {offsets = [0, 0], sizes = [8, 32], strides = [1, 1]} : vector<32x32xf32> to vector<8x32xf32>
    %cst_139 = arith.constant dense<0.000000e+00> : vector<16x32xf32>
    %249 = tpu.matmul %247, %248, %cst_139 {dimension_numbers = #tpu.dot_dimension_numbers<[1], [0], [0], [1], [0, 0, 1, 1], [], []>} : vector<16x8xf32>, vector<8x32xf32>, vector<16x32xf32> -> vector<16x32xf32>
    %250 = arith.addf %226, %249 : vector<16x32xf32>
    %251 = vector.extract_strided_slice %223 {offsets = [0, 8], sizes = [16, 8], strides = [1, 1]} : vector<16x96xf32> to vector<16x8xf32>
    %252 = vector.extract_strided_slice %223 {offsets = [0, 40], sizes = [16, 8], strides = [1, 1]} : vector<16x96xf32> to vector<16x8xf32>
    %253 = vector.extract_strided_slice %223 {offsets = [0, 72], sizes = [16, 8], strides = [1, 1]} : vector<16x96xf32> to vector<16x8xf32>
    %cst_140 = arith.constant dense<0.000000e+00> : vector<16x16xf32>
    %254 = tpu.matmul %251, %252, %cst_140 {dimension_numbers = #tpu.dot_dimension_numbers<[1], [1], [0], [0], [0, 0, 1, 0], [], []>} : vector<16x8xf32>, vector<16x8xf32>, vector<16x16xf32> -> vector<16x16xf32>
    %cst_141 = arith.constant 0.353553385 : f32
    %255 = vector.broadcast %cst_141 : f32 to vector<16x16xf32>
    %256 = arith.mulf %254, %255 : vector<16x16xf32>
    %cst_142 = arith.constant 0.000000e+00 : f32
    %257 = vector.broadcast %cst_142 : f32 to vector<16x16xf32>
    %258 = arith.cmpf oeq, %10, %257 : vector<16x16xf32>
    %cst_143 = arith.constant -1.000000e+09 : f32
    %259 = vector.broadcast %cst_143 : f32 to vector<16x16xf32>
    %260 = arith.select %258, %259, %256 : vector<16x16xi1>, vector<16x16xf32>
    %cst_144 = arith.constant dense<0xFF800000> : vector<16xf32>
    %261 = vector.multi_reduction <maximumf>, %260, %cst_144 [1] : vector<16x16xf32> to vector<16xf32>
    %262 = vector.shape_cast %261 : vector<16xf32> to vector<16x1xf32>
    %263 = vector.broadcast %262 : vector<16x1xf32> to vector<16x16xf32>
    %264 = arith.subf %260, %263 : vector<16x16xf32>
    %265 = math.exp %264 : vector<16x16xf32>
    %cst_145 = arith.constant dense<0.000000e+00> : vector<16xf32>
    %266 = vector.multi_reduction <add>, %265, %cst_145 [1] : vector<16x16xf32> to vector<16xf32>
    %267 = vector.shape_cast %266 : vector<16xf32> to vector<16x1xf32>
    %268 = tpu.reciprocal %267 : vector<16x1xf32> -> vector<16x1xf32>
    %269 = vector.broadcast %268 : vector<16x1xf32> to vector<16x16xf32>
    %270 = arith.mulf %265, %269 : vector<16x16xf32>
    %cst_146 = arith.constant dense<0.000000e+00> : vector<16x8xf32>
    %271 = tpu.matmul %270, %253, %cst_146 {dimension_numbers = #tpu.dot_dimension_numbers<[1], [0], [0], [1], [0, 0, 1, 1], [], []>} : vector<16x16xf32>, vector<16x8xf32>, vector<16x8xf32> -> vector<16x8xf32>
    %272 = vector.extract_strided_slice %225 {offsets = [8, 0], sizes = [8, 32], strides = [1, 1]} : vector<32x32xf32> to vector<8x32xf32>
    %cst_147 = arith.constant dense<0.000000e+00> : vector<16x32xf32>
    %273 = tpu.matmul %271, %272, %cst_147 {dimension_numbers = #tpu.dot_dimension_numbers<[1], [0], [0], [1], [0, 0, 1, 1], [], []>} : vector<16x8xf32>, vector<8x32xf32>, vector<16x32xf32> -> vector<16x32xf32>
    %274 = arith.addf %250, %273 : vector<16x32xf32>
    %275 = vector.extract_strided_slice %223 {offsets = [0, 16], sizes = [16, 8], strides = [1, 1]} : vector<16x96xf32> to vector<16x8xf32>
    %276 = vector.extract_strided_slice %223 {offsets = [0, 48], sizes = [16, 8], strides = [1, 1]} : vector<16x96xf32> to vector<16x8xf32>
    %277 = vector.extract_strided_slice %223 {offsets = [0, 80], sizes = [16, 8], strides = [1, 1]} : vector<16x96xf32> to vector<16x8xf32>
    %cst_148 = arith.constant dense<0.000000e+00> : vector<16x16xf32>
    %278 = tpu.matmul %275, %276, %cst_148 {dimension_numbers = #tpu.dot_dimension_numbers<[1], [1], [0], [0], [0, 0, 1, 0], [], []>} : vector<16x8xf32>, vector<16x8xf32>, vector<16x16xf32> -> vector<16x16xf32>
    %cst_149 = arith.constant 0.353553385 : f32
    %279 = vector.broadcast %cst_149 : f32 to vector<16x16xf32>
    %280 = arith.mulf %278, %279 : vector<16x16xf32>
    %cst_150 = arith.constant 0.000000e+00 : f32
    %281 = vector.broadcast %cst_150 : f32 to vector<16x16xf32>
    %282 = arith.cmpf oeq, %10, %281 : vector<16x16xf32>
    %cst_151 = arith.constant -1.000000e+09 : f32
    %283 = vector.broadcast %cst_151 : f32 to vector<16x16xf32>
    %284 = arith.select %282, %283, %280 : vector<16x16xi1>, vector<16x16xf32>
    %cst_152 = arith.constant dense<0xFF800000> : vector<16xf32>
    %285 = vector.multi_reduction <maximumf>, %284, %cst_152 [1] : vector<16x16xf32> to vector<16xf32>
    %286 = vector.shape_cast %285 : vector<16xf32> to vector<16x1xf32>
    %287 = vector.broadcast %286 : vector<16x1xf32> to vector<16x16xf32>
    %288 = arith.subf %284, %287 : vector<16x16xf32>
    %289 = math.exp %288 : vector<16x16xf32>
    %cst_153 = arith.constant dense<0.000000e+00> : vector<16xf32>
    %290 = vector.multi_reduction <add>, %289, %cst_153 [1] : vector<16x16xf32> to vector<16xf32>
    %291 = vector.shape_cast %290 : vector<16xf32> to vector<16x1xf32>
    %292 = tpu.reciprocal %291 : vector<16x1xf32> -> vector<16x1xf32>
    %293 = vector.broadcast %292 : vector<16x1xf32> to vector<16x16xf32>
    %294 = arith.mulf %289, %293 : vector<16x16xf32>
    %cst_154 = arith.constant dense<0.000000e+00> : vector<16x8xf32>
    %295 = tpu.matmul %294, %277, %cst_154 {dimension_numbers = #tpu.dot_dimension_numbers<[1], [0], [0], [1], [0, 0, 1, 1], [], []>} : vector<16x16xf32>, vector<16x8xf32>, vector<16x8xf32> -> vector<16x8xf32>
    %296 = vector.extract_strided_slice %225 {offsets = [16, 0], sizes = [8, 32], strides = [1, 1]} : vector<32x32xf32> to vector<8x32xf32>
    %cst_155 = arith.constant dense<0.000000e+00> : vector<16x32xf32>
    %297 = tpu.matmul %295, %296, %cst_155 {dimension_numbers = #tpu.dot_dimension_numbers<[1], [0], [0], [1], [0, 0, 1, 1], [], []>} : vector<16x8xf32>, vector<8x32xf32>, vector<16x32xf32> -> vector<16x32xf32>
    %298 = arith.addf %274, %297 : vector<16x32xf32>
    %299 = vector.extract_strided_slice %223 {offsets = [0, 24], sizes = [16, 8], strides = [1, 1]} : vector<16x96xf32> to vector<16x8xf32>
    %300 = vector.extract_strided_slice %223 {offsets = [0, 56], sizes = [16, 8], strides = [1, 1]} : vector<16x96xf32> to vector<16x8xf32>
    %301 = vector.extract_strided_slice %223 {offsets = [0, 88], sizes = [16, 8], strides = [1, 1]} : vector<16x96xf32> to vector<16x8xf32>
    %cst_156 = arith.constant dense<0.000000e+00> : vector<16x16xf32>
    %302 = tpu.matmul %299, %300, %cst_156 {dimension_numbers = #tpu.dot_dimension_numbers<[1], [1], [0], [0], [0, 0, 1, 0], [], []>} : vector<16x8xf32>, vector<16x8xf32>, vector<16x16xf32> -> vector<16x16xf32>
    %cst_157 = arith.constant 0.353553385 : f32
    %303 = vector.broadcast %cst_157 : f32 to vector<16x16xf32>
    %304 = arith.mulf %302, %303 : vector<16x16xf32>
    %cst_158 = arith.constant 0.000000e+00 : f32
    %305 = vector.broadcast %cst_158 : f32 to vector<16x16xf32>
    %306 = arith.cmpf oeq, %10, %305 : vector<16x16xf32>
    %cst_159 = arith.constant -1.000000e+09 : f32
    %307 = vector.broadcast %cst_159 : f32 to vector<16x16xf32>
    %308 = arith.select %306, %307, %304 : vector<16x16xi1>, vector<16x16xf32>
    %cst_160 = arith.constant dense<0xFF800000> : vector<16xf32>
    %309 = vector.multi_reduction <maximumf>, %308, %cst_160 [1] : vector<16x16xf32> to vector<16xf32>
    %310 = vector.shape_cast %309 : vector<16xf32> to vector<16x1xf32>
    %311 = vector.broadcast %310 : vector<16x1xf32> to vector<16x16xf32>
    %312 = arith.subf %308, %311 : vector<16x16xf32>
    %313 = math.exp %312 : vector<16x16xf32>
    %cst_161 = arith.constant dense<0.000000e+00> : vector<16xf32>
    %314 = vector.multi_reduction <add>, %313, %cst_161 [1] : vector<16x16xf32> to vector<16xf32>
    %315 = vector.shape_cast %314 : vector<16xf32> to vector<16x1xf32>
    %316 = tpu.reciprocal %315 : vector<16x1xf32> -> vector<16x1xf32>
    %317 = vector.broadcast %316 : vector<16x1xf32> to vector<16x16xf32>
    %318 = arith.mulf %313, %317 : vector<16x16xf32>
    %cst_162 = arith.constant dense<0.000000e+00> : vector<16x8xf32>
    %319 = tpu.matmul %318, %301, %cst_162 {dimension_numbers = #tpu.dot_dimension_numbers<[1], [0], [0], [1], [0, 0, 1, 1], [], []>} : vector<16x16xf32>, vector<16x8xf32>, vector<16x8xf32> -> vector<16x8xf32>
    %320 = vector.extract_strided_slice %225 {offsets = [24, 0], sizes = [8, 32], strides = [1, 1]} : vector<32x32xf32> to vector<8x32xf32>
    %cst_163 = arith.constant dense<0.000000e+00> : vector<16x32xf32>
    %321 = tpu.matmul %319, %320, %cst_163 {dimension_numbers = #tpu.dot_dimension_numbers<[1], [0], [0], [1], [0, 0, 1, 1], [], []>} : vector<16x8xf32>, vector<8x32xf32>, vector<16x32xf32> -> vector<16x32xf32>
    %322 = arith.addf %298, %321 : vector<16x32xf32>
    %323 = arith.addf %190, %322 : vector<16x32xf32>
    %c0_164 = arith.constant 0 : index
    %c1_165 = arith.constant 1 : index
    %c0_166 = arith.constant 0 : index
    %c0_167 = arith.constant 0 : index
    %324 = vector.load %arg8[%c0_164, %c1_165, %c0_166, %c0_167] : memref<1x2x1x32xf32, #tpu.memory_space<vmem>>, vector<1x1x1x32xf32>
    %325 = vector.shape_cast %324 : vector<1x1x1x32xf32> to vector<1x32xf32>
    %326 = vector.broadcast %325 : vector<1x32xf32> to vector<16x32xf32>
    %327 = arith.addf %323, %326 : vector<16x32xf32>
    %c0_168 = arith.constant 0 : index
    %c1_169 = arith.constant 1 : index
    %c0_170 = arith.constant 0 : index
    %c0_171 = arith.constant 0 : index
    %328 = vector.load %arg15[%c0_168, %c1_169, %c0_170, %c0_171] : memref<1x2x1x32xf32, #tpu.memory_space<vmem>>, vector<1x1x1x32xf32>
    %329 = vector.shape_cast %328 : vector<1x1x1x32xf32> to vector<1x32xf32>
    %c0_172 = arith.constant 0 : index
    %c1_173 = arith.constant 1 : index
    %c0_174 = arith.constant 0 : index
    %c0_175 = arith.constant 0 : index
    %330 = vector.load %arg16[%c0_172, %c1_173, %c0_174, %c0_175] : memref<1x2x1x32xf32, #tpu.memory_space<vmem>>, vector<1x1x1x32xf32>
    %331 = vector.shape_cast %330 : vector<1x1x1x32xf32> to vector<1x32xf32>
    %cst_176 = arith.constant dense<0.000000e+00> : vector<16xf32>
    %332 = vector.multi_reduction <add>, %327, %cst_176 [1] : vector<16x32xf32> to vector<16xf32>
    %333 = vector.shape_cast %332 : vector<16xf32> to vector<16x1xf32>
    %cst_177 = arith.constant 3.200000e+01 : f32
    %334 = vector.broadcast %cst_177 : f32 to vector<16x1xf32>
    %335 = arith.divf %333, %334 : vector<16x1xf32>
    %336 = vector.broadcast %335 : vector<16x1xf32> to vector<16x32xf32>
    %337 = arith.subf %327, %336 : vector<16x32xf32>
    %338 = arith.mulf %337, %337 : vector<16x32xf32>
    %cst_178 = arith.constant dense<0.000000e+00> : vector<16xf32>
    %339 = vector.multi_reduction <add>, %338, %cst_178 [1] : vector<16x32xf32> to vector<16xf32>
    %340 = vector.shape_cast %339 : vector<16xf32> to vector<16x1xf32>
    %cst_179 = arith.constant 3.100000e+01 : f32
    %341 = vector.broadcast %cst_179 : f32 to vector<16x1xf32>
    %342 = arith.divf %340, %341 : vector<16x1xf32>
    %343 = vector.broadcast %335 : vector<16x1xf32> to vector<16x32xf32>
    %344 = arith.subf %327, %343 : vector<16x32xf32>
    %345 = vector.broadcast %329 : vector<1x32xf32> to vector<16x32xf32>
    %346 = arith.mulf %345, %344 : vector<16x32xf32>
    %347 = math.sqrt %342 : vector<16x1xf32>
    %cst_180 = arith.constant 9.99999997E-7 : f32
    %348 = vector.broadcast %cst_180 : f32 to vector<16x1xf32>
    %349 = arith.addf %347, %348 : vector<16x1xf32>
    %350 = vector.broadcast %349 : vector<16x1xf32> to vector<16x32xf32>
    %351 = arith.divf %346, %350 : vector<16x32xf32>
    %352 = vector.broadcast %331 : vector<1x32xf32> to vector<16x32xf32>
    %353 = arith.addf %351, %352 : vector<16x32xf32>
    %c0_181 = arith.constant 0 : index
    %c1_182 = arith.constant 1 : index
    %c0_183 = arith.constant 0 : index
    %c0_184 = arith.constant 0 : index
    %354 = vector.load %arg9[%c0_181, %c1_182, %c0_183, %c0_184] : memref<1x2x32x64xf32, #tpu.memory_space<vmem>>, vector<1x1x32x64xf32>
    %355 = vector.shape_cast %354 : vector<1x1x32x64xf32> to vector<32x64xf32>
    %cst_185 = arith.constant dense<0.000000e+00> : vector<16x64xf32>
    %356 = tpu.matmul %353, %355, %cst_185 {dimension_numbers = #tpu.dot_dimension_numbers<[1], [0], [0], [1], [0, 0, 1, 1], [], []>} : vector<16x32xf32>, vector<32x64xf32>, vector<16x64xf32> -> vector<16x64xf32>
    %c0_186 = arith.constant 0 : index
    %c1_187 = arith.constant 1 : index
    %c0_188 = arith.constant 0 : index
    %c0_189 = arith.constant 0 : index
    %357 = vector.load %arg10[%c0_186, %c1_187, %c0_188, %c0_189] : memref<1x2x1x64xf32, #tpu.memory_space<vmem>>, vector<1x1x1x64xf32>
    %358 = vector.shape_cast %357 : vector<1x1x1x64xf32> to vector<1x64xf32>
    %359 = vector.broadcast %358 : vector<1x64xf32> to vector<16x64xf32>
    %360 = arith.addf %356, %359 : vector<16x64xf32>
    %cst_190 = arith.constant 0.000000e+00 : f32
    %361 = vector.broadcast %cst_190 : f32 to vector<16x64xf32>
    %362 = arith.maximumf %360, %361 : vector<16x64xf32>
    %c0_191 = arith.constant 0 : index
    %c1_192 = arith.constant 1 : index
    %c0_193 = arith.constant 0 : index
    %c0_194 = arith.constant 0 : index
    %363 = vector.load %arg11[%c0_191, %c1_192, %c0_193, %c0_194] : memref<1x2x64x32xf32, #tpu.memory_space<vmem>>, vector<1x1x64x32xf32>
    %364 = vector.shape_cast %363 : vector<1x1x64x32xf32> to vector<64x32xf32>
    %cst_195 = arith.constant dense<0.000000e+00> : vector<16x32xf32>
    %365 = tpu.matmul %362, %364, %cst_195 {dimension_numbers = #tpu.dot_dimension_numbers<[1], [0], [0], [1], [0, 0, 1, 1], [], []>} : vector<16x64xf32>, vector<64x32xf32>, vector<16x32xf32> -> vector<16x32xf32>
    %366 = arith.addf %327, %365 : vector<16x32xf32>
    %c0_196 = arith.constant 0 : index
    %c1_197 = arith.constant 1 : index
    %c0_198 = arith.constant 0 : index
    %c0_199 = arith.constant 0 : index
    %367 = vector.load %arg12[%c0_196, %c1_197, %c0_198, %c0_199] : memref<1x2x1x32xf32, #tpu.memory_space<vmem>>, vector<1x1x1x32xf32>
    %368 = vector.shape_cast %367 : vector<1x1x1x32xf32> to vector<1x32xf32>
    %369 = vector.broadcast %368 : vector<1x32xf32> to vector<16x32xf32>
    %370 = arith.addf %366, %369 : vector<16x32xf32>
    %c0_200 = arith.constant 0 : index
    %c0_201 = arith.constant 0 : index
    %c0_202 = arith.constant 0 : index
    %371 = vector.load %arg17[%c0_200, %c0_201, %c0_202] : memref<1x1x32xf32, #tpu.memory_space<vmem>>, vector<1x1x32xf32>
    %372 = vector.shape_cast %371 : vector<1x1x32xf32> to vector<1x32xf32>
    %c0_203 = arith.constant 0 : index
    %c0_204 = arith.constant 0 : index
    %c0_205 = arith.constant 0 : index
    %373 = vector.load %arg18[%c0_203, %c0_204, %c0_205] : memref<1x1x32xf32, #tpu.memory_space<vmem>>, vector<1x1x32xf32>
    %374 = vector.shape_cast %373 : vector<1x1x32xf32> to vector<1x32xf32>
    %cst_206 = arith.constant dense<0.000000e+00> : vector<16xf32>
    %375 = vector.multi_reduction <add>, %370, %cst_206 [1] : vector<16x32xf32> to vector<16xf32>
    %376 = vector.shape_cast %375 : vector<16xf32> to vector<16x1xf32>
    %cst_207 = arith.constant 3.200000e+01 : f32
    %377 = vector.broadcast %cst_207 : f32 to vector<16x1xf32>
    %378 = arith.divf %376, %377 : vector<16x1xf32>
    %379 = vector.broadcast %378 : vector<16x1xf32> to vector<16x32xf32>
    %380 = arith.subf %370, %379 : vector<16x32xf32>
    %381 = arith.mulf %380, %380 : vector<16x32xf32>
    %cst_208 = arith.constant dense<0.000000e+00> : vector<16xf32>
    %382 = vector.multi_reduction <add>, %381, %cst_208 [1] : vector<16x32xf32> to vector<16xf32>
    %383 = vector.shape_cast %382 : vector<16xf32> to vector<16x1xf32>
    %cst_209 = arith.constant 3.100000e+01 : f32
    %384 = vector.broadcast %cst_209 : f32 to vector<16x1xf32>
    %385 = arith.divf %383, %384 : vector<16x1xf32>
    %386 = vector.broadcast %378 : vector<16x1xf32> to vector<16x32xf32>
    %387 = arith.subf %370, %386 : vector<16x32xf32>
    %388 = vector.broadcast %372 : vector<1x32xf32> to vector<16x32xf32>
    %389 = arith.mulf %388, %387 : vector<16x32xf32>
    %390 = math.sqrt %385 : vector<16x1xf32>
    %cst_210 = arith.constant 9.99999997E-7 : f32
    %391 = vector.broadcast %cst_210 : f32 to vector<16x1xf32>
    %392 = arith.addf %390, %391 : vector<16x1xf32>
    %393 = vector.broadcast %392 : vector<16x1xf32> to vector<16x32xf32>
    %394 = arith.divf %389, %393 : vector<16x32xf32>
    %395 = vector.broadcast %374 : vector<1x32xf32> to vector<16x32xf32>
    %396 = arith.addf %394, %395 : vector<16x32xf32>
    %c0_211 = arith.constant 0 : index
    %c0_212 = arith.constant 0 : index
    %c0_213 = arith.constant 0 : index
    %397 = vector.load %arg19[%c0_211, %c0_212, %c0_213] : memref<1x32x128xf32, #tpu.memory_space<vmem>>, vector<1x32x128xf32>
    %398 = vector.shape_cast %397 : vector<1x32x128xf32> to vector<32x128xf32>
    %cst_214 = arith.constant dense<0.000000e+00> : vector<16x128xf32>
    %399 = tpu.matmul %396, %398, %cst_214 {dimension_numbers = #tpu.dot_dimension_numbers<[1], [0], [0], [1], [0, 0, 1, 1], [], []>} : vector<16x32xf32>, vector<32x128xf32>, vector<16x128xf32> -> vector<16x128xf32>
    %c0_215 = arith.constant 0 : index
    %c0_216 = arith.constant 0 : index
    %c0_217 = arith.constant 0 : index
    %400 = vector.load %arg20[%c0_215, %c0_216, %c0_217] : memref<1x1x128xf32, #tpu.memory_space<vmem>>, vector<1x1x128xf32>
    %401 = vector.shape_cast %400 : vector<1x1x128xf32> to vector<1x128xf32>
    %402 = vector.broadcast %401 : vector<1x128xf32> to vector<16x128xf32>
    %403 = arith.addf %399, %402 : vector<16x128xf32>
    %c0_218 = arith.constant 0 : index
    %c0_219 = arith.constant 0 : index
    %c0_220 = arith.constant 0 : index
    %404 = vector.load %arg21[%c0_218, %c0_219, %c0_220] : memref<1x16x128xf32, #tpu.memory_space<vmem>>, vector<1x16x128xf32>
    %405 = vector.shape_cast %404 : vector<1x16x128xf32> to vector<16x128xf32>
    %406 = vector.shape_cast %403 : vector<16x128xf32> to vector<1x16x128xf32>
    tpu.vector_store %arg21[%c0_218, %c0_219, %c0_220], %406 {strides = array<i32>} : memref<1x16x128xf32, #tpu.memory_space<vmem>>, vector<1x16x128xf32>,
    return
  }
  func.func @transform_0(%arg0: i32) -> (i32, i32, i32) {
    %c0_i32 = arith.constant 0 : i32
    %c0_i32_0 = arith.constant 0 : i32
    %c0_i32_1 = arith.constant 0 : i32
    return %arg0, %c0_i32, %c0_i32_0 : i32, i32, i32
  }
  func.func @transform_1(%arg0: i32) -> (i32, i32, i32) {
    %c0_i32 = arith.constant 0 : i32
    %c0_i32_0 = arith.constant 0 : i32
    %c0_i32_1 = arith.constant 0 : i32
    return %arg0, %c0_i32, %c0_i32_0 : i32, i32, i32
  }
  func.func @transform_2(%arg0: i32) -> (i32, i32) {
    %c0_i32 = arith.constant 0 : i32
    %c0_i32_0 = arith.constant 0 : i32
    %c0_i32_1 = arith.constant 0 : i32
    return %c0_i32, %c0_i32_0 : i32, i32
  }
  func.func @transform_3(%arg0: i32) -> (i32, i32, i32) {
    %c0_i32 = arith.constant 0 : i32
    %c0_i32_0 = arith.constant 0 : i32
    %c0_i32_1 = arith.constant 0 : i32
    return %arg0, %c0_i32, %c0_i32_0 : i32, i32, i32
  }
  func.func @transform_4(%arg0: i32) -> (i32, i32, i32, i32) {
    %c0_i32 = arith.constant 0 : i32
    %c0_i32_0 = arith.constant 0 : i32
    %c0_i32_1 = arith.constant 0 : i32
    %c0_i32_2 = arith.constant 0 : i32
    return %arg0, %c0_i32, %c0_i32_0, %c0_i32_1 : i32, i32, i32, i32
  }
  func.func @transform_5(%arg0: i32) -> (i32, i32, i32, i32) {
    %c0_i32 = arith.constant 0 : i32
    %c0_i32_0 = arith.constant 0 : i32
    %c0_i32_1 = arith.constant 0 : i32
    %c0_i32_2 = arith.constant 0 : i32
    return %arg0, %c0_i32, %c0_i32_0, %c0_i32_1 : i32, i32, i32, i32
  }
  func.func @transform_6(%arg0: i32) -> (i32, i32, i32, i32) {
    %c0_i32 = arith.constant 0 : i32
    %c0_i32_0 = arith.constant 0 : i32
    %c0_i32_1 = arith.constant 0 : i32
    %c0_i32_2 = arith.constant 0 : i32
    return %arg0, %c0_i32, %c0_i32_0, %c0_i32_1 : i32, i32, i32, i32
  }
  func.func @transform_7(%arg0: i32) -> (i32, i32, i32, i32) {
    %c0_i32 = arith.constant 0 : i32
    %c0_i32_0 = arith.constant 0 : i32
    %c0_i32_1 = arith.constant 0 : i32
    %c0_i32_2 = arith.constant 0 : i32
    return %arg0, %c0_i32, %c0_i32_0, %c0_i32_1 : i32, i32, i32, i32
  }
  func.func @transform_8(%arg0: i32) -> (i32, i32, i32, i32) {
    %c0_i32 = arith.constant 0 : i32
    %c0_i32_0 = arith.constant 0 : i32
    %c0_i32_1 = arith.constant 0 : i32
    %c0_i32_2 = arith.constant 0 : i32
    return %arg0, %c0_i32, %c0_i32_0, %c0_i32_1 : i32, i32, i32, i32
  }
  func.func @transform_9(%arg0: i32) -> (i32, i32, i32, i32) {
    %c0_i32 = arith.constant 0 : i32
    %c0_i32_0 = arith.constant 0 : i32
    %c0_i32_1 = arith.constant 0 : i32
    %c0_i32_2 = arith.constant 0 : i32
    return %arg0, %c0_i32, %c0_i32_0, %c0_i32_1 : i32, i32, i32, i32
  }
  func.func @transform_10(%arg0: i32) -> (i32, i32, i32, i32) {
    %c0_i32 = arith.constant 0 : i32
    %c0_i32_0 = arith.constant 0 : i32
    %c0_i32_1 = arith.constant 0 : i32
    %c0_i32_2 = arith.constant 0 : i32
    return %arg0, %c0_i32, %c0_i32_0, %c0_i32_1 : i32, i32, i32, i32
  }
  func.func @transform_11(%arg0: i32) -> (i32, i32, i32, i32) {
    %c0_i32 = arith.constant 0 : i32
    %c0_i32_0 = arith.constant 0 : i32
    %c0_i32_1 = arith.constant 0 : i32
    %c0_i32_2 = arith.constant 0 : i32
    return %arg0, %c0_i32, %c0_i32_0, %c0_i32_1 : i32, i32, i32, i32
  }
  func.func @transform_12(%arg0: i32) -> (i32, i32, i32, i32) {
    %c0_i32 = arith.constant 0 : i32
    %c0_i32_0 = arith.constant 0 : i32
    %c0_i32_1 = arith.constant 0 : i32
    %c0_i32_2 = arith.constant 0 : i32
    return %arg0, %c0_i32, %c0_i32_0, %c0_i32_1 : i32, i32, i32, i32
  }
  func.func @transform_13(%arg0: i32) -> (i32, i32, i32, i32) {
    %c0_i32 = arith.constant 0 : i32
    %c0_i32_0 = arith.constant 0 : i32
    %c0_i32_1 = arith.constant 0 : i32
    %c0_i32_2 = arith.constant 0 : i32
    return %arg0, %c0_i32, %c0_i32_0, %c0_i32_1 : i32, i32, i32, i32
  }
  func.func @transform_14(%arg0: i32) -> (i32, i32, i32, i32) {
    %c0_i32 = arith.constant 0 : i32
    %c0_i32_0 = arith.constant 0 : i32
    %c0_i32_1 = arith.constant 0 : i32
    %c0_i32_2 = arith.constant 0 : i32
    return %arg0, %c0_i32, %c0_i32_0, %c0_i32_1 : i32, i32, i32, i32
  }
  func.func @transform_15(%arg0: i32) -> (i32, i32, i32, i32) {
    %c0_i32 = arith.constant 0 : i32
    %c0_i32_0 = arith.constant 0 : i32
    %c0_i32_1 = arith.constant 0 : i32
    %c0_i32_2 = arith.constant 0 : i32
    return %arg0, %c0_i32, %c0_i32_0, %c0_i32_1 : i32, i32, i32, i32
  }
  func.func @transform_16(%arg0: i32) -> (i32, i32, i32) {
    %c0_i32 = arith.constant 0 : i32
    %c0_i32_0 = arith.constant 0 : i32
    %c0_i32_1 = arith.constant 0 : i32
    return %arg0, %c0_i32, %c0_i32_0 : i32, i32, i32
  }
  func.func @transform_17(%arg0: i32) -> (i32, i32, i32) {
    %c0_i32 = arith.constant 0 : i32
    %c0_i32_0 = arith.constant 0 : i32
    %c0_i32_1 = arith.constant 0 : i32
    return %arg0, %c0_i32, %c0_i32_0 : i32, i32, i32
  }
  func.func @transform_18(%arg0: i32) -> (i32, i32, i32) {
    %c0_i32 = arith.constant 0 : i32
    %c0_i32_0 = arith.constant 0 : i32
    %c0_i32_1 = arith.constant 0 : i32
    return %arg0, %c0_i32, %c0_i32_0 : i32, i32, i32
  }
  func.func @transform_19(%arg0: i32) -> (i32, i32, i32) {
    %c0_i32 = arith.constant 0 : i32
    %c0_i32_0 = arith.constant 0 : i32
    %c0_i32_1 = arith.constant 0 : i32
    return %arg0, %c0_i32, %c0_i32_0 : i32, i32, i32
  }
  func.func @transform_20(%arg0: i32) -> (i32, i32, i32) {
    %c0_i32 = arith.constant 0 : i32
    %c0_i32_0 = arith.constant 0 : i32
    %c0_i32_1 = arith.constant 0 : i32
    return %arg0, %c0_i32, %c0_i32_0 : i32, i32, i32
  }
}

</mosaic_0001>

<llo_original>
// kernel: transformer_decoder_fr_forward.1
$region0: #{transformer_decoder_fr_forward.1}
  #allocation0 [shape = 'u32[]', space=smem, size = 0x4, offset = 0x4, fixed_abs, tag = 'smem constant byte address 0x4 - core index']
  #allocation1 [shape = 'u32[72,128]{1,0:T(1,128)}', space=vmem, size = 0x9000, scoped, tag = 'internal scratch']
  %s0 = inlined_call_operand.vmem [shape: f32[2,16,21], index: 0, kind: input, shape index: {}]
  %s1 = inlined_call_operand.vmem [shape: f32[2,16,16], index: 1, kind: input, shape index: {}]
  %s2 = inlined_call_operand.vmem [shape: f32[16,32], index: 2, kind: input, shape index: {}]
  %s3 = inlined_call_operand.vmem [shape: f32[2,21,32], index: 3, kind: input, shape index: {}]
  %s4 = inlined_call_operand.vmem [shape: f32[2,2,32,96], index: 4, kind: input, shape index: {}]
  %s5 = inlined_call_operand.vmem [shape: f32[2,2,1,96], index: 5, kind: input, shape index: {}]
  %s6 = inlined_call_operand.vmem [shape: f32[2,2,32,32], index: 6, kind: input, shape index: {}]
  %s7 = inlined_call_operand.vmem [shape: f32[2,2,1,32], index: 7, kind: input, shape index: {}]
  %s8 = inlined_call_operand.vmem [shape: f32[2,2,32,64], index: 8, kind: input, shape index: {}]
  %s9 = inlined_call_operand.vmem [shape: f32[2,2,1,64], index: 9, kind: input, shape index: {}]
  %s10 = inlined_call_operand.vmem [shape: f32[2,2,64,32], index: 10, kind: input, shape index: {}]
  %s11 = inlined_call_operand.vmem [shape: f32[2,2,1,32], index: 11, kind: input, shape index: {}]
  %s12 = inlined_call_operand.vmem [shape: f32[2,2,1,32], index: 12, kind: input, shape index: {}]
  %s13 = inlined_call_operand.vmem [shape: f32[2,2,1,32], index: 13, kind: input, shape index: {}]
  %s14 = inlined_call_operand.vmem [shape: f32[2,2,1,32], index: 14, kind: input, shape index: {}]
  %s15 = inlined_call_operand.vmem [shape: f32[2,2,1,32], index: 15, kind: input, shape index: {}]
  %s16 = inlined_call_operand.vmem [shape: f32[2,1,32], index: 16, kind: input, shape index: {}]
  %s17 = inlined_call_operand.vmem [shape: f32[2,1,32], index: 17, kind: input, shape index: {}]
  %s18 = inlined_call_operand.vmem [shape: f32[2,32,128], index: 18, kind: input, shape index: {}]
  %s19 = inlined_call_operand.vmem [shape: f32[2,1,128], index: 19, kind: input, shape index: {}]
  %s20 = inlined_call_operand.vmem [shape: f32[2,16,128], index: 20, kind: output, shape index: {}]
  %s21 = sld [smem:[#allocation0]]
  $region113: #{transformer_decoder_fr_forward.1} parent=0
    _
  %s23 = ssub.s32 1, %s21
  %s24 = scalar_select 0, %s23, %s21
  loop: start=0, step=1, limit=4
  $region2: #{transformer_decoder_fr_forward.1} parent=0 // loop_pre_header
    _
  $region3: #{transformer_decoder_fr_forward.1} parent=0 // loop_header
    %s26 = sphi 0, %s30
    %p27 = scmp.ge.s32.totalorder %s26, 4
    %s36 = sphi 0, %s38
    %s39 = sphi 0, %s36
    %s40 = sphi 0, %s39
    %s56 = sphi 0, %s40
    %s62 = sphi 0, %s64
    %s65 = sphi 0, %s62
    %s66 = sphi 0, %s65
    %s82 = sphi 0, %s66
    %s86 = sphi 0, %s86
    %s88 = sphi 0, %s86
    %s89 = sphi 0, %s88
    %s103 = sphi 0, %s89
    %s109 = sphi 0, %s111
    %s112 = sphi 0, %s109
    %s113 = sphi 0, %s112
    %s129 = sphi 0, %s113
    %s135 = sphi 0, %s137
    %s138 = sphi 0, %s135
    %s139 = sphi 0, %s138
    %s155 = sphi 0, %s139
    %s161 = sphi 0, %s163
    %s164 = sphi 0, %s161
    %s165 = sphi 0, %s164
    %s181 = sphi 0, %s165
    %s187 = sphi 0, %s189
    %s190 = sphi 0, %s187
    %s191 = sphi 0, %s190
    %s207 = sphi 0, %s191
    %s213 = sphi 0, %s215
    %s216 = sphi 0, %s213
    %s217 = sphi 0, %s216
    %s233 = sphi 0, %s217
    %s239 = sphi 0, %s241
    %s242 = sphi 0, %s239
    %s243 = sphi 0, %s242
    %s259 = sphi 0, %s243
    %s265 = sphi 0, %s267
    %s268 = sphi 0, %s265
    %s269 = sphi 0, %s268
    %s285 = sphi 0, %s269
    %s291 = sphi 0, %s293
    %s294 = sphi 0, %s291
    %s295 = sphi 0, %s294
    %s311 = sphi 0, %s295
    %s317 = sphi 0, %s319
    %s320 = sphi 0, %s317
    %s321 = sphi 0, %s320
    %s337 = sphi 0, %s321
    %s343 = sphi 0, %s345
    %s346 = sphi 0, %s343
    %s347 = sphi 0, %s346
    %s363 = sphi 0, %s347
    %s369 = sphi 0, %s371
    %s372 = sphi 0, %s369
    %s373 = sphi 0, %s372
    %s389 = sphi 0, %s373
    %s395 = sphi 0, %s397
    %s398 = sphi 0, %s395
    %s399 = sphi 0, %s398
    %s415 = sphi 0, %s399
    %s421 = sphi 0, %s423
    %s424 = sphi 0, %s421
    %s425 = sphi 0, %s424
    %s441 = sphi 0, %s425
    %s447 = sphi 0, %s449
    %s450 = sphi 0, %s447
    %s451 = sphi 0, %s450
    %s467 = sphi 0, %s451
    %s473 = sphi 0, %s475
    %s476 = sphi 0, %s473
    %s477 = sphi 0, %s476
    %s493 = sphi 0, %s477
    %s499 = sphi 0, %s501
    %s502 = sphi 0, %s499
    %s503 = sphi 0, %s502
    %s519 = sphi 0, %s503
    %s525 = sphi 0, %s527
    %s528 = sphi 0, %s525
    %s529 = sphi 0, %s528
    %s545 = sphi 0, %s529
    %s551 = sphi 0, %s553
    %s554 = sphi 0, %s551
    %s555 = sphi 0, %s554
    %s571 = sphi 0, %s555
  $region4: #{transformer_decoder_fr_forward.1} parent=0 // loop_header_branch
    %29 = sbr.rel (%p27) target = $region8
  $region5: #{transformer_decoder_fr_forward.1} parent=0 // loop_body
    %s31 = ssub.s32 %s26, 1
    %s32 = ssub.s32 %s26, 2
    %s33 = sadd.s32 %s26, 1
    %s34 = ssub.s32 %s26, %s33
    %p35 = scmp.eq.s32.totalorder %s34, 0
    %s37 = sadd.s32 %s36, 1
    %s38 = scalar_select %p35, %s36, %s37
    %p41 = pneg %p35
    %p42 = scmp.eq.s32.totalorder %s26, 1
    %p43 = por %p41, %p42
    %p44 = scmp.ne.s32.totalorder %s36, %s39
    %p45 = scmp.eq.s32.totalorder %s26, 0
    %p46 = por %p44, %p45
    %p47 = scmp.ne.s32.totalorder %s36, %s39
    %p48 = scmp.eq.s32.totalorder %s31, 1
    %p49 = por %p47, %p48
    %p50 = scmp.ne.s32.totalorder %s39, %s40
    %p51 = scmp.eq.s32.totalorder %s31, 0
    %p52 = por %p50, %p51
    %p53 = scmp.ne.s32.totalorder %s39, %s40
    %p54 = scmp.eq.s32.totalorder %s32, 1
    %p55 = por %p53, %p54
    %p57 = scmp.ne.s32.totalorder %s40, %s56
    %p58 = scmp.eq.s32.totalorder %s32, 0
    %p59 = por %p57, %p58
    %s60 = ssub.s32 %s26, %s33
    %p61 = scmp.eq.s32.totalorder %s60, 0
    %s63 = sadd.s32 %s62, 1
    %s64 = scalar_select %p61, %s62, %s63
    %p67 = pneg %p61
    %p68 = scmp.eq.s32.totalorder %s26, 1
    %p69 = por %p67, %p68
    %p70 = scmp.ne.s32.totalorder %s62, %s65
    %p71 = scmp.eq.s32.totalorder %s26, 0
    %p72 = por %p70, %p71
    %p73 = scmp.ne.s32.totalorder %s62, %s65
    %p74 = scmp.eq.s32.totalorder %s31, 1
    %p75 = por %p73, %p74
    %p76 = scmp.ne.s32.totalorder %s65, %s66
    %p77 = scmp.eq.s32.totalorder %s31, 0
    %p78 = por %p76, %p77
    %p79 = scmp.ne.s32.totalorder %s65, %s66
    %p80 = scmp.eq.s32.totalorder %s32, 1
    %p81 = por %p79, %p80
    %p83 = scmp.ne.s32.totalorder %s66, %s82
    %p84 = scmp.eq.s32.totalorder %s32, 0
    %p85 = por %p83, %p84
    %s87 = sadd.s32 %s86, 1
    %p90 = scmp.eq.s32.totalorder %s26, 1
    %p91 = scmp.ne.s32.totalorder %s86, %s88
    %p92 = scmp.eq.s32.totalorder %s26, 0
    %p93 = por %p91, %p92
    %p94 = scmp.ne.s32.totalorder %s86, %s88
    %p95 = scmp.eq.s32.totalorder %s31, 1
    %p96 = por %p94, %p95
    %p97 = scmp.ne.s32.totalorder %s88, %s89
    %p98 = scmp.eq.s32.totalorder %s31, 0
    %p99 = por %p97, %p98
    %p100 = scmp.ne.s32.totalorder %s88, %s89
    %p101 = scmp.eq.s32.totalorder %s32, 1
    %p102 = por %p100, %p101
    %p104 = scmp.ne.s32.totalorder %s89, %s103
    %p105 = scmp.eq.s32.totalorder %s32, 0
    %p106 = por %p104, %p105
    %s107 = ssub.s32 %s26, %s33
    %p108 = scmp.eq.s32.totalorder %s107, 0
    %s110 = sadd.s32 %s109, 1
    %s111 = scalar_select %p108, %s109, %s110
    %p114 = pneg %p108
    %p115 = scmp.eq.s32.totalorder %s26, 1
    %p116 = por %p114, %p115
    %p117 = scmp.ne.s32.totalorder %s109, %s112
    %p118 = scmp.eq.s32.totalorder %s26, 0
    %p119 = por %p117, %p118
    %p120 = scmp.ne.s32.totalorder %s109, %s112
    %p121 = scmp.eq.s32.totalorder %s31, 1
    %p122 = por %p120, %p121
    %p123 = scmp.ne.s32.totalorder %s112, %s113
    %p124 = scmp.eq.s32.totalorder %s31, 0
    %p125 = por %p123, %p124
    %p126 = scmp.ne.s32.totalorder %s112, %s113
    %p127 = scmp.eq.s32.totalorder %s32, 1
    %p128 = por %p126, %p127
    %p130 = scmp.ne.s32.totalorder %s113, %s129
    %p131 = scmp.eq.s32.totalorder %s32, 0
    %p132 = por %p130, %p131
    %s133 = ssub.s32 %s26, %s33
    %p134 = scmp.eq.s32.totalorder %s133, 0
    %s136 = sadd.s32 %s135, 1
    %s137 = scalar_select %p134, %s135, %s136
    %p140 = pneg %p134
    %p141 = scmp.eq.s32.totalorder %s26, 1
    %p142 = por %p140, %p141
    %p143 = scmp.ne.s32.totalorder %s135, %s138
    %p144 = scmp.eq.s32.totalorder %s26, 0
    %p145 = por %p143, %p144
    %p146 = scmp.ne.s32.totalorder %s135, %s138
    %p147 = scmp.eq.s32.totalorder %s31, 1
    %p148 = por %p146, %p147
    %p149 = scmp.ne.s32.totalorder %s138, %s139
    %p150 = scmp.eq.s32.totalorder %s31, 0
    %p151 = por %p149, %p150
    %p152 = scmp.ne.s32.totalorder %s138, %s139
    %p153 = scmp.eq.s32.totalorder %s32, 1
    %p154 = por %p152, %p153
    %p156 = scmp.ne.s32.totalorder %s139, %s155
    %p157 = scmp.eq.s32.totalorder %s32, 0
    %p158 = por %p156, %p157
    %s159 = ssub.s32 %s26, %s33
    %p160 = scmp.eq.s32.totalorder %s159, 0
    %s162 = sadd.s32 %s161, 1
    %s163 = scalar_select %p160, %s161, %s162
    %p166 = pneg %p160
    %p167 = scmp.eq.s32.totalorder %s26, 1
    %p168 = por %p166, %p167
    %p169 = scmp.ne.s32.totalorder %s161, %s164
    %p170 = scmp.eq.s32.totalorder %s26, 0
    %p171 = por %p169, %p170
    %p172 = scmp.ne.s32.totalorder %s161, %s164
    %p173 = scmp.eq.s32.totalorder %s31, 1
    %p174 = por %p172, %p173
    %p175 = scmp.ne.s32.totalorder %s164, %s165
    %p176 = scmp.eq.s32.totalorder %s31, 0
    %p177 = por %p175, %p176
    %p178 = scmp.ne.s32.totalorder %s164, %s165
    %p179 = scmp.eq.s32.totalorder %s32, 1
    %p180 = por %p178, %p179
    %p182 = scmp.ne.s32.totalorder %s165, %s181
    %p183 = scmp.eq.s32.totalorder %s32, 0
    %p184 = por %p182, %p183
    %s185 = ssub.s32 %s26, %s33
    %p186 = scmp.eq.s32.totalorder %s185, 0
    %s188 = sadd.s32 %s187, 1
    %s189 = scalar_select %p186, %s187, %s188
    %p192 = pneg %p186
    %p193 = scmp.eq.s32.totalorder %s26, 1
    %p194 = por %p192, %p193
    %p195 = scmp.ne.s32.totalorder %s187, %s190
    %p196 = scmp.eq.s32.totalorder %s26, 0
    %p197 = por %p195, %p196
    %p198 = scmp.ne.s32.totalorder %s187, %s190
    %p199 = scmp.eq.s32.totalorder %s31, 1
    %p200 = por %p198, %p199
    %p201 = scmp.ne.s32.totalorder %s190, %s191
    %p202 = scmp.eq.s32.totalorder %s31, 0
    %p203 = por %p201, %p202
    %p204 = scmp.ne.s32.totalorder %s190, %s191
    %p205 = scmp.eq.s32.totalorder %s32, 1
    %p206 = por %p204, %p205
    %p208 = scmp.ne.s32.totalorder %s191, %s207
    %p209 = scmp.eq.s32.totalorder %s32, 0
    %p210 = por %p208, %p209
    %s211 = ssub.s32 %s26, %s33
    %p212 = scmp.eq.s32.totalorder %s211, 0
    %s214 = sadd.s32 %s213, 1
    %s215 = scalar_select %p212, %s213, %s214
    %p218 = pneg %p212
    %p219 = scmp.eq.s32.totalorder %s26, 1
    %p220 = por %p218, %p219
    %p221 = scmp.ne.s32.totalorder %s213, %s216
    %p222 = scmp.eq.s32.totalorder %s26, 0
    %p223 = por %p221, %p222
    %p224 = scmp.ne.s32.totalorder %s213, %s216
    %p225 = scmp.eq.s32.totalorder %s31, 1
    %p226 = por %p224, %p225
    %p227 = scmp.ne.s32.totalorder %s216, %s217
    %p228 = scmp.eq.s32.totalorder %s31, 0
    %p229 = por %p227, %p228
    %p230 = scmp.ne.s32.totalorder %s216, %s217
    %p231 = scmp.eq.s32.totalorder %s32, 1
    %p232 = por %p230, %p231
    %p234 = scmp.ne.s32.totalorder %s217, %s233
    %p235 = scmp.eq.s32.totalorder %s32, 0
    %p236 = por %p234, %p235
    %s237 = ssub.s32 %s26, %s33
    %p238 = scmp.eq.s32.totalorder %s237, 0
    %s240 = sadd.s32 %s239, 1
    %s241 = scalar_select %p238, %s239, %s240
    %p244 = pneg %p238
    %p245 = scmp.eq.s32.totalorder %s26, 1
    %p246 = por %p244, %p245
    %p247 = scmp.ne.s32.totalorder %s239, %s242
    %p248 = scmp.eq.s32.totalorder %s26, 0
    %p249 = por %p247, %p248
    %p250 = scmp.ne.s32.totalorder %s239, %s242
    %p251 = scmp.eq.s32.totalorder %s31, 1
    %p252 = por %p250, %p251
    %p253 = scmp.ne.s32.totalorder %s242, %s243
    %p254 = scmp.eq.s32.totalorder %s31, 0
    %p255 = por %p253, %p254
    %p256 = scmp.ne.s32.totalorder %s242, %s243
    %p257 = scmp.eq.s32.totalorder %s32, 1
    %p258 = por %p256, %p257
    %p260 = scmp.ne.s32.totalorder %s243, %s259
    %p261 = scmp.eq.s32.totalorder %s32, 0
    %p262 = por %p260, %p261
    %s263 = ssub.s32 %s26, %s33
    %p264 = scmp.eq.s32.totalorder %s263, 0
    %s266 = sadd.s32 %s265, 1
    %s267 = scalar_select %p264, %s265, %s266
    %p270 = pneg %p264
    %p271 = scmp.eq.s32.totalorder %s26, 1
    %p272 = por %p270, %p271
    %p273 = scmp.ne.s32.totalorder %s265, %s268
    %p274 = scmp.eq.s32.totalorder %s26, 0
    %p275 = por %p273, %p274
    %p276 = scmp.ne.s32.totalorder %s265, %s268
    %p277 = scmp.eq.s32.totalorder %s31, 1
    %p278 = por %p276, %p277
    %p279 = scmp.ne.s32.totalorder %s268, %s269
    %p280 = scmp.eq.s32.totalorder %s31, 0
    %p281 = por %p279, %p280
    %p282 = scmp.ne.s32.totalorder %s268, %s269
    %p283 = scmp.eq.s32.totalorder %s32, 1
    %p284 = por %p282, %p283
    %p286 = scmp.ne.s32.totalorder %s269, %s285
    %p287 = scmp.eq.s32.totalorder %s32, 0
    %p288 = por %p286, %p287
    %s289 = ssub.s32 %s26, %s33
    %p290 = scmp.eq.s32.totalorder %s289, 0
    %s292 = sadd.s32 %s291, 1
    %s293 = scalar_select %p290, %s291, %s292
    %p296 = pneg %p290
    %p297 = scmp.eq.s32.totalorder %s26, 1
    %p298 = por %p296, %p297
    %p299 = scmp.ne.s32.totalorder %s291, %s294
    %p300 = scmp.eq.s32.totalorder %s26, 0
    %p301 = por %p299, %p300
    %p302 = scmp.ne.s32.totalorder %s291, %s294
    %p303 = scmp.eq.s32.totalorder %s31, 1
    %p304 = por %p302, %p303
    %p305 = scmp.ne.s32.totalorder %s294, %s295
    %p306 = scmp.eq.s32.totalorder %s31, 0
    %p307 = por %p305, %p306
    %p308 = scmp.ne.s32.totalorder %s294, %s295
    %p309 = scmp.eq.s32.totalorder %s32, 1
    %p310 = por %p308, %p309
    %p312 = scmp.ne.s32.totalorder %s295, %s311
    %p313 = scmp.eq.s32.totalorder %s32, 0
    %p314 = por %p312, %p313
    %s315 = ssub.s32 %s26, %s33
    %p316 = scmp.eq.s32.totalorder %s315, 0
    %s318 = sadd.s32 %s317, 1
    %s319 = scalar_select %p316, %s317, %s318
    %p322 = pneg %p316
    %p323 = scmp.eq.s32.totalorder %s26, 1
    %p324 = por %p322, %p323
    %p325 = scmp.ne.s32.totalorder %s317, %s320
    %p326 = scmp.eq.s32.totalorder %s26, 0
    %p327 = por %p325, %p326
    %p328 = scmp.ne.s32.totalorder %s317, %s320
    %p329 = scmp.eq.s32.totalorder %s31, 1
    %p330 = por %p328, %p329
    %p331 = scmp.ne.s32.totalorder %s320, %s321
    %p332 = scmp.eq.s32.totalorder %s31, 0
    %p333 = por %p331, %p332
    %p334 = scmp.ne.s32.totalorder %s320, %s321
    %p335 = scmp.eq.s32.totalorder %s32, 1
    %p336 = por %p334, %p335
    %p338 = scmp.ne.s32.totalorder %s321, %s337
    %p339 = scmp.eq.s32.totalorder %s32, 0
    %p340 = por %p338, %p339
    %s341 = ssub.s32 %s26, %s33
    %p342 = scmp.eq.s32.totalorder %s341, 0
    %s344 = sadd.s32 %s343, 1
    %s345 = scalar_select %p342, %s343, %s344
    %p348 = pneg %p342
    %p349 = scmp.eq.s32.totalorder %s26, 1
    %p350 = por %p348, %p349
    %p351 = scmp.ne.s32.totalorder %s343, %s346
    %p352 = scmp.eq.s32.totalorder %s26, 0
    %p353 = por %p351, %p352
    %p354 = scmp.ne.s32.totalorder %s343, %s346
    %p355 = scmp.eq.s32.totalorder %s31, 1
    %p356 = por %p354, %p355
    %p357 = scmp.ne.s32.totalorder %s346, %s347
    %p358 = scmp.eq.s32.totalorder %s31, 0
    %p359 = por %p357, %p358
    %p360 = scmp.ne.s32.totalorder %s346, %s347
    %p361 = scmp.eq.s32.totalorder %s32, 1
    %p362 = por %p360, %p361
    %p364 = scmp.ne.s32.totalorder %s347, %s363
    %p365 = scmp.eq.s32.totalorder %s32, 0
    %p366 = por %p364, %p365
    %s367 = ssub.s32 %s26, %s33
    %p368 = scmp.eq.s32.totalorder %s367, 0
    %s370 = sadd.s32 %s369, 1
    %s371 = scalar_select %p368, %s369, %s370
    %p374 = pneg %p368
    %p375 = scmp.eq.s32.totalorder %s26, 1
    %p376 = por %p374, %p375
    %p377 = scmp.ne.s32.totalorder %s369, %s372
    %p378 = scmp.eq.s32.totalorder %s26, 0
    %p379 = por %p377, %p378
    %p380 = scmp.ne.s32.totalorder %s369, %s372
    %p381 = scmp.eq.s32.totalorder %s31, 1
    %p382 = por %p380, %p381
    %p383 = scmp.ne.s32.totalorder %s372, %s373
    %p384 = scmp.eq.s32.totalorder %s31, 0
    %p385 = por %p383, %p384
    %p386 = scmp.ne.s32.totalorder %s372, %s373
    %p387 = scmp.eq.s32.totalorder %s32, 1
    %p388 = por %p386, %p387
    %p390 = scmp.ne.s32.totalorder %s373, %s389
    %p391 = scmp.eq.s32.totalorder %s32, 0
    %p392 = por %p390, %p391
    %s393 = ssub.s32 %s26, %s33
    %p394 = scmp.eq.s32.totalorder %s393, 0
    %s396 = sadd.s32 %s395, 1
    %s397 = scalar_select %p394, %s395, %s396
    %p400 = pneg %p394
    %p401 = scmp.eq.s32.totalorder %s26, 1
    %p402 = por %p400, %p401
    %p403 = scmp.ne.s32.totalorder %s395, %s398
    %p404 = scmp.eq.s32.totalorder %s26, 0
    %p405 = por %p403, %p404
    %p406 = scmp.ne.s32.totalorder %s395, %s398
    %p407 = scmp.eq.s32.totalorder %s31, 1
    %p408 = por %p406, %p407
    %p409 = scmp.ne.s32.totalorder %s398, %s399
    %p410 = scmp.eq.s32.totalorder %s31, 0
    %p411 = por %p409, %p410
    %p412 = scmp.ne.s32.totalorder %s398, %s399
    %p413 = scmp.eq.s32.totalorder %s32, 1
    %p414 = por %p412, %p413
    %p416 = scmp.ne.s32.totalorder %s399, %s415
    %p417 = scmp.eq.s32.totalorder %s32, 0
    %p418 = por %p416, %p417
    %s419 = ssub.s32 %s26, %s33
    %p420 = scmp.eq.s32.totalorder %s419, 0
    %s422 = sadd.s32 %s421, 1
    %s423 = scalar_select %p420, %s421, %s422
    %p426 = pneg %p420
    %p427 = scmp.eq.s32.totalorder %s26, 1
    %p428 = por %p426, %p427
    %p429 = scmp.ne.s32.totalorder %s421, %s424
    %p430 = scmp.eq.s32.totalorder %s26, 0
    %p431 = por %p429, %p430
    %p432 = scmp.ne.s32.totalorder %s421, %s424
    %p433 = scmp.eq.s32.totalorder %s31, 1
    %p434 = por %p432, %p433
    %p435 = scmp.ne.s32.totalorder %s424, %s425
    %p436 = scmp.eq.s32.totalorder %s31, 0
    %p437 = por %p435, %p436
    %p438 = scmp.ne.s32.totalorder %s424, %s425
    %p439 = scmp.eq.s32.totalorder %s32, 1
    %p440 = por %p438, %p439
    %p442 = scmp.ne.s32.totalorder %s425, %s441
    %p443 = scmp.eq.s32.totalorder %s32, 0
    %p444 = por %p442, %p443
    %s445 = ssub.s32 %s26, %s33
    %p446 = scmp.eq.s32.totalorder %s445, 0
    %s448 = sadd.s32 %s447, 1
    %s449 = scalar_select %p446, %s447, %s448
    %p452 = pneg %p446
    %p453 = scmp.eq.s32.totalorder %s26, 1
    %p454 = por %p452, %p453
    %p455 = scmp.ne.s32.totalorder %s447, %s450
    %p456 = scmp.eq.s32.totalorder %s26, 0
    %p457 = por %p455, %p456
    %p458 = scmp.ne.s32.totalorder %s447, %s450
    %p459 = scmp.eq.s32.totalorder %s31, 1
    %p460 = por %p458, %p459
    %p461 = scmp.ne.s32.totalorder %s450, %s451
    %p462 = scmp.eq.s32.totalorder %s31, 0
    %p463 = por %p461, %p462
    %p464 = scmp.ne.s32.totalorder %s450, %s451
    %p465 = scmp.eq.s32.totalorder %s32, 1
    %p466 = por %p464, %p465
    %p468 = scmp.ne.s32.totalorder %s451, %s467
    %p469 = scmp.eq.s32.totalorder %s32, 0
    %p470 = por %p468, %p469
    %s471 = ssub.s32 %s26, %s33
    %p472 = scmp.eq.s32.totalorder %s471, 0
    %s474 = sadd.s32 %s473, 1
    %s475 = scalar_select %p472, %s473, %s474
    %p478 = pneg %p472
    %p479 = scmp.eq.s32.totalorder %s26, 1
    %p480 = por %p478, %p479
    %p481 = scmp.ne.s32.totalorder %s473, %s476
    %p482 = scmp.eq.s32.totalorder %s26, 0
    %p483 = por %p481, %p482
    %p484 = scmp.ne.s32.totalorder %s473, %s476
    %p485 = scmp.eq.s32.totalorder %s31, 1
    %p486 = por %p484, %p485
    %p487 = scmp.ne.s32.totalorder %s476, %s477
    %p488 = scmp.eq.s32.totalorder %s31, 0
    %p489 = por %p487, %p488
    %p490 = scmp.ne.s32.totalorder %s476, %s477
    %p491 = scmp.eq.s32.totalorder %s32, 1
    %p492 = por %p490, %p491
    %p494 = scmp.ne.s32.totalorder %s477, %s493
    %p495 = scmp.eq.s32.totalorder %s32, 0
    %p496 = por %p494, %p495
    %s497 = ssub.s32 %s26, %s33
    %p498 = scmp.eq.s32.totalorder %s497, 0
    %s500 = sadd.s32 %s499, 1
    %s501 = scalar_select %p498, %s499, %s500
    %p504 = pneg %p498
    %p505 = scmp.eq.s32.totalorder %s26, 1
    %p506 = por %p504, %p505
    %p507 = scmp.ne.s32.totalorder %s499, %s502
    %p508 = scmp.eq.s32.totalorder %s26, 0
    %p509 = por %p507, %p508
    %p510 = scmp.ne.s32.totalorder %s499, %s502
    %p511 = scmp.eq.s32.totalorder %s31, 1
    %p512 = por %p510, %p511
    %p513 = scmp.ne.s32.totalorder %s502, %s503
    %p514 = scmp.eq.s32.totalorder %s31, 0
    %p515 = por %p513, %p514
    %p516 = scmp.ne.s32.totalorder %s502, %s503
    %p517 = scmp.eq.s32.totalorder %s32, 1
    %p518 = por %p516, %p517
    %p520 = scmp.ne.s32.totalorder %s503, %s519
    %p521 = scmp.eq.s32.totalorder %s32, 0
    %p522 = por %p520, %p521
    %s523 = ssub.s32 %s26, %s33
    %p524 = scmp.eq.s32.totalorder %s523, 0
    %s526 = sadd.s32 %s525, 1
    %s527 = scalar_select %p524, %s525, %s526
    %p530 = pneg %p524
    %p531 = scmp.eq.s32.totalorder %s26, 1
    %p532 = por %p530, %p531
    %p533 = scmp.ne.s32.totalorder %s525, %s528
    %p534 = scmp.eq.s32.totalorder %s26, 0
    %p535 = por %p533, %p534
    %p536 = scmp.ne.s32.totalorder %s525, %s528
    %p537 = scmp.eq.s32.totalorder %s31, 1
    %p538 = por %p536, %p537
    %p539 = scmp.ne.s32.totalorder %s528, %s529
    %p540 = scmp.eq.s32.totalorder %s31, 0
    %p541 = por %p539, %p540
    %p542 = scmp.ne.s32.totalorder %s528, %s529
    %p543 = scmp.eq.s32.totalorder %s32, 1
    %p544 = por %p542, %p543
    %p546 = scmp.ne.s32.totalorder %s529, %s545
    %p547 = scmp.eq.s32.totalorder %s32, 0
    %p548 = por %p546, %p547
    %s549 = ssub.s32 %s26, %s33
    %p550 = scmp.eq.s32.totalorder %s549, 0
    %s552 = sadd.s32 %s551, 1
    %s553 = scalar_select %p550, %s551, %s552
    %p556 = pneg %p550
    %p557 = scmp.eq.s32.totalorder %s26, 1
    %p558 = por %p556, %p557
    %p559 = scmp.ne.s32.totalorder %s551, %s554
    %p560 = scmp.eq.s32.totalorder %s26, 0
    %p561 = por %p559, %p560
    %p562 = scmp.ne.s32.totalorder %s551, %s554
    %p563 = scmp.eq.s32.totalorder %s31, 1
    %p564 = por %p562, %p563
    %p565 = scmp.ne.s32.totalorder %s554, %s555
    %p566 = scmp.eq.s32.totalorder %s31, 0
    %p567 = por %p565, %p566
    %p568 = scmp.ne.s32.totalorder %s554, %s555
    %p569 = scmp.eq.s32.totalorder %s32, 1
    %p570 = por %p568, %p569
    %p572 = scmp.ne.s32.totalorder %s555, %s571
    %p573 = scmp.eq.s32.totalorder %s32, 0
    %p574 = por %p572, %p573
    %p575 = scmp.le.s32.totalorder 1, %s26
    %p576 = scmp.lt.s32.totalorder %s26, 3
    %p577 = pnand %p575, %p576
    %p578 = pneg %p577
    // Predicated region
    $region9: #{transformer_decoder_fr_forward.1} parent=5 // pred_check
      _
    $region10: #{transformer_decoder_fr_forward.1} parent=5 // pred_check_branch
      %580 = sbr.rel (%p577) target = $region12
    $region11: #{transformer_decoder_fr_forward.1} parent=5 // pred_region
      %s581 = ssub.s32 %s26, 1
      // Predicated region
      $region13: #{transformer_decoder_fr_forward.1} parent=11 // pred_check
        %p582 = pneg %p99
      $region14: #{transformer_decoder_fr_forward.1} parent=11 // pred_check_branch
        %584 = sbr.rel (%p582) target = $region16
      $region15: #{transformer_decoder_fr_forward.1} parent=11 // pred_region
        _
      $region16: #{transformer_decoder_fr_forward.1} parent=11 // pred_fallthru
        _
    $region12: #{transformer_decoder_fr_forward.1} parent=5 // pred_fallthru
      _
    %p585 = scmp.lt.s32.totalorder %s26, 2
    // Predicated region
    $region17: #{transformer_decoder_fr_forward.1} parent=5 // pred_check
      %p586 = pneg %p585
    $region18: #{transformer_decoder_fr_forward.1} parent=5 // pred_check_branch
      %588 = sbr.rel (%p586) target = $region20
    $region19: #{transformer_decoder_fr_forward.1} parent=5 // pred_region
      // Predicated region
      $region21: #{transformer_decoder_fr_forward.1} parent=19 // pred_check
        %p589 = pneg %p46
      $region22: #{transformer_decoder_fr_forward.1} parent=19 // pred_check_branch
        %591 = sbr.rel (%p589) target = $region24
      $region23: #{transformer_decoder_fr_forward.1} parent=19 // pred_region
        %p592 = scmp.lt.s32.totalorder %s26, 1
        %s593 = scalar_select %p592, %s26, 1
        %s594 = smul.addr %s593, 2
        %s595 = smul.addr %s594, 8
        %s596 = scalar_lea.vmem %s0, %s595
      $region24: #{transformer_decoder_fr_forward.1} parent=19 // pred_fallthru
        _
      // Predicated region
      $region25: #{transformer_decoder_fr_forward.1} parent=19 // pred_check
        %p597 = pneg %p72
      $region26: #{transformer_decoder_fr_forward.1} parent=19 // pred_check_branch
        %599 = sbr.rel (%p597) target = $region28
      $region27: #{transformer_decoder_fr_forward.1} parent=19 // pred_region
        %p600 = scmp.lt.s32.totalorder %s26, 1
        %s601 = scalar_select %p600, %s26, 1
        %s602 = smul.addr %s601, 2
        %s603 = smul.addr %s602, 8
        %s604 = scalar_lea.vmem %s1, %s603
      $region28: #{transformer_decoder_fr_forward.1} parent=19 // pred_fallthru
        _
      // Predicated region
      $region29: #{transformer_decoder_fr_forward.1} parent=19 // pred_check
        %p605 = pneg %p119
      $region30: #{transformer_decoder_fr_forward.1} parent=19 // pred_check_branch
        %607 = sbr.rel (%p605) target = $region32
      $region31: #{transformer_decoder_fr_forward.1} parent=19 // pred_region
        %p608 = scmp.lt.s32.totalorder %s26, 1
        %s609 = scalar_select %p608, %s26, 1
        %s610 = smul.addr %s609, 3
        %s611 = smul.addr %s610, 8
        %s612 = scalar_lea.vmem %s3, %s611
      $region32: #{transformer_decoder_fr_forward.1} parent=19 // pred_fallthru
        _
      // Predicated region
      $region33: #{transformer_decoder_fr_forward.1} parent=19 // pred_check
        %p613 = pneg %p145
      $region34: #{transformer_decoder_fr_forward.1} parent=19 // pred_check_branch
        %615 = sbr.rel (%p613) target = $region36
      $region35: #{transformer_decoder_fr_forward.1} parent=19 // pred_region
        %p616 = scmp.lt.s32.totalorder %s26, 1
        %s617 = scalar_select %p616, %s26, 1
        %s618 = smul.addr %s617, 8
        %s619 = smul.addr %s618, 8
        %s620 = scalar_lea.vmem %s4, %s619
      $region36: #{transformer_decoder_fr_forward.1} parent=19 // pred_fallthru
        _
      // Predicated region
      $region37: #{transformer_decoder_fr_forward.1} parent=19 // pred_check
        %p621 = pneg %p171
      $region38: #{transformer_decoder_fr_forward.1} parent=19 // pred_check_branch
        %623 = sbr.rel (%p621) target = $region40
      $region39: #{transformer_decoder_fr_forward.1} parent=19 // pred_region
        %p624 = scmp.lt.s32.totalorder %s26, 1
        %s625 = scalar_select %p624, %s26, 1
        %s626 = smul.addr %s625, 2
        %s627 = scalar_lea.vmem %s5, %s626
      $region40: #{transformer_decoder_fr_forward.1} parent=19 // pred_fallthru
        _
      // Predicated region
      $region41: #{transformer_decoder_fr_forward.1} parent=19 // pred_check
        %p628 = pneg %p197
      $region42: #{transformer_decoder_fr_forward.1} parent=19 // pred_check_branch
        %630 = sbr.rel (%p628) target = $region44
      $region43: #{transformer_decoder_fr_forward.1} parent=19 // pred_region
        %p631 = scmp.lt.s32.totalorder %s26, 1
        %s632 = scalar_select %p631, %s26, 1
        %s633 = smul.addr %s632, 8
        %s634 = smul.addr %s633, 8
        %s635 = scalar_lea.vmem %s6, %s634
      $region44: #{transformer_decoder_fr_forward.1} parent=19 // pred_fallthru
        _
      // Predicated region
      $region45: #{transformer_decoder_fr_forward.1} parent=19 // pred_check
        %p636 = pneg %p223
      $region46: #{transformer_decoder_fr_forward.1} parent=19 // pred_check_branch
        %638 = sbr.rel (%p636) target = $region48
      $region47: #{transformer_decoder_fr_forward.1} parent=19 // pred_region
        %p639 = scmp.lt.s32.totalorder %s26, 1
        %s640 = scalar_select %p639, %s26, 1
        %s641 = smul.addr %s640, 2
        %s642 = scalar_lea.vmem %s7, %s641
      $region48: #{transformer_decoder_fr_forward.1} parent=19 // pred_fallthru
        _
      // Predicated region
      $region49: #{transformer_decoder_fr_forward.1} parent=19 // pred_check
        %p643 = pneg %p249
      $region50: #{transformer_decoder_fr_forward.1} parent=19 // pred_check_branch
        %645 = sbr.rel (%p643) target = $region52
      $region51: #{transformer_decoder_fr_forward.1} parent=19 // pred_region
        %p646 = scmp.lt.s32.totalorder %s26, 1
        %s647 = scalar_select %p646, %s26, 1
        %s648 = smul.addr %s647, 8
        %s649 = smul.addr %s648, 8
        %s650 = scalar_lea.vmem %s8, %s649
      $region52: #{transformer_decoder_fr_forward.1} parent=19 // pred_fallthru
        _
      // Predicated region
      $region53: #{transformer_decoder_fr_forward.1} parent=19 // pred_check
        %p651 = pneg %p275
      $region54: #{transformer_decoder_fr_forward.1} parent=19 // pred_check_branch
        %653 = sbr.rel (%p651) target = $region56
      $region55: #{transformer_decoder_fr_forward.1} parent=19 // pred_region
        %p654 = scmp.lt.s32.totalorder %s26, 1
        %s655 = scalar_select %p654, %s26, 1
        %s656 = smul.addr %s655, 2
        %s657 = scalar_lea.vmem %s9, %s656
      $region56: #{transformer_decoder_fr_forward.1} parent=19 // pred_fallthru
        _
      // Predicated region
      $region57: #{transformer_decoder_fr_forward.1} parent=19 // pred_check
        %p658 = pneg %p301
      $region58: #{transformer_decoder_fr_forward.1} parent=19 // pred_check_branch
        %660 = sbr.rel (%p658) target = $region60
      $region59: #{transformer_decoder_fr_forward.1} parent=19 // pred_region
        %p661 = scmp.lt.s32.totalorder %s26, 1
        %s662 = scalar_select %p661, %s26, 1
        %s663 = smul.addr %s662, 16
        %s664 = smul.addr %s663, 8
        %s665 = scalar_lea.vmem %s10, %s664
      $region60: #{transformer_decoder_fr_forward.1} parent=19 // pred_fallthru
        _
      // Predicated region
      $region61: #{transformer_decoder_fr_forward.1} parent=19 // pred_check
        %p666 = pneg %p327
      $region62: #{transformer_decoder_fr_forward.1} parent=19 // pred_check_branch
        %668 = sbr.rel (%p666) target = $region64
      $region63: #{transformer_decoder_fr_forward.1} parent=19 // pred_region
        %p669 = scmp.lt.s32.totalorder %s26, 1
        %s670 = scalar_select %p669, %s26, 1
        %s671 = smul.addr %s670, 2
        %s672 = scalar_lea.vmem %s11, %s671
      $region64: #{transformer_decoder_fr_forward.1} parent=19 // pred_fallthru
        _
      // Predicated region
      $region65: #{transformer_decoder_fr_forward.1} parent=19 // pred_check
        %p673 = pneg %p353
      $region66: #{transformer_decoder_fr_forward.1} parent=19 // pred_check_branch
        %675 = sbr.rel (%p673) target = $region68
      $region67: #{transformer_decoder_fr_forward.1} parent=19 // pred_region
        %p676 = scmp.lt.s32.totalorder %s26, 1
        %s677 = scalar_select %p676, %s26, 1
        %s678 = smul.addr %s677, 2
        %s679 = scalar_lea.vmem %s12, %s678
      $region68: #{transformer_decoder_fr_forward.1} parent=19 // pred_fallthru
        _
      // Predicated region
      $region69: #{transformer_decoder_fr_forward.1} parent=19 // pred_check
        %p680 = pneg %p379
      $region70: #{transformer_decoder_fr_forward.1} parent=19 // pred_check_branch
        %682 = sbr.rel (%p680) target = $region72
      $region71: #{transformer_decoder_fr_forward.1} parent=19 // pred_region
        %p683 = scmp.lt.s32.totalorder %s26, 1
        %s684 = scalar_select %p683, %s26, 1
        %s685 = smul.addr %s684, 2
        %s686 = scalar_lea.vmem %s13, %s685
      $region72: #{transformer_decoder_fr_forward.1} parent=19 // pred_fallthru
        _
      // Predicated region
      $region73: #{transformer_decoder_fr_forward.1} parent=19 // pred_check
        %p687 = pneg %p405
      $region74: #{transformer_decoder_fr_forward.1} parent=19 // pred_check_branch
        %689 = sbr.rel (%p687) target = $region76
      $region75: #{transformer_decoder_fr_forward.1} parent=19 // pred_region
        %p690 = scmp.lt.s32.totalorder %s26, 1
        %s691 = scalar_select %p690, %s26, 1
        %s692 = smul.addr %s691, 2
        %s693 = scalar_lea.vmem %s14, %s692
      $region76: #{transformer_decoder_fr_forward.1} parent=19 // pred_fallthru
        _
      // Predicated region
      $region77: #{transformer_decoder_fr_forward.1} parent=19 // pred_check
        %p694 = pneg %p431
      $region78: #{transformer_decoder_fr_forward.1} parent=19 // pred_check_branch
        %696 = sbr.rel (%p694) target = $region80
      $region79: #{transformer_decoder_fr_forward.1} parent=19 // pred_region
        %p697 = scmp.lt.s32.totalorder %s26, 1
        %s698 = scalar_select %p697, %s26, 1
        %s699 = smul.addr %s698, 2
        %s700 = scalar_lea.vmem %s15, %s699
      $region80: #{transformer_decoder_fr_forward.1} parent=19 // pred_fallthru
        _
      // Predicated region
      $region81: #{transformer_decoder_fr_forward.1} parent=19 // pred_check
        %p701 = pneg %p457
      $region82: #{transformer_decoder_fr_forward.1} parent=19 // pred_check_branch
        %703 = sbr.rel (%p701) target = $region84
      $region83: #{transformer_decoder_fr_forward.1} parent=19 // pred_region
        %p704 = scmp.lt.s32.totalorder %s26, 1
        %s705 = scalar_select %p704, %s26, 1
        %s706 = scalar_lea.vmem %s16, %s705
      $region84: #{transformer_decoder_fr_forward.1} parent=19 // pred_fallthru
        _
      // Predicated region
      $region85: #{transformer_decoder_fr_forward.1} parent=19 // pred_check
        %p707 = pneg %p483
      $region86: #{transformer_decoder_fr_forward.1} parent=19 // pred_check_branch
        %709 = sbr.rel (%p707) target = $region88
      $region87: #{transformer_decoder_fr_forward.1} parent=19 // pred_region
        %p710 = scmp.lt.s32.totalorder %s26, 1
        %s711 = scalar_select %p710, %s26, 1
        %s712 = scalar_lea.vmem %s17, %s711
      $region88: #{transformer_decoder_fr_forward.1} parent=19 // pred_fallthru
        _
      // Predicated region
      $region89: #{transformer_decoder_fr_forward.1} parent=19 // pred_check
        %p713 = pneg %p509
      $region90: #{transformer_decoder_fr_forward.1} parent=19 // pred_check_branch
        %715 = sbr.rel (%p713) target = $region92
      $region91: #{transformer_decoder_fr_forward.1} parent=19 // pred_region
        %p716 = scmp.lt.s32.totalorder %s26, 1
        %s717 = scalar_select %p716, %s26, 1
        %s718 = smul.addr %s717, 4
        %s719 = smul.addr %s718, 8
        %s720 = scalar_lea.vmem %s18, %s719
      $region92: #{transformer_decoder_fr_forward.1} parent=19 // pred_fallthru
        _
      // Predicated region
      $region93: #{transformer_decoder_fr_forward.1} parent=19 // pred_check
        %p721 = pneg %p535
      $region94: #{transformer_decoder_fr_forward.1} parent=19 // pred_check_branch
        %723 = sbr.rel (%p721) target = $region96
      $region95: #{transformer_decoder_fr_forward.1} parent=19 // pred_region
        %p724 = scmp.lt.s32.totalorder %s26, 1
        %s725 = scalar_select %p724, %s26, 1
        %s726 = scalar_lea.vmem %s19, %s725
      $region96: #{transformer_decoder_fr_forward.1} parent=19 // pred_fallthru
        _
    $region20: #{transformer_decoder_fr_forward.1} parent=5 // pred_fallthru
      _
    %p727 = scmp.le.s32.totalorder 1, %s26
    %p728 = scmp.lt.s32.totalorder %s26, 3
    %p729 = pnand %p727, %p728
    %p730 = pneg %p729
    // Predicated region
    $region97: #{transformer_decoder_fr_forward.1} parent=5 // pred_check
      _
    $region98: #{transformer_decoder_fr_forward.1} parent=5 // pred_check_branch
      %732 = sbr.rel (%p729) target = $region100
    $region99: #{transformer_decoder_fr_forward.1} parent=5 // pred_region
      %s733 = ssub.s32 %s26, 1
      %p734 = scmp.lt.s32.totalorder %s31, 1
      %s735 = scalar_select %p734, %s31, 1
      %s736 = smul.addr %s735, 2
      %s737 = smul.addr %s736, 8
      %s738 = scalar_lea.vmem %s0, %s737
      %p739 = pneg %p52
      %p740 = pneg %p49
      %p741 = scmp.lt.s32.totalorder %s31, 1
      %s742 = scalar_select %p741, %s31, 1
      %s743 = smul.addr %s742, 2
      %s744 = smul.addr %s743, 8
      %s745 = scalar_lea.vmem %s1, %s744
      %p746 = pneg %p78
      %p747 = pneg %p75
      %p748 = pneg %p99
      %p749 = pneg %p96
      %p750 = scmp.lt.s32.totalorder %s31, 1
      %s751 = scalar_select %p750, %s31, 1
      %s752 = smul.addr %s751, 3
      %s753 = smul.addr %s752, 8
      %s754 = scalar_lea.vmem %s3, %s753
      %p755 = pneg %p125
      %p756 = pneg %p122
      %p757 = scmp.lt.s32.totalorder %s31, 1
      %s758 = scalar_select %p757, %s31, 1
      %s759 = smul.addr %s758, 8
      %s760 = smul.addr %s759, 8
      %s761 = scalar_lea.vmem %s4, %s760
      %p762 = pneg %p151
      %p763 = pneg %p148
      %p764 = scmp.lt.s32.totalorder %s31, 1
      %s765 = scalar_select %p764, %s31, 1
      %s766 = smul.addr %s765, 2
      %s767 = scalar_lea.vmem %s5, %s766
      %p768 = pneg %p177
      %p769 = pneg %p174
      %p770 = scmp.lt.s32.totalorder %s31, 1
      %s771 = scalar_select %p770, %s31, 1
      %s772 = smul.addr %s771, 8
      %s773 = smul.addr %s772, 8
      %s774 = scalar_lea.vmem %s6, %s773
      %p775 = pneg %p203
      %p776 = pneg %p200
      %p777 = scmp.lt.s32.totalorder %s31, 1
      %s778 = scalar_select %p777, %s31, 1
      %s779 = smul.addr %s778, 2
      %s780 = scalar_lea.vmem %s7, %s779
      %p781 = pneg %p229
      %p782 = pneg %p226
      %p783 = scmp.lt.s32.totalorder %s31, 1
      %s784 = scalar_select %p783, %s31, 1
      %s785 = smul.addr %s784, 8
      %s786 = smul.addr %s785, 8
      %s787 = scalar_lea.vmem %s8, %s786
      %p788 = pneg %p255
      %p789 = pneg %p252
      %p790 = scmp.lt.s32.totalorder %s31, 1
      %s791 = scalar_select %p790, %s31, 1
      %s792 = smul.addr %s791, 2
      %s793 = scalar_lea.vmem %s9, %s792
      %p794 = pneg %p281
      %p795 = pneg %p278
      %p796 = scmp.lt.s32.totalorder %s31, 1
      %s797 = scalar_select %p796, %s31, 1
      %s798 = smul.addr %s797, 16
      %s799 = smul.addr %s798, 8
      %s800 = scalar_lea.vmem %s10, %s799
      %p801 = pneg %p307
      %p802 = pneg %p304
      %p803 = scmp.lt.s32.totalorder %s31, 1
      %s804 = scalar_select %p803, %s31, 1
      %s805 = smul.addr %s804, 2
      %s806 = scalar_lea.vmem %s11, %s805
      %p807 = pneg %p333
      %p808 = pneg %p330
      %p809 = scmp.lt.s32.totalorder %s31, 1
      %s810 = scalar_select %p809, %s31, 1
      %s811 = smul.addr %s810, 2
      %s812 = scalar_lea.vmem %s12, %s811
      %p813 = pneg %p359
      %p814 = pneg %p356
      %p815 = scmp.lt.s32.totalorder %s31, 1
      %s816 = scalar_select %p815, %s31, 1
      %s817 = smul.addr %s816, 2
      %s818 = scalar_lea.vmem %s13, %s817
      %p819 = pneg %p385
      %p820 = pneg %p382
      %p821 = scmp.lt.s32.totalorder %s31, 1
      %s822 = scalar_select %p821, %s31, 1
      %s823 = smul.addr %s822, 2
      %s824 = scalar_lea.vmem %s14, %s823
      %p825 = pneg %p411
      %p826 = pneg %p408
      %p827 = scmp.lt.s32.totalorder %s31, 1
      %s828 = scalar_select %p827, %s31, 1
      %s829 = smul.addr %s828, 2
      %s830 = scalar_lea.vmem %s15, %s829
      %p831 = pneg %p437
      %p832 = pneg %p434
      %p833 = scmp.lt.s32.totalorder %s31, 1
      %s834 = scalar_select %p833, %s31, 1
      %s835 = scalar_lea.vmem %s16, %s834
      %p836 = pneg %p463
      %p837 = pneg %p460
      %p838 = scmp.lt.s32.totalorder %s31, 1
      %s839 = scalar_select %p838, %s31, 1
      %s840 = scalar_lea.vmem %s17, %s839
      %p841 = pneg %p489
      %p842 = pneg %p486
      %p843 = scmp.lt.s32.totalorder %s31, 1
      %s844 = scalar_select %p843, %s31, 1
      %s845 = smul.addr %s844, 4
      %s846 = smul.addr %s845, 8
      %s847 = scalar_lea.vmem %s18, %s846
      %p848 = pneg %p515
      %p849 = pneg %p512
      %p850 = scmp.lt.s32.totalorder %s31, 1
      %s851 = scalar_select %p850, %s31, 1
      %s852 = scalar_lea.vmem %s19, %s851
      %p853 = pneg %p541
      %p854 = pneg %p538
      %p855 = pneg %p567
      %p856 = pneg %p564
      %p857 = scmp.lt.s32.totalorder %s31, 1
      %s858 = scalar_select %p857, %s31, 1
      %s859 = smul.addr %s858, 2
      %s860 = smul.addr %s859, 8
      %s861 = scalar_lea.vmem %s20, %s860
      %p862 = scmp.lt.s32.totalorder %s31, 1
      %s863 = scalar_select %p862, %s31, 1
      %s864 = smul.addr %s863, 2
      %s865 = smul.addr %s864, 8
      %s866 = scalar_lea.vmem %s0, %s865
      %p867 = scmp.lt.s32.totalorder %s31, 1
      %s868 = scalar_select %p867, %s31, 1
      %s869 = smul.addr %s868, 2
      %s870 = smul.addr %s869, 8
      %s871 = scalar_lea.vmem %s1, %s870
      %p872 = scmp.lt.s32.totalorder %s31, 1
      %s873 = scalar_select %p872, %s31, 1
      %s874 = smul.addr %s873, 3
      %s875 = smul.addr %s874, 8
      %s876 = scalar_lea.vmem %s3, %s875
      %p877 = scmp.lt.s32.totalorder %s31, 1
      %s878 = scalar_select %p877, %s31, 1
      %s879 = smul.addr %s878, 8
      %s880 = smul.addr %s879, 8
      %s881 = scalar_lea.vmem %s4, %s880
      %p882 = scmp.lt.s32.totalorder %s31, 1
      %s883 = scalar_select %p882, %s31, 1
      %s884 = smul.addr %s883, 2
      %s885 = scalar_lea.vmem %s5, %s884
      %p886 = scmp.lt.s32.totalorder %s31, 1
      %s887 = scalar_select %p886, %s31, 1
      %s888 = smul.addr %s887, 8
      %s889 = smul.addr %s888, 8
      %s890 = scalar_lea.vmem %s6, %s889
      %p891 = scmp.lt.s32.totalorder %s31, 1
      %s892 = scalar_select %p891, %s31, 1
      %s893 = smul.addr %s892, 2
      %s894 = scalar_lea.vmem %s7, %s893
      %p895 = scmp.lt.s32.totalorder %s31, 1
      %s896 = scalar_select %p895, %s31, 1
      %s897 = smul.addr %s896, 8
      %s898 = smul.addr %s897, 8
      %s899 = scalar_lea.vmem %s8, %s898
      %p900 = scmp.lt.s32.totalorder %s31, 1
      %s901 = scalar_select %p900, %s31, 1
      %s902 = smul.addr %s901, 2
      %s903 = scalar_lea.vmem %s9, %s902
      %p904 = scmp.lt.s32.totalorder %s31, 1
      %s905 = scalar_select %p904, %s31, 1
      %s906 = smul.addr %s905, 16
      %s907 = smul.addr %s906, 8
      %s908 = scalar_lea.vmem %s10, %s907
      %p909 = scmp.lt.s32.totalorder %s31, 1
      %s910 = scalar_select %p909, %s31, 1
      %s911 = smul.addr %s910, 2
      %s912 = scalar_lea.vmem %s11, %s911
      %p913 = scmp.lt.s32.totalorder %s31, 1
      %s914 = scalar_select %p913, %s31, 1
      %s915 = smul.addr %s914, 2
      %s916 = scalar_lea.vmem %s12, %s915
      %p917 = scmp.lt.s32.totalorder %s31, 1
      %s918 = scalar_select %p917, %s31, 1
      %s919 = smul.addr %s918, 2
      %s920 = scalar_lea.vmem %s13, %s919
      %p921 = scmp.lt.s32.totalorder %s31, 1
      %s922 = scalar_select %p921, %s31, 1
      %s923 = smul.addr %s922, 2
      %s924 = scalar_lea.vmem %s14, %s923
      %p925 = scmp.lt.s32.totalorder %s31, 1
      %s926 = scalar_select %p925, %s31, 1
      %s927 = smul.addr %s926, 2
      %s928 = scalar_lea.vmem %s15, %s927
      %p929 = scmp.lt.s32.totalorder %s31, 1
      %s930 = scalar_select %p929, %s31, 1
      %s931 = scalar_lea.vmem %s16, %s930
      %p932 = scmp.lt.s32.totalorder %s31, 1
      %s933 = scalar_select %p932, %s31, 1
      %s934 = scalar_lea.vmem %s17, %s933
      %p935 = scmp.lt.s32.totalorder %s31, 1
      %s936 = scalar_select %p935, %s31, 1
      %s937 = smul.addr %s936, 4
      %s938 = smul.addr %s937, 8
      %s939 = scalar_lea.vmem %s18, %s938
      %p940 = scmp.lt.s32.totalorder %s31, 1
      %s941 = scalar_select %p940, %s31, 1
      %s942 = scalar_lea.vmem %s19, %s941
      %p943 = scmp.lt.s32.totalorder %s31, 1
      %s944 = scalar_select %p943, %s31, 1
      %s945 = smul.addr %s944, 2
      %s946 = smul.addr %s945, 8
      %s947 = scalar_lea.vmem %s20, %s946
      %v948 = vld [vmem:[%s866] sm:$0xff]
      %v949 = vld [vmem:[%s866 + $0x8] sm:$0xff]
      %v950 = vld [vmem:[%s876] sm:$0xff]
      %v951 = vld [vmem:[%s876 + $0x8] sm:$0xff]
      %v952 = vld [vmem:[%s876 + $0x10] sm:$0x1f]
      %vm953 = vcmask 171008
      %v955 = vsel %vm953, %v948, 0
      %v958 = vsel %vm953, %v949, 0
      %vm960 = vcmask 1044480
      %v962 = vsel %vm960, %v952, 0
      %964 = vmatpush.msra.mxu0 0.0
      %965 = vmatpush.msra.mxu0 0.0
      %966 = vmatpush.msra.mxu0 0.0
      %967 = vmatpush.msra.mxu0 0.0
      %968 = vmatpush.msra.mxu0 0.0
      %969 = vmatpush.msra.mxu0 0.0
      %970 = vmatpush.msra.mxu0 0.0
      %971 = vmatpush.msra.mxu0 0.0
      %972 = vmatpush.msra.mxu0 0.0
      %973 = vmatpush.msra.mxu0 0.0
      %974 = vmatpush.msra.mxu0 0.0
      %975 = vmatpush.msra.mxu0 0.0
      %976 = vmatpush.msra.mxu0 0.0
      %977 = vmatpush.msra.mxu0 %v962
      %978 = vmatpush.msra.mxu0 %v951
      %979 = vmatpush.msra.mxu0 %v950
      %980 = vmatmul.f32.gmra.mxu0 %v955
      %v981 = vpop.f32.mrf.mxu0
      %v982 = vadd.f32 0.0, %v981
      %983 = vmatmul.f32.gmra.mxu0 %v958
      %v984 = vpop.f32.mrf.mxu0
      %v985 = vadd.f32 0.0, %v984
      %986 = vdwg.mxu0
      %v987 = vmul.f32 %v982, 5.656854
      %v988 = vmul.f32 %v985, 5.656854
      %v989 = vld [vmem:[%s2] sm:$0xff]
      %v990 = vld [vmem:[%s2 + $0x8] sm:$0xff]
      %v991 = vadd.f32 %v987, %v989
      %v992 = vadd.f32 %v988, %v990
      %v993 = vld [vmem:[%s871] sm:$0xff]
      %v994 = vld [vmem:[%s871 + $0x8] sm:$0xff]
      %v995 = vld [vmem:[%s916] sm:$0x1]
      %v996 = vld [vmem:[%s920] sm:$0x1]
      %vm997 = vcmask 261120
      %v998 = vsel %vm997, %v991, 0.0
      %999 = vadd.xlane.f32.xlu0 %v998
      %v1000 = vpop.xlane.xlu0 %999
      %v1001 = vsel %vm997, %v992, 0.0
      %1002 = vadd.xlane.f32.xlu0 %v1001
      %v1003 = vpop.xlane.xlu0 %1002
      %v1004 = vrcp.pop 32.0
      %v1005 = vmul.f32 32.0, %v1004
      %v1006 = vsub.f32 1.0, %v1005
      %v1007 = vmul.f32 %v1004, %v1006
      %v1008 = vadd.f32 %v1004, %v1007
      %vm1009 = vweird.f32 %v1004
      %v1010 = vsel %vm1009, %v1004, %v1008
      %v1011 = vmul.f32 %v1000, %v1010
      %v1012 = vmul.f32 %v1003, %v1010
      %v1013 = vsub.f32 %v991, %v1011
      %v1014 = vsub.f32 %v992, %v1012
      %v1015 = vmul.f32 %v1013, %v1013
      %v1016 = vmul.f32 %v1014, %v1014
      %v1017 = vsel %vm997, %v1015, 0.0
      %1018 = vadd.xlane.f32.xlu0 %v1017
      %v1019 = vpop.xlane.xlu0 %1018
      %v1020 = vsel %vm997, %v1016, 0.0
      %1021 = vadd.xlane.f32.xlu0 %v1020
      %v1022 = vpop.xlane.xlu0 %1021
      %v1023 = vrcp.pop 31.0
      %v1024 = vmul.f32 31.0, %v1023
      %v1025 = vsub.f32 1.0, %v1024
      %v1026 = vmul.f32 %v1023, %v1025
      %v1027 = vadd.f32 %v1023, %v1026
      %vm1028 = vweird.f32 %v1023
      %v1029 = vsel %vm1028, %v1023, %v1027
      %v1030 = vmul.f32 %v1019, %v1029
      %v1031 = vmul.f32 %v1022, %v1029
      %v1033 = vperm.slane %v995, 0
      %v1035 = vmul.f32 %v1033, %v1013
      %v1036 = vmul.f32 %v1033, %v1014
      %v1037 = vrsqrt.pop %v1030
      %v1038 = vmul.f32 %v1037, %v1030
      %v1039 = vmul.f32 %v1038, %v1037
      %v1040 = vmul.f32 0.5, %v1039
      %v1041 = vsub.f32 1.5, %v1040
      %v1042 = vmul.f32 %v1037, %v1041
      %v1043 = vmul.f32 %v1030, %v1042
      %vm1044 = vcmp.eq.f32.partialorder %v1030, inf
      %v1045 = vsel %vm1044, %v1030, %v1043
      %vm1046 = vcmp.eq.f32.partialorder %v1030, 0.0
      %v1047 = vand.u32 %v1030, 2147483648
      %v1048 = vsel %vm1046, %v1047, %v1045
      %v1049 = vrsqrt.pop %v1031
      %v1050 = vmul.f32 %v1049, %v1031
      %v1051 = vmul.f32 %v1050, %v1049
      %v1052 = vmul.f32 0.5, %v1051
      %v1053 = vsub.f32 1.5, %v1052
      %v1054 = vmul.f32 %v1049, %v1053
      %v1055 = vmul.f32 %v1031, %v1054
      %vm1056 = vcmp.eq.f32.partialorder %v1031, inf
      %v1057 = vsel %vm1056, %v1031, %v1055
      %vm1058 = vcmp.eq.f32.partialorder %v1031, 0.0
      %v1059 = vand.u32 %v1031, 2147483648
      %v1060 = vsel %vm1058, %v1059, %v1057
      %v1061 = vadd.f32 %v1048, 1e-06
      %v1062 = vadd.f32 %v1060, 1e-06
      %v1063 = vrcp.pop %v1061
      %v1064 = vmul.f32 %v1061, %v1063
      %v1065 = vsub.f32 1.0, %v1064
      %v1066 = vmul.f32 %v1063, %v1065
      %v1067 = vadd.f32 %v1063, %v1066
      %vm1068 = vweird.f32 %v1061
      %vm1069 = vweird.f32 %v1063
      %vm1070 = vmor %vm1068, %vm1069
      %v1071 = vsel %vm1070, %v1063, %v1067
      %v1072 = vand.u32 2147483647, %v1061
      %vm1073 = vcmp.eq.f32.partialorder %v1072, 8.507059e+37
      %v1074 = vand.u32 %v1061, 2147483648
      %v1075 = vor.u32 1.1754944e-38, %v1074
      %v1076 = vsel %vm1073, %v1075, %v1071
      %v1077 = vmul.f32 %v1035, %v1076
      %v1078 = vrcp.pop %v1062
      %v1079 = vmul.f32 %v1062, %v1078
      %v1080 = vsub.f32 1.0, %v1079
      %v1081 = vmul.f32 %v1078, %v1080
      %v1082 = vadd.f32 %v1078, %v1081
      %vm1083 = vweird.f32 %v1062
      %vm1084 = vweird.f32 %v1078
      %vm1085 = vmor %vm1083, %vm1084
      %v1086 = vsel %vm1085, %v1078, %v1082
      %v1087 = vand.u32 2147483647, %v1062
      %vm1088 = vcmp.eq.f32.partialorder %v1087, 8.507059e+37
      %v1089 = vand.u32 %v1062, 2147483648
      %v1090 = vor.u32 1.1754944e-38, %v1089
      %v1091 = vsel %vm1088, %v1090, %v1086
      %v1092 = vmul.f32 %v1036, %v1091
      %v1094 = vperm.slane %v996, 0
      %v1096 = vadd.f32 %v1077, %v1094
      %v1097 = vadd.f32 %v1092, %v1094
      %v1098 = vld [vmem:[%s881] sm:$0xff]
      %v1099 = vld [vmem:[%s881 + $0x8] sm:$0xff]
      %v1100 = vld [vmem:[%s881 + $0x10] sm:$0xff]
      %v1101 = vld [vmem:[%s881 + $0x18] sm:$0xff]
      %v1102 = vld [vmem:[%s885] sm:$0x1]
      %v1104 = vperm.slane %v1102, 0
      %v1107 = vsel %vm997, %v1096, 0
      %v1110 = vsel %vm997, %v1097, 0
      %1112 = vmatpush.msra.mxu0 0.0
      %1113 = vmatpush.msra.mxu0 0.0
      %1114 = vmatpush.msra.mxu0 0.0
      %1115 = vmatpush.msra.mxu0 0.0
      %1116 = vmatpush.msra.mxu0 0.0
      %1117 = vmatpush.msra.mxu0 0.0
      %1118 = vmatpush.msra.mxu0 0.0
      %1119 = vmatpush.msra.mxu0 0.0
      %1120 = vmatpush.msra.mxu0 0.0
      %1121 = vmatpush.msra.mxu0 0.0
      %1122 = vmatpush.msra.mxu0 0.0
      %1123 = vmatpush.msra.mxu0 0.0
      %1124 = vmatpush.msra.mxu0 %v1101
      %1125 = vmatpush.msra.mxu0 %v1100
      %1126 = vmatpush.msra.mxu0 %v1099
      %1127 = vmatpush.msra.mxu0 %v1098
      %1128 = vmatmul.f32.gmra.mxu0 %v1107
      %v1129 = vpop.f32.mrf.mxu0
      %v1130 = vadd.f32 %v1104, %v1129
      %1131 = vmatmul.f32.gmra.mxu0 %v1110
      %v1132 = vpop.f32.mrf.mxu0
      %v1133 = vadd.f32 %v1104, %v1132
      %1134 = vdwg.mxu0
      %v1135 = vld [vmem:[%s890] sm:$0xff]
      %v1136 = vld [vmem:[%s890 + $0x8] sm:$0xff]
      %v1137 = vld [vmem:[%s890 + $0x10] sm:$0xff]
      %v1138 = vld [vmem:[%s890 + $0x18] sm:$0xff]
      %1141 = vrot.lane.b32.xlu0 %v1130, 96
      %v1142 = vpop.permute.xlu0 %1141
      %1143 = vrot.lane.b32.xlu0 %v1133, 96
      %v1144 = vpop.permute.xlu0 %1143
      %vm1145 = vcmask 64512
      %v1146 = vsel %vm1145, %v1130, 0
      %v1148 = vsel %vm1145, %v1133, 0
      %v1150 = vsel %vm1145, %v1142, 0
      %v1152 = vsel %vm1145, %v1144, 0
      %1154 = vmatpush.xpose.msra.mxu0 0.0
      %1155 = vmatpush.xpose.msra.mxu0 0.0
      %1156 = vmatpush.xpose.msra.mxu0 0.0
      %1157 = vmatpush.xpose.msra.mxu0 0.0
      %1158 = vmatpush.xpose.msra.mxu0 0.0
      %1159 = vmatpush.xpose.msra.mxu0 0.0
      %1160 = vmatpush.xpose.msra.mxu0 0.0
      %1161 = vmatpush.xpose.msra.mxu0 0.0
      %1162 = vmatpush.xpose.msra.mxu0 0.0
      %1163 = vmatpush.xpose.msra.mxu0 0.0
      %1164 = vmatpush.xpose.msra.mxu0 0.0
      %1165 = vmatpush.xpose.msra.mxu0 0.0
      %1166 = vmatpush.xpose.msra.mxu0 0.0
      %1167 = vmatpush.xpose.msra.mxu0 0.0
      %1168 = vmatpush.xpose.msra.mxu0 %v1152
      %1169 = vmatpush.xpose.msra.mxu0 %v1150
      %1170 = vmatmul.f32.gmra.mxu0 %v1146
      %v1171 = vpop.f32.mrf.mxu0
      %v1172 = vadd.f32 0.0, %v1171
      %1173 = vmatmul.f32.gmra.mxu0 %v1148
      %v1174 = vpop.f32.mrf.mxu0
      %v1175 = vadd.f32 0.0, %v1174
      %1176 = vdwg.mxu0
      %v1177 = vmul.f32 %v1172, 0.35355338
      %v1178 = vmul.f32 %v1175, 0.35355338
      %vm1179 = vcmp.eq.f32.partialorder %v993, 0.0
      %vm1180 = vcmp.eq.f32.partialorder %v994, 0.0
      %v1181 = vsel %vm1179, -1e+09, %v1177
      %v1182 = vsel %vm1180, -1e+09, %v1178
      %vm1183 = vcmask 130048
      %v1184 = vsel %vm1183, %v1181, -inf
      %1185 = vmax.xlane.f32.xlu0 %v1184
      %v1186 = vpop.xlane.xlu0 %1185
      %v1187 = vsel %vm1183, %v1182, -inf
      %1188 = vmax.xlane.f32.xlu0 %v1187
      %v1189 = vpop.xlane.xlu0 %1188
      %v1190 = vsub.f32 %v1181, %v1186
      %v1191 = vsub.f32 %v1182, %v1189
      %v1192 = vmul.f32 %v1190, 1.442695
      %v1193 = vpow.pop %v1192
      %v1194 = vmul.f32 %v1191, 1.442695
      %v1195 = vpow.pop %v1194
      %v1196 = vsel %vm1183, %v1193, 0.0
      %1197 = vadd.xlane.f32.xlu0 %v1196
      %v1198 = vpop.xlane.xlu0 %1197
      %v1199 = vsel %vm1183, %v1195, 0.0
      %1200 = vadd.xlane.f32.xlu0 %v1199
      %v1201 = vpop.xlane.xlu0 %1200
      %v1202 = vrcp.pop %v1198
      %v1203 = vmul.f32 %v1198, %v1202
      %v1204 = vsub.f32 1.0, %v1203
      %v1205 = vmul.f32 %v1202, %v1204
      %v1206 = vadd.f32 %v1202, %v1205
      %vm1207 = vweird.f32 %v1198
      %vm1208 = vweird.f32 %v1202
      %vm1209 = vmor %vm1207, %vm1208
      %v1210 = vsel %vm1209, %v1202, %v1206
      %v1211 = vand.u32 2147483647, %v1198
      %vm1212 = vcmp.eq.f32.partialorder %v1211, 8.507059e+37
      %v1213 = vand.u32 %v1198, 2147483648
      %v1214 = vor.u32 1.1754944e-38, %v1213
      %v1215 = vsel %vm1212, %v1214, %v1210
      %v1216 = vrcp.pop %v1201
      %v1217 = vmul.f32 %v1201, %v1216
      %v1218 = vsub.f32 1.0, %v1217
      %v1219 = vmul.f32 %v1216, %v1218
      %v1220 = vadd.f32 %v1216, %v1219
      %vm1221 = vweird.f32 %v1201
      %vm1222 = vweird.f32 %v1216
      %vm1223 = vmor %vm1221, %vm1222
      %v1224 = vsel %vm1223, %v1216, %v1220
      %v1225 = vand.u32 2147483647, %v1201
      %vm1226 = vcmp.eq.f32.partialorder %v1225, 8.507059e+37
      %v1227 = vand.u32 %v1201, 2147483648
      %v1228 = vor.u32 1.1754944e-38, %v1227
      %v1229 = vsel %vm1226, %v1228, %v1224
      %v1230 = vmul.f32 %v1193, %v1215
      %v1231 = vmul.f32 %v1195, %v1229
      %1232 = vrot.lane.b32.xlu0 %v1130, 64
      %v1233 = vpop.permute.xlu0 %1232
      %1234 = vrot.lane.b32.xlu0 %v1133, 64
      %v1235 = vpop.permute.xlu0 %1234
      %v1239 = vsel %vm1183, %v1230, 0
      %v1242 = vsel %vm1183, %v1231, 0
      %1244 = vmatpush.msra.mxu0 0.0
      %1245 = vmatpush.msra.mxu0 0.0
      %1246 = vmatpush.msra.mxu0 0.0
      %1247 = vmatpush.msra.mxu0 0.0
      %1248 = vmatpush.msra.mxu0 0.0
      %1249 = vmatpush.msra.mxu0 0.0
      %1250 = vmatpush.msra.mxu0 0.0
      %1251 = vmatpush.msra.mxu0 0.0
      %1252 = vmatpush.msra.mxu0 0.0
      %1253 = vmatpush.msra.mxu0 0.0
      %1254 = vmatpush.msra.mxu0 0.0
      %1255 = vmatpush.msra.mxu0 0.0
      %1256 = vmatpush.msra.mxu0 0.0
      %1257 = vmatpush.msra.mxu0 0.0
      %1258 = vmatpush.msra.mxu0 %v1235
      %1259 = vmatpush.msra.mxu0 %v1233
      %1260 = vmatmul.f32.gmra.mxu0 %v1239
      %v1261 = vpop.f32.mrf.mxu0
      %v1262 = vadd.f32 0.0, %v1261
      %1263 = vmatmul.f32.gmra.mxu0 %v1242
      %v1264 = vpop.f32.mrf.mxu0
      %v1265 = vadd.f32 0.0, %v1264
      %1266 = vdwg.mxu0
      %1267 = vrot.lane.b32.xlu0 %v1130, 120
      %v1268 = vpop.permute.xlu0 %1267
      %1269 = vrot.lane.b32.xlu0 %v1133, 120
      %v1270 = vpop.permute.xlu0 %1269
      %1271 = vrot.lane.b32.xlu0 %v1130, 88
      %v1272 = vpop.permute.xlu0 %1271
      %1273 = vrot.lane.b32.xlu0 %v1133, 88
      %v1274 = vpop.permute.xlu0 %1273
      %v1275 = vsel %vm1145, %v1268, 0
      %v1277 = vsel %vm1145, %v1270, 0
      %v1279 = vsel %vm1145, %v1272, 0
      %v1281 = vsel %vm1145, %v1274, 0
      %1283 = vmatpush.xpose.msra.mxu0 0.0
      %1284 = vmatpush.xpose.msra.mxu0 0.0
      %1285 = vmatpush.xpose.msra.mxu0 0.0
      %1286 = vmatpush.xpose.msra.mxu0 0.0
      %1287 = vmatpush.xpose.msra.mxu0 0.0
      %1288 = vmatpush.xpose.msra.mxu0 0.0
      %1289 = vmatpush.xpose.msra.mxu0 0.0
      %1290 = vmatpush.xpose.msra.mxu0 0.0
      %1291 = vmatpush.xpose.msra.mxu0 0.0
      %1292 = vmatpush.xpose.msra.mxu0 0.0
      %1293 = vmatpush.xpose.msra.mxu0 0.0
      %1294 = vmatpush.xpose.msra.mxu0 0.0
      %1295 = vmatpush.xpose.msra.mxu0 0.0
      %1296 = vmatpush.xpose.msra.mxu0 0.0
      %1297 = vmatpush.xpose.msra.mxu0 %v1281
      %1298 = vmatpush.xpose.msra.mxu0 %v1279
      %1299 = vmatmul.f32.gmra.mxu0 %v1275
      %v1300 = vpop.f32.mrf.mxu0
      %v1301 = vadd.f32 0.0, %v1300
      %1302 = vmatmul.f32.gmra.mxu0 %v1277
      %v1303 = vpop.f32.mrf.mxu0
      %v1304 = vadd.f32 0.0, %v1303
      %1305 = vdwg.mxu0
      %v1306 = vmul.f32 %v1301, 0.35355338
      %v1307 = vmul.f32 %v1304, 0.35355338
      %v1308 = vsel %vm1179, -1e+09, %v1306
      %v1309 = vsel %vm1180, -1e+09, %v1307
      %v1310 = vsel %vm1183, %v1308, -inf
      %1311 = vmax.xlane.f32.xlu0 %v1310
      %v1312 = vpop.xlane.xlu0 %1311
      %v1313 = vsel %vm1183, %v1309, -inf
      %1314 = vmax.xlane.f32.xlu0 %v1313
      %v1315 = vpop.xlane.xlu0 %1314
      %v1316 = vsub.f32 %v1308, %v1312
      %v1317 = vsub.f32 %v1309, %v1315
      %v1318 = vmul.f32 %v1316, 1.442695
      %v1319 = vpow.pop %v1318
      %v1320 = vmul.f32 %v1317, 1.442695
      %v1321 = vpow.pop %v1320
      %v1322 = vsel %vm1183, %v1319, 0.0
      %1323 = vadd.xlane.f32.xlu0 %v1322
      %v1324 = vpop.xlane.xlu0 %1323
      %v1325 = vsel %vm1183, %v1321, 0.0
      %1326 = vadd.xlane.f32.xlu0 %v1325
      %v1327 = vpop.xlane.xlu0 %1326
      %v1328 = vrcp.pop %v1324
      %v1329 = vmul.f32 %v1324, %v1328
      %v1330 = vsub.f32 1.0, %v1329
      %v1331 = vmul.f32 %v1328, %v1330
      %v1332 = vadd.f32 %v1328, %v1331
      %vm1333 = vweird.f32 %v1324
      %vm1334 = vweird.f32 %v1328
      %vm1335 = vmor %vm1333, %vm1334
      %v1336 = vsel %vm1335, %v1328, %v1332
      %v1337 = vand.u32 2147483647, %v1324
      %vm1338 = vcmp.eq.f32.partialorder %v1337, 8.507059e+37
      %v1339 = vand.u32 %v1324, 2147483648
      %v1340 = vor.u32 1.1754944e-38, %v1339
      %v1341 = vsel %vm1338, %v1340, %v1336
      %v1342 = vrcp.pop %v1327
      %v1343 = vmul.f32 %v1327, %v1342
      %v1344 = vsub.f32 1.0, %v1343
      %v1345 = vmul.f32 %v1342, %v1344
      %v1346 = vadd.f32 %v1342, %v1345
      %vm1347 = vweird.f32 %v1327
      %vm1348 = vweird.f32 %v1342
      %vm1349 = vmor %vm1347, %vm1348
      %v1350 = vsel %vm1349, %v1342, %v1346
      %v1351 = vand.u32 2147483647, %v1327
      %vm1352 = vcmp.eq.f32.partialorder %v1351, 8.507059e+37
      %v1353 = vand.u32 %v1327, 2147483648
      %v1354 = vor.u32 1.1754944e-38, %v1353
      %v1355 = vsel %vm1352, %v1354, %v1350
      %v1356 = vmul.f32 %v1319, %v1341
      %v1357 = vmul.f32 %v1321, %v1355
      %1358 = vrot.lane.b32.xlu0 %v1130, 56
      %v1359 = vpop.permute.xlu0 %1358
      %1360 = vrot.lane.b32.xlu0 %v1133, 56
      %v1361 = vpop.permute.xlu0 %1360
      %v1365 = vsel %vm1183, %v1356, 0
      %v1368 = vsel %vm1183, %v1357, 0
      %1370 = vmatpush.msra.mxu0 0.0
      %1371 = vmatpush.msra.mxu0 0.0
      %1372 = vmatpush.msra.mxu0 0.0
      %1373 = vmatpush.msra.mxu0 0.0
      %1374 = vmatpush.msra.mxu0 0.0
      %1375 = vmatpush.msra.mxu0 0.0
      %1376 = vmatpush.msra.mxu0 0.0
      %1377 = vmatpush.msra.mxu0 0.0
      %1378 = vmatpush.msra.mxu0 0.0
      %1379 = vmatpush.msra.mxu0 0.0
      %1380 = vmatpush.msra.mxu0 0.0
      %1381 = vmatpush.msra.mxu0 0.0
      %1382 = vmatpush.msra.mxu0 0.0
      %1383 = vmatpush.msra.mxu0 0.0
      %1384 = vmatpush.msra.mxu0 %v1361
      %1385 = vmatpush.msra.mxu0 %v1359
      %1386 = vmatmul.f32.gmra.mxu0 %v1365
      %v1387 = vpop.f32.mrf.mxu0
      %v1388 = vadd.f32 0.0, %v1387
      %1389 = vmatmul.f32.gmra.mxu0 %v1368
      %v1390 = vpop.f32.mrf.mxu0
      %v1391 = vadd.f32 0.0, %v1390
      %1392 = vdwg.mxu0
      %v1394 = vsel %vm1145, %v1388, 0
      %v1397 = vsel %vm1145, %v1391, 0
      %1399 = vmatpush.msra.mxu0 0.0
      %1400 = vmatpush.msra.mxu0 0.0
      %1401 = vmatpush.msra.mxu0 0.0
      %1402 = vmatpush.msra.mxu0 0.0
      %1403 = vmatpush.msra.mxu0 0.0
      %1404 = vmatpush.msra.mxu0 0.0
      %1405 = vmatpush.msra.mxu0 0.0
      %1406 = vmatpush.msra.mxu0 0.0
      %1407 = vmatpush.msra.mxu0 0.0
      %1408 = vmatpush.msra.mxu0 0.0
      %1409 = vmatpush.msra.mxu0 0.0
      %1410 = vmatpush.msra.mxu0 0.0
      %1411 = vmatpush.msra.mxu0 0.0
      %1412 = vmatpush.msra.mxu0 0.0
      %1413 = vmatpush.msra.mxu0 0.0
      %1414 = vmatpush.msra.mxu0 %v1136
      %1415 = vmatmul.f32.gmra.mxu0 %v1394
      %v1416 = vpop.f32.mrf.mxu0
      %v1417 = vadd.f32 0.0, %v1416
      %1418 = vmatmul.f32.gmra.mxu0 %v1397
      %v1419 = vpop.f32.mrf.mxu0
      %v1420 = vadd.f32 0.0, %v1419
      %1421 = vdwg.mxu0
      %v1423 = vsel %vm1145, %v1262, 0
      %v1426 = vsel %vm1145, %v1265, 0
      %1428 = vmatpush.msra.mxu0 0.0
      %1429 = vmatpush.msra.mxu0 0.0
      %1430 = vmatpush.msra.mxu0 0.0
      %1431 = vmatpush.msra.mxu0 0.0
      %1432 = vmatpush.msra.mxu0 0.0
      %1433 = vmatpush.msra.mxu0 0.0
      %1434 = vmatpush.msra.mxu0 0.0
      %1435 = vmatpush.msra.mxu0 0.0
      %1436 = vmatpush.msra.mxu0 0.0
      %1437 = vmatpush.msra.mxu0 0.0
      %1438 = vmatpush.msra.mxu0 0.0
      %1439 = vmatpush.msra.mxu0 0.0
      %1440 = vmatpush.msra.mxu0 0.0
      %1441 = vmatpush.msra.mxu0 0.0
      %1442 = vmatpush.msra.mxu0 0.0
      %1443 = vmatpush.msra.mxu0 %v1135
      %1444 = vmatmul.f32.gmra.mxu0 %v1423
      %v1445 = vpop.f32.mrf.mxu0
      %v1446 = vadd.f32 %v1417, %v1445
      %1447 = vmatmul.f32.gmra.mxu0 %v1426
      %v1448 = vpop.f32.mrf.mxu0
      %v1449 = vadd.f32 %v1420, %v1448
      %1450 = vdwg.mxu0
      %1451 = vrot.lane.b32.xlu0 %v1130, 112
      %v1452 = vpop.permute.xlu0 %1451
      %1453 = vrot.lane.b32.xlu0 %v1133, 112
      %v1454 = vpop.permute.xlu0 %1453
      %1455 = vrot.lane.b32.xlu0 %v1130, 80
      %v1456 = vpop.permute.xlu0 %1455
      %1457 = vrot.lane.b32.xlu0 %v1133, 80
      %v1458 = vpop.permute.xlu0 %1457
      %v1459 = vsel %vm1145, %v1452, 0
      %v1461 = vsel %vm1145, %v1454, 0
      %v1463 = vsel %vm1145, %v1456, 0
      %v1465 = vsel %vm1145, %v1458, 0
      %1467 = vmatpush.xpose.msra.mxu0 0.0
      %1468 = vmatpush.xpose.msra.mxu0 0.0
      %1469 = vmatpush.xpose.msra.mxu0 0.0
      %1470 = vmatpush.xpose.msra.mxu0 0.0
      %1471 = vmatpush.xpose.msra.mxu0 0.0
      %1472 = vmatpush.xpose.msra.mxu0 0.0
      %1473 = vmatpush.xpose.msra.mxu0 0.0
      %1474 = vmatpush.xpose.msra.mxu0 0.0
      %1475 = vmatpush.xpose.msra.mxu0 0.0
      %1476 = vmatpush.xpose.msra.mxu0 0.0
      %1477 = vmatpush.xpose.msra.mxu0 0.0
      %1478 = vmatpush.xpose.msra.mxu0 0.0
      %1479 = vmatpush.xpose.msra.mxu0 0.0
      %1480 = vmatpush.xpose.msra.mxu0 0.0
      %1481 = vmatpush.xpose.msra.mxu0 %v1465
      %1482 = vmatpush.xpose.msra.mxu0 %v1463
      %1483 = vmatmul.f32.gmra.mxu0 %v1459
      %v1484 = vpop.f32.mrf.mxu0
      %v1485 = vadd.f32 0.0, %v1484
      %1486 = vmatmul.f32.gmra.mxu0 %v1461
      %v1487 = vpop.f32.mrf.mxu0
      %v1488 = vadd.f32 0.0, %v1487
      %1489 = vdwg.mxu0
      %v1490 = vmul.f32 %v1485, 0.35355338
      %v1491 = vmul.f32 %v1488, 0.35355338
      %v1492 = vsel %vm1179, -1e+09, %v1490
      %v1493 = vsel %vm1180, -1e+09, %v1491
      %v1494 = vsel %vm1183, %v1492, -inf
      %1495 = vmax.xlane.f32.xlu0 %v1494
      %v1496 = vpop.xlane.xlu0 %1495
      %v1497 = vsel %vm1183, %v1493, -inf
      %1498 = vmax.xlane.f32.xlu0 %v1497
      %v1499 = vpop.xlane.xlu0 %1498
      %v1500 = vsub.f32 %v1492, %v1496
      %v1501 = vsub.f32 %v1493, %v1499
      %v1502 = vmul.f32 %v1500, 1.442695
      %v1503 = vpow.pop %v1502
      %v1504 = vmul.f32 %v1501, 1.442695
      %v1505 = vpow.pop %v1504
      %v1506 = vsel %vm1183, %v1503, 0.0
      %1507 = vadd.xlane.f32.xlu0 %v1506
      %v1508 = vpop.xlane.xlu0 %1507
      %v1509 = vsel %vm1183, %v1505, 0.0
      %1510 = vadd.xlane.f32.xlu0 %v1509
      %v1511 = vpop.xlane.xlu0 %1510
      %v1512 = vrcp.pop %v1508
      %v1513 = vmul.f32 %v1508, %v1512
      %v1514 = vsub.f32 1.0, %v1513
      %v1515 = vmul.f32 %v1512, %v1514
      %v1516 = vadd.f32 %v1512, %v1515
      %vm1517 = vweird.f32 %v1508
      %vm1518 = vweird.f32 %v1512
      %vm1519 = vmor %vm1517, %vm1518
      %v1520 = vsel %vm1519, %v1512, %v1516
      %v1521 = vand.u32 2147483647, %v1508
      %vm1522 = vcmp.eq.f32.partialorder %v1521, 8.507059e+37
      %v1523 = vand.u32 %v1508, 2147483648
      %v1524 = vor.u32 1.1754944e-38, %v1523
      %v1525 = vsel %vm1522, %v1524, %v1520
      %v1526 = vrcp.pop %v1511
      %v1527 = vmul.f32 %v1511, %v1526
      %v1528 = vsub.f32 1.0, %v1527
      %v1529 = vmul.f32 %v1526, %v1528
      %v1530 = vadd.f32 %v1526, %v1529
      %vm1531 = vweird.f32 %v1511
      %vm1532 = vweird.f32 %v1526
      %vm1533 = vmor %vm1531, %vm1532
      %v1534 = vsel %vm1533, %v1526, %v1530
      %v1535 = vand.u32 2147483647, %v1511
      %vm1536 = vcmp.eq.f32.partialorder %v1535, 8.507059e+37
      %v1537 = vand.u32 %v1511, 2147483648
      %v1538 = vor.u32 1.1754944e-38, %v1537
      %v1539 = vsel %vm1536, %v1538, %v1534
      %v1540 = vmul.f32 %v1503, %v1525
      %v1541 = vmul.f32 %v1505, %v1539
      %1542 = vrot.lane.b32.xlu0 %v1130, 48
      %v1543 = vpop.permute.xlu0 %1542
      %1544 = vrot.lane.b32.xlu0 %v1133, 48
      %v1545 = vpop.permute.xlu0 %1544
      %v1549 = vsel %vm1183, %v1540, 0
      %v1552 = vsel %vm1183, %v1541, 0
      %1554 = vmatpush.msra.mxu0 0.0
      %1555 = vmatpush.msra.mxu0 0.0
      %1556 = vmatpush.msra.mxu0 0.0
      %1557 = vmatpush.msra.mxu0 0.0
      %1558 = vmatpush.msra.mxu0 0.0
      %1559 = vmatpush.msra.mxu0 0.0
      %1560 = vmatpush.msra.mxu0 0.0
      %1561 = vmatpush.msra.mxu0 0.0
      %1562 = vmatpush.msra.mxu0 0.0
      %1563 = vmatpush.msra.mxu0 0.0
      %1564 = vmatpush.msra.mxu0 0.0
      %1565 = vmatpush.msra.mxu0 0.0
      %1566 = vmatpush.msra.mxu0 0.0
      %1567 = vmatpush.msra.mxu0 0.0
      %1568 = vmatpush.msra.mxu0 %v1545
      %1569 = vmatpush.msra.mxu0 %v1543
      %1570 = vmatmul.f32.gmra.mxu0 %v1549
      %v1571 = vpop.f32.mrf.mxu0
      %v1572 = vadd.f32 0.0, %v1571
      %1573 = vmatmul.f32.gmra.mxu0 %v1552
      %v1574 = vpop.f32.mrf.mxu0
      %v1575 = vadd.f32 0.0, %v1574
      %1576 = vdwg.mxu0
      %v1578 = vsel %vm1145, %v1572, 0
      %v1581 = vsel %vm1145, %v1575, 0
      %1583 = vmatpush.msra.mxu0 0.0
      %1584 = vmatpush.msra.mxu0 0.0
      %1585 = vmatpush.msra.mxu0 0.0
      %1586 = vmatpush.msra.mxu0 0.0
      %1587 = vmatpush.msra.mxu0 0.0
      %1588 = vmatpush.msra.mxu0 0.0
      %1589 = vmatpush.msra.mxu0 0.0
      %1590 = vmatpush.msra.mxu0 0.0
      %1591 = vmatpush.msra.mxu0 0.0
      %1592 = vmatpush.msra.mxu0 0.0
      %1593 = vmatpush.msra.mxu0 0.0
      %1594 = vmatpush.msra.mxu0 0.0
      %1595 = vmatpush.msra.mxu0 0.0
      %1596 = vmatpush.msra.mxu0 0.0
      %1597 = vmatpush.msra.mxu0 0.0
      %1598 = vmatpush.msra.mxu0 %v1137
      %1599 = vmatmul.f32.gmra.mxu0 %v1578
      %v1600 = vpop.f32.mrf.mxu0
      %v1601 = vadd.f32 0.0, %v1600
      %1602 = vmatmul.f32.gmra.mxu0 %v1581
      %v1603 = vpop.f32.mrf.mxu0
      %v1604 = vadd.f32 0.0, %v1603
      %1605 = vdwg.mxu0
      %v1606 = vadd.f32 %v1446, %v1601
      %v1607 = vadd.f32 %v1449, %v1604
      %1608 = vrot.lane.b32.xlu0 %v1130, 104
      %v1609 = vpop.permute.xlu0 %1608
      %1610 = vrot.lane.b32.xlu0 %v1133, 104
      %v1611 = vpop.permute.xlu0 %1610
      %1612 = vrot.lane.b32.xlu0 %v1130, 72
      %v1613 = vpop.permute.xlu0 %1612
      %1614 = vrot.lane.b32.xlu0 %v1133, 72
      %v1615 = vpop.permute.xlu0 %1614
      %v1616 = vsel %vm1145, %v1609, 0
      %v1618 = vsel %vm1145, %v1611, 0
      %v1620 = vsel %vm1145, %v1613, 0
      %v1622 = vsel %vm1145, %v1615, 0
      %1624 = vmatpush.xpose.msra.mxu0 0.0
      %1625 = vmatpush.xpose.msra.mxu0 0.0
      %1626 = vmatpush.xpose.msra.mxu0 0.0
      %1627 = vmatpush.xpose.msra.mxu0 0.0
      %1628 = vmatpush.xpose.msra.mxu0 0.0
      %1629 = vmatpush.xpose.msra.mxu0 0.0
      %1630 = vmatpush.xpose.msra.mxu0 0.0
      %1631 = vmatpush.xpose.msra.mxu0 0.0
      %1632 = vmatpush.xpose.msra.mxu0 0.0
      %1633 = vmatpush.xpose.msra.mxu0 0.0
      %1634 = vmatpush.xpose.msra.mxu0 0.0
      %1635 = vmatpush.xpose.msra.mxu0 0.0
      %1636 = vmatpush.xpose.msra.mxu0 0.0
      %1637 = vmatpush.xpose.msra.mxu0 0.0
      %1638 = vmatpush.xpose.msra.mxu0 %v1622
      %1639 = vmatpush.xpose.msra.mxu0 %v1620
      %1640 = vmatmul.f32.gmra.mxu0 %v1616
      %v1641 = vpop.f32.mrf.mxu0
      %v1642 = vadd.f32 0.0, %v1641
      %1643 = vmatmul.f32.gmra.mxu0 %v1618
      %v1644 = vpop.f32.mrf.mxu0
      %v1645 = vadd.f32 0.0, %v1644
      %1646 = vdwg.mxu0
      %v1647 = vmul.f32 %v1642, 0.35355338
      %v1648 = vmul.f32 %v1645, 0.35355338
      %v1649 = vsel %vm1179, -1e+09, %v1647
      %v1650 = vsel %vm1180, -1e+09, %v1648
      %v1651 = vsel %vm1183, %v1649, -inf
      %1652 = vmax.xlane.f32.xlu0 %v1651
      %v1653 = vpop.xlane.xlu0 %1652
      %v1654 = vsel %vm1183, %v1650, -inf
      %1655 = vmax.xlane.f32.xlu0 %v1654
      %v1656 = vpop.xlane.xlu0 %1655
      %v1657 = vsub.f32 %v1649, %v1653
      %v1658 = vsub.f32 %v1650, %v1656
      %v1659 = vmul.f32 %v1657, 1.442695
      %v1660 = vpow.pop %v1659
      %v1661 = vmul.f32 %v1658, 1.442695
      %v1662 = vpow.pop %v1661
      %v1663 = vsel %vm1183, %v1660, 0.0
      %1664 = vadd.xlane.f32.xlu0 %v1663
      %v1665 = vpop.xlane.xlu0 %1664
      %v1666 = vsel %vm1183, %v1662, 0.0
      %1667 = vadd.xlane.f32.xlu0 %v1666
      %v1668 = vpop.xlane.xlu0 %1667
      %v1669 = vrcp.pop %v1665
      %v1670 = vmul.f32 %v1665, %v1669
      %v1671 = vsub.f32 1.0, %v1670
      %v1672 = vmul.f32 %v1669, %v1671
      %v1673 = vadd.f32 %v1669, %v1672
      %vm1674 = vweird.f32 %v1665
      %vm1675 = vweird.f32 %v1669
      %vm1676 = vmor %vm1674, %vm1675
      %v1677 = vsel %vm1676, %v1669, %v1673
      %v1678 = vand.u32 2147483647, %v1665
      %vm1679 = vcmp.eq.f32.partialorder %v1678, 8.507059e+37
      %v1680 = vand.u32 %v1665, 2147483648
      %v1681 = vor.u32 1.1754944e-38, %v1680
      %v1682 = vsel %vm1679, %v1681, %v1677
      %v1683 = vrcp.pop %v1668
      %v1684 = vmul.f32 %v1668, %v1683
      %v1685 = vsub.f32 1.0, %v1684
      %v1686 = vmul.f32 %v1683, %v1685
      %v1687 = vadd.f32 %v1683, %v1686
      %vm1688 = vweird.f32 %v1668
      %vm1689 = vweird.f32 %v1683
      %vm1690 = vmor %vm1688, %vm1689
      %v1691 = vsel %vm1690, %v1683, %v1687
      %v1692 = vand.u32 2147483647, %v1668
      %vm1693 = vcmp.eq.f32.partialorder %v1692, 8.507059e+37
      %v1694 = vand.u32 %v1668, 2147483648
      %v1695 = vor.u32 1.1754944e-38, %v1694
      %v1696 = vsel %vm1693, %v1695, %v1691
      %v1697 = vmul.f32 %v1660, %v1682
      %v1698 = vmul.f32 %v1662, %v1696
      %1699 = vrot.lane.b32.xlu0 %v1130, 40
      %v1700 = vpop.permute.xlu0 %1699
      %1701 = vrot.lane.b32.xlu0 %v1133, 40
      %v1702 = vpop.permute.xlu0 %1701
      %v1706 = vsel %vm1183, %v1697, 0
      %v1709 = vsel %vm1183, %v1698, 0
      %1711 = vmatpush.msra.mxu0 0.0
      %1712 = vmatpush.msra.mxu0 0.0
      %1713 = vmatpush.msra.mxu0 0.0
      %1714 = vmatpush.msra.mxu0 0.0
      %1715 = vmatpush.msra.mxu0 0.0
      %1716 = vmatpush.msra.mxu0 0.0
      %1717 = vmatpush.msra.mxu0 0.0
      %1718 = vmatpush.msra.mxu0 0.0
      %1719 = vmatpush.msra.mxu0 0.0
      %1720 = vmatpush.msra.mxu0 0.0
      %1721 = vmatpush.msra.mxu0 0.0
      %1722 = vmatpush.msra.mxu0 0.0
      %1723 = vmatpush.msra.mxu0 0.0
      %1724 = vmatpush.msra.mxu0 0.0
      %1725 = vmatpush.msra.mxu0 %v1702
      %1726 = vmatpush.msra.mxu0 %v1700
      %1727 = vmatmul.f32.gmra.mxu0 %v1706
      %v1728 = vpop.f32.mrf.mxu0
      %v1729 = vadd.f32 0.0, %v1728
      %1730 = vmatmul.f32.gmra.mxu0 %v1709
      %v1731 = vpop.f32.mrf.mxu0
      %v1732 = vadd.f32 0.0, %v1731
      %1733 = vdwg.mxu0
      %v1735 = vsel %vm1145, %v1729, 0
      %v1738 = vsel %vm1145, %v1732, 0
      %1740 = vmatpush.msra.mxu0 0.0
      %1741 = vmatpush.msra.mxu0 0.0
      %1742 = vmatpush.msra.mxu0 0.0
      %1743 = vmatpush.msra.mxu0 0.0
      %1744 = vmatpush.msra.mxu0 0.0
      %1745 = vmatpush.msra.mxu0 0.0
      %1746 = vmatpush.msra.mxu0 0.0
      %1747 = vmatpush.msra.mxu0 0.0
      %1748 = vmatpush.msra.mxu0 0.0
      %1749 = vmatpush.msra.mxu0 0.0
      %1750 = vmatpush.msra.mxu0 0.0
      %1751 = vmatpush.msra.mxu0 0.0
      %1752 = vmatpush.msra.mxu0 0.0
      %1753 = vmatpush.msra.mxu0 0.0
      %1754 = vmatpush.msra.mxu0 0.0
      %1755 = vmatpush.msra.mxu0 %v1138
      %1756 = vmatmul.f32.gmra.mxu0 %v1735
      %v1757 = vpop.f32.mrf.mxu0
      %v1758 = vadd.f32 0.0, %v1757
      %1759 = vmatmul.f32.gmra.mxu0 %v1738
      %v1760 = vpop.f32.mrf.mxu0
      %v1761 = vadd.f32 0.0, %v1760
      %1762 = vdwg.mxu0
      %v1763 = vadd.f32 %v1606, %v1758
      %v1764 = vadd.f32 %v1607, %v1761
      %v1765 = vadd.f32 %v991, %v1763
      %v1766 = vadd.f32 %v992, %v1764
      %v1767 = vld [vmem:[%s894] sm:$0x1]
      %v1769 = vperm.slane %v1767, 0
      %v1771 = vadd.f32 %v1765, %v1769
      %v1772 = vadd.f32 %v1766, %v1769
      %v1773 = vld [vmem:[%s924] sm:$0x1]
      %v1774 = vld [vmem:[%s928] sm:$0x1]
      %v1775 = vsel %vm997, %v1771, 0.0
      %1776 = vadd.xlane.f32.xlu0 %v1775
      %v1777 = vpop.xlane.xlu0 %1776
      %v1778 = vsel %vm997, %v1772, 0.0
      %1779 = vadd.xlane.f32.xlu0 %v1778
      %v1780 = vpop.xlane.xlu0 %1779
      %v1781 = vmul.f32 %v1777, %v1010
      %v1782 = vmul.f32 %v1780, %v1010
      %v1783 = vsub.f32 %v1771, %v1781
      %v1784 = vsub.f32 %v1772, %v1782
      %v1785 = vmul.f32 %v1783, %v1783
      %v1786 = vmul.f32 %v1784, %v1784
      %v1787 = vsel %vm997, %v1785, 0.0
      %1788 = vadd.xlane.f32.xlu0 %v1787
      %v1789 = vpop.xlane.xlu0 %1788
      %v1790 = vsel %vm997, %v1786, 0.0
      %1791 = vadd.xlane.f32.xlu0 %v1790
      %v1792 = vpop.xlane.xlu0 %1791
      %v1793 = vmul.f32 %v1789, %v1029
      %v1794 = vmul.f32 %v1792, %v1029
      %v1796 = vperm.slane %v1773, 0
      %v1798 = vmul.f32 %v1796, %v1783
      %v1799 = vmul.f32 %v1796, %v1784
      %v1800 = vrsqrt.pop %v1793
      %v1801 = vmul.f32 %v1800, %v1793
      %v1802 = vmul.f32 %v1801, %v1800
      %v1803 = vmul.f32 0.5, %v1802
      %v1804 = vsub.f32 1.5, %v1803
      %v1805 = vmul.f32 %v1800, %v1804
      %v1806 = vmul.f32 %v1793, %v1805
      %vm1807 = vcmp.eq.f32.partialorder %v1793, inf
      %v1808 = vsel %vm1807, %v1793, %v1806
      %vm1809 = vcmp.eq.f32.partialorder %v1793, 0.0
      %v1810 = vand.u32 %v1793, 2147483648
      %v1811 = vsel %vm1809, %v1810, %v1808
      %v1812 = vrsqrt.pop %v1794
      %v1813 = vmul.f32 %v1812, %v1794
      %v1814 = vmul.f32 %v1813, %v1812
      %v1815 = vmul.f32 0.5, %v1814
      %v1816 = vsub.f32 1.5, %v1815
      %v1817 = vmul.f32 %v1812, %v1816
      %v1818 = vmul.f32 %v1794, %v1817
      %vm1819 = vcmp.eq.f32.partialorder %v1794, inf
      %v1820 = vsel %vm1819, %v1794, %v1818
      %vm1821 = vcmp.eq.f32.partialorder %v1794, 0.0
      %v1822 = vand.u32 %v1794, 2147483648
      %v1823 = vsel %vm1821, %v1822, %v1820
      %v1824 = vadd.f32 %v1811, 1e-06
      %v1825 = vadd.f32 %v1823, 1e-06
      %v1826 = vrcp.pop %v1824
      %v1827 = vmul.f32 %v1824, %v1826
      %v1828 = vsub.f32 1.0, %v1827
      %v1829 = vmul.f32 %v1826, %v1828
      %v1830 = vadd.f32 %v1826, %v1829
      %vm1831 = vweird.f32 %v1824
      %vm1832 = vweird.f32 %v1826
      %vm1833 = vmor %vm1831, %vm1832
      %v1834 = vsel %vm1833, %v1826, %v1830
      %v1835 = vand.u32 2147483647, %v1824
      %vm1836 = vcmp.eq.f32.partialorder %v1835, 8.507059e+37
      %v1837 = vand.u32 %v1824, 2147483648
      %v1838 = vor.u32 1.1754944e-38, %v1837
      %v1839 = vsel %vm1836, %v1838, %v1834
      %v1840 = vmul.f32 %v1798, %v1839
      %v1841 = vrcp.pop %v1825
      %v1842 = vmul.f32 %v1825, %v1841
      %v1843 = vsub.f32 1.0, %v1842
      %v1844 = vmul.f32 %v1841, %v1843
      %v1845 = vadd.f32 %v1841, %v1844
      %vm1846 = vweird.f32 %v1825
      %vm1847 = vweird.f32 %v1841
      %vm1848 = vmor %vm1846, %vm1847
      %v1849 = vsel %vm1848, %v1841, %v1845
      %v1850 = vand.u32 2147483647, %v1825
      %vm1851 = vcmp.eq.f32.partialorder %v1850, 8.507059e+37
      %v1852 = vand.u32 %v1825, 2147483648
      %v1853 = vor.u32 1.1754944e-38, %v1852
      %v1854 = vsel %vm1851, %v1853, %v1849
      %v1855 = vmul.f32 %v1799, %v1854
      %v1857 = vperm.slane %v1774, 0
      %v1859 = vadd.f32 %v1840, %v1857
      %v1860 = vadd.f32 %v1855, %v1857
      %v1861 = vld [vmem:[%s899] sm:$0xff]
      %v1862 = vld [vmem:[%s899 + $0x8] sm:$0xff]
      %v1863 = vld [vmem:[%s899 + $0x10] sm:$0xff]
      %v1864 = vld [vmem:[%s899 + $0x18] sm:$0xff]
      %v1865 = vld [vmem:[%s903] sm:$0x1]
      %v1867 = vperm.slane %v1865, 0
      %v1870 = vsel %vm997, %v1859, 0
      %v1873 = vsel %vm997, %v1860, 0
      %1875 = vmatpush.msra.mxu0 0.0
      %1876 = vmatpush.msra.mxu0 0.0
      %1877 = vmatpush.msra.mxu0 0.0
      %1878 = vmatpush.msra.mxu0 0.0
      %1879 = vmatpush.msra.mxu0 0.0
      %1880 = vmatpush.msra.mxu0 0.0
      %1881 = vmatpush.msra.mxu0 0.0
      %1882 = vmatpush.msra.mxu0 0.0
      %1883 = vmatpush.msra.mxu0 0.0
      %1884 = vmatpush.msra.mxu0 0.0
      %1885 = vmatpush.msra.mxu0 0.0
      %1886 = vmatpush.msra.mxu0 0.0
      %1887 = vmatpush.msra.mxu0 %v1864
      %1888 = vmatpush.msra.mxu0 %v1863
      %1889 = vmatpush.msra.mxu0 %v1862
      %1890 = vmatpush.msra.mxu0 %v1861
      %1891 = vmatmul.f32.gmra.mxu0 %v1870
      %v1892 = vpop.f32.mrf.mxu0
      %v1893 = vadd.f32 %v1867, %v1892
      %1894 = vmatmul.f32.gmra.mxu0 %v1873
      %v1895 = vpop.f32.mrf.mxu0
      %v1896 = vadd.f32 %v1867, %v1895
      %1897 = vdwg.mxu0
      %v1898 = vmax.f32 %v1893, 0.0
      %v1899 = vmax.f32 %v1896, 0.0
      %v1900 = vld [vmem:[%s908] sm:$0xff]
      %v1901 = vld [vmem:[%s908 + $0x8] sm:$0xff]
      %v1902 = vld [vmem:[%s908 + $0x10] sm:$0xff]
      %v1903 = vld [vmem:[%s908 + $0x18] sm:$0xff]
      %v1904 = vld [vmem:[%s908 + $0x20] sm:$0xff]
      %v1905 = vld [vmem:[%s908 + $0x28] sm:$0xff]
      %v1906 = vld [vmem:[%s908 + $0x30] sm:$0xff]
      %v1907 = vld [vmem:[%s908 + $0x38] sm:$0xff]
      %vm1908 = vcmask 523264
      %v1910 = vsel %vm1908, %v1898, 0
      %v1913 = vsel %vm1908, %v1899, 0
      %1915 = vmatpush.msra.mxu0 0.0
      %1916 = vmatpush.msra.mxu0 0.0
      %1917 = vmatpush.msra.mxu0 0.0
      %1918 = vmatpush.msra.mxu0 0.0
      %1919 = vmatpush.msra.mxu0 0.0
      %1920 = vmatpush.msra.mxu0 0.0
      %1921 = vmatpush.msra.mxu0 0.0
      %1922 = vmatpush.msra.mxu0 0.0
      %1923 = vmatpush.msra.mxu0 %v1907
      %1924 = vmatpush.msra.mxu0 %v1906
      %1925 = vmatpush.msra.mxu0 %v1905
      %1926 = vmatpush.msra.mxu0 %v1904
      %1927 = vmatpush.msra.mxu0 %v1903
      %1928 = vmatpush.msra.mxu0 %v1902
      %1929 = vmatpush.msra.mxu0 %v1901
      %1930 = vmatpush.msra.mxu0 %v1900
      %1931 = vmatmul.f32.gmra.mxu0 %v1910
      %v1932 = vpop.f32.mrf.mxu0
      %v1933 = vadd.f32 0.0, %v1932
      %1934 = vmatmul.f32.gmra.mxu0 %v1913
      %v1935 = vpop.f32.mrf.mxu0
      %v1936 = vadd.f32 0.0, %v1935
      %1937 = vdwg.mxu0
      %v1938 = vadd.f32 %v1771, %v1933
      %v1939 = vadd.f32 %v1772, %v1936
      %v1940 = vld [vmem:[%s912] sm:$0x1]
      %v1942 = vperm.slane %v1940, 0
      %v1944 = vadd.f32 %v1938, %v1942
      %v1945 = vadd.f32 %v1939, %v1942
      %s1946 = scalar_lea.vmem %s916, 1
      %v1947 = vld [vmem:[%s1946] sm:$0x1]
      %s1948 = scalar_lea.vmem %s920, 1
      %v1949 = vld [vmem:[%s1948] sm:$0x1]
      %v1950 = vsel %vm997, %v1944, 0.0
      %1951 = vadd.xlane.f32.xlu0 %v1950
      %v1952 = vpop.xlane.xlu0 %1951
      %v1953 = vsel %vm997, %v1945, 0.0
      %1954 = vadd.xlane.f32.xlu0 %v1953
      %v1955 = vpop.xlane.xlu0 %1954
      %v1956 = vmul.f32 %v1952, %v1010
      %v1957 = vmul.f32 %v1955, %v1010
      %v1958 = vsub.f32 %v1944, %v1956
      %v1959 = vsub.f32 %v1945, %v1957
      %v1960 = vmul.f32 %v1958, %v1958
      %v1961 = vmul.f32 %v1959, %v1959
      %v1962 = vsel %vm997, %v1960, 0.0
      %1963 = vadd.xlane.f32.xlu0 %v1962
      %v1964 = vpop.xlane.xlu0 %1963
      %v1965 = vsel %vm997, %v1961, 0.0
      %1966 = vadd.xlane.f32.xlu0 %v1965
      %v1967 = vpop.xlane.xlu0 %1966
      %v1968 = vmul.f32 %v1964, %v1029
      %v1969 = vmul.f32 %v1967, %v1029
      %v1971 = vperm.slane %v1947, 0
      %v1973 = vmul.f32 %v1971, %v1958
      %v1974 = vmul.f32 %v1971, %v1959
      %v1975 = vrsqrt.pop %v1968
      %v1976 = vmul.f32 %v1975, %v1968
      %v1977 = vmul.f32 %v1976, %v1975
      %v1978 = vmul.f32 0.5, %v1977
      %v1979 = vsub.f32 1.5, %v1978
      %v1980 = vmul.f32 %v1975, %v1979
      %v1981 = vmul.f32 %v1968, %v1980
      %vm1982 = vcmp.eq.f32.partialorder %v1968, inf
      %v1983 = vsel %vm1982, %v1968, %v1981
      %vm1984 = vcmp.eq.f32.partialorder %v1968, 0.0
      %v1985 = vand.u32 %v1968, 2147483648
      %v1986 = vsel %vm1984, %v1985, %v1983
      %v1987 = vrsqrt.pop %v1969
      %v1988 = vmul.f32 %v1987, %v1969
      %v1989 = vmul.f32 %v1988, %v1987
      %v1990 = vmul.f32 0.5, %v1989
      %v1991 = vsub.f32 1.5, %v1990
      %v1992 = vmul.f32 %v1987, %v1991
      %v1993 = vmul.f32 %v1969, %v1992
      %vm1994 = vcmp.eq.f32.partialorder %v1969, inf
      %v1995 = vsel %vm1994, %v1969, %v1993
      %vm1996 = vcmp.eq.f32.partialorder %v1969, 0.0
      %v1997 = vand.u32 %v1969, 2147483648
      %v1998 = vsel %vm1996, %v1997, %v1995
      %v1999 = vadd.f32 %v1986, 1e-06
      %v2000 = vadd.f32 %v1998, 1e-06
      %v2001 = vrcp.pop %v1999
      %v2002 = vmul.f32 %v1999, %v2001
      %v2003 = vsub.f32 1.0, %v2002
      %v2004 = vmul.f32 %v2001, %v2003
      %v2005 = vadd.f32 %v2001, %v2004
      %vm2006 = vweird.f32 %v1999
      %vm2007 = vweird.f32 %v2001
      %vm2008 = vmor %vm2006, %vm2007
      %v2009 = vsel %vm2008, %v2001, %v2005
      %v2010 = vand.u32 2147483647, %v1999
      %vm2011 = vcmp.eq.f32.partialorder %v2010, 8.507059e+37
      %v2012 = vand.u32 %v1999, 2147483648
      %v2013 = vor.u32 1.1754944e-38, %v2012
      %v2014 = vsel %vm2011, %v2013, %v2009
      %v2015 = vmul.f32 %v1973, %v2014
      %v2016 = vrcp.pop %v2000
      %v2017 = vmul.f32 %v2000, %v2016
      %v2018 = vsub.f32 1.0, %v2017
      %v2019 = vmul.f32 %v2016, %v2018
      %v2020 = vadd.f32 %v2016, %v2019
      %vm2021 = vweird.f32 %v2000
      %vm2022 = vweird.f32 %v2016
      %vm2023 = vmor %vm2021, %vm2022
      %v2024 = vsel %vm2023, %v2016, %v2020
      %v2025 = vand.u32 2147483647, %v2000
      %vm2026 = vcmp.eq.f32.partialorder %v2025, 8.507059e+37
      %v2027 = vand.u32 %v2000, 2147483648
      %v2028 = vor.u32 1.1754944e-38, %v2027
      %v2029 = vsel %vm2026, %v2028, %v2024
      %v2030 = vmul.f32 %v1974, %v2029
      %v2032 = vperm.slane %v1949, 0
      %v2034 = vadd.f32 %v2015, %v2032
      %v2035 = vadd.f32 %v2030, %v2032
      %s2036 = scalar_lea.vmem %s881, 32
      %v2037 = vld [vmem:[%s2036] sm:$0xff]
      %v2038 = vld [vmem:[%s2036 + $0x8] sm:$0xff]
      %v2039 = vld [vmem:[%s2036 + $0x10] sm:$0xff]
      %v2040 = vld [vmem:[%s2036 + $0x18] sm:$0xff]
      %s2041 = scalar_lea.vmem %s885, 1
      %v2042 = vld [vmem:[%s2041] sm:$0x1]
      %v2044 = vperm.slane %v2042, 0
      %v2047 = vsel %vm997, %v2034, 0
      %v2050 = vsel %vm997, %v2035, 0
      %2052 = vmatpush.msra.mxu0 0.0
      %2053 = vmatpush.msra.mxu0 0.0
      %2054 = vmatpush.msra.mxu0 0.0
      %2055 = vmatpush.msra.mxu0 0.0
      %2056 = vmatpush.msra.mxu0 0.0
      %2057 = vmatpush.msra.mxu0 0.0
      %2058 = vmatpush.msra.mxu0 0.0
      %2059 = vmatpush.msra.mxu0 0.0
      %2060 = vmatpush.msra.mxu0 0.0
      %2061 = vmatpush.msra.mxu0 0.0
      %2062 = vmatpush.msra.mxu0 0.0
      %2063 = vmatpush.msra.mxu0 0.0
      %2064 = vmatpush.msra.mxu0 %v2040
      %2065 = vmatpush.msra.mxu0 %v2039
      %2066 = vmatpush.msra.mxu0 %v2038
      %2067 = vmatpush.msra.mxu0 %v2037
      %2068 = vmatmul.f32.gmra.mxu0 %v2047
      %v2069 = vpop.f32.mrf.mxu0
      %v2070 = vadd.f32 %v2044, %v2069
      %2071 = vmatmul.f32.gmra.mxu0 %v2050
      %v2072 = vpop.f32.mrf.mxu0
      %v2073 = vadd.f32 %v2044, %v2072
      %2074 = vdwg.mxu0
      %s2075 = scalar_lea.vmem %s890, 32
      %v2076 = vld [vmem:[%s2075] sm:$0xff]
      %v2077 = vld [vmem:[%s2075 + $0x8] sm:$0xff]
      %v2078 = vld [vmem:[%s2075 + $0x10] sm:$0xff]
      %v2079 = vld [vmem:[%s2075 + $0x18] sm:$0xff]
      %2082 = vrot.lane.b32.xlu0 %v2070, 96
      %v2083 = vpop.permute.xlu0 %2082
      %2084 = vrot.lane.b32.xlu0 %v2073, 96
      %v2085 = vpop.permute.xlu0 %2084
      %v2086 = vsel %vm1145, %v2070, 0
      %v2088 = vsel %vm1145, %v2073, 0
      %v2090 = vsel %vm1145, %v2083, 0
      %v2092 = vsel %vm1145, %v2085, 0
      %2094 = vmatpush.xpose.msra.mxu0 0.0
      %2095 = vmatpush.xpose.msra.mxu0 0.0
      %2096 = vmatpush.xpose.msra.mxu0 0.0
      %2097 = vmatpush.xpose.msra.mxu0 0.0
      %2098 = vmatpush.xpose.msra.mxu0 0.0
      %2099 = vmatpush.xpose.msra.mxu0 0.0
      %2100 = vmatpush.xpose.msra.mxu0 0.0
      %2101 = vmatpush.xpose.msra.mxu0 0.0
      %2102 = vmatpush.xpose.msra.mxu0 0.0
      %2103 = vmatpush.xpose.msra.mxu0 0.0
      %2104 = vmatpush.xpose.msra.mxu0 0.0
      %2105 = vmatpush.xpose.msra.mxu0 0.0
      %2106 = vmatpush.xpose.msra.mxu0 0.0
      %2107 = vmatpush.xpose.msra.mxu0 0.0
      %2108 = vmatpush.xpose.msra.mxu0 %v2092
      %2109 = vmatpush.xpose.msra.mxu0 %v2090
      %2110 = vmatmul.f32.gmra.mxu0 %v2086
      %v2111 = vpop.f32.mrf.mxu0
      %v2112 = vadd.f32 0.0, %v2111
      %2113 = vmatmul.f32.gmra.mxu0 %v2088
      %v2114 = vpop.f32.mrf.mxu0
      %v2115 = vadd.f32 0.0, %v2114
      %2116 = vdwg.mxu0
      %v2117 = vmul.f32 %v2112, 0.35355338
      %v2118 = vmul.f32 %v2115, 0.35355338
      %v2119 = vsel %vm1179, -1e+09, %v2117
      %v2120 = vsel %vm1180, -1e+09, %v2118
      %v2121 = vsel %vm1183, %v2119, -inf
      %2122 = vmax.xlane.f32.xlu0 %v2121
      %v2123 = vpop.xlane.xlu0 %2122
      %v2124 = vsel %vm1183, %v2120, -inf
      %2125 = vmax.xlane.f32.xlu0 %v2124
      %v2126 = vpop.xlane.xlu0 %2125
      %v2127 = vsub.f32 %v2119, %v2123
      %v2128 = vsub.f32 %v2120, %v2126
      %v2129 = vmul.f32 %v2127, 1.442695
      %v2130 = vpow.pop %v2129
      %v2131 = vmul.f32 %v2128, 1.442695
      %v2132 = vpow.pop %v2131
      %v2133 = vsel %vm1183, %v2130, 0.0
      %2134 = vadd.xlane.f32.xlu0 %v2133
      %v2135 = vpop.xlane.xlu0 %2134
      %v2136 = vsel %vm1183, %v2132, 0.0
      %2137 = vadd.xlane.f32.xlu0 %v2136
      %v2138 = vpop.xlane.xlu0 %2137
      %v2139 = vrcp.pop %v2135
      %v2140 = vmul.f32 %v2135, %v2139
      %v2141 = vsub.f32 1.0, %v2140
      %v2142 = vmul.f32 %v2139, %v2141
      %v2143 = vadd.f32 %v2139, %v2142
      %vm2144 = vweird.f32 %v2135
      %vm2145 = vweird.f32 %v2139
      %vm2146 = vmor %vm2144, %vm2145
      %v2147 = vsel %vm2146, %v2139, %v2143
      %v2148 = vand.u32 2147483647, %v2135
      %vm2149 = vcmp.eq.f32.partialorder %v2148, 8.507059e+37
      %v2150 = vand.u32 %v2135, 2147483648
      %v2151 = vor.u32 1.1754944e-38, %v2150
      %v2152 = vsel %vm2149, %v2151, %v2147
      %v2153 = vrcp.pop %v2138
      %v2154 = vmul.f32 %v2138, %v2153
      %v2155 = vsub.f32 1.0, %v2154
      %v2156 = vmul.f32 %v2153, %v2155
      %v2157 = vadd.f32 %v2153, %v2156
      %vm2158 = vweird.f32 %v2138
      %vm2159 = vweird.f32 %v2153
      %vm2160 = vmor %vm2158, %vm2159
      %v2161 = vsel %vm2160, %v2153, %v2157
      %v2162 = vand.u32 2147483647, %v2138
      %vm2163 = vcmp.eq.f32.partialorder %v2162, 8.507059e+37
      %v2164 = vand.u32 %v2138, 2147483648
      %v2165 = vor.u32 1.1754944e-38, %v2164
      %v2166 = vsel %vm2163, %v2165, %v2161
      %v2167 = vmul.f32 %v2130, %v2152
      %v2168 = vmul.f32 %v2132, %v2166
      %2169 = vrot.lane.b32.xlu0 %v2070, 64
      %v2170 = vpop.permute.xlu0 %2169
      %2171 = vrot.lane.b32.xlu0 %v2073, 64
      %v2172 = vpop.permute.xlu0 %2171
      %v2176 = vsel %vm1183, %v2167, 0
      %v2179 = vsel %vm1183, %v2168, 0
      %2181 = vmatpush.msra.mxu0 0.0
      %2182 = vmatpush.msra.mxu0 0.0
      %2183 = vmatpush.msra.mxu0 0.0
      %2184 = vmatpush.msra.mxu0 0.0
      %2185 = vmatpush.msra.mxu0 0.0
      %2186 = vmatpush.msra.mxu0 0.0
      %2187 = vmatpush.msra.mxu0 0.0
      %2188 = vmatpush.msra.mxu0 0.0
      %2189 = vmatpush.msra.mxu0 0.0
      %2190 = vmatpush.msra.mxu0 0.0
      %2191 = vmatpush.msra.mxu0 0.0
      %2192 = vmatpush.msra.mxu0 0.0
      %2193 = vmatpush.msra.mxu0 0.0
      %2194 = vmatpush.msra.mxu0 0.0
      %2195 = vmatpush.msra.mxu0 %v2172
      %2196 = vmatpush.msra.mxu0 %v2170
      %2197 = vmatmul.f32.gmra.mxu0 %v2176
      %v2198 = vpop.f32.mrf.mxu0
      %v2199 = vadd.f32 0.0, %v2198
      %2200 = vmatmul.f32.gmra.mxu0 %v2179
      %v2201 = vpop.f32.mrf.mxu0
      %v2202 = vadd.f32 0.0, %v2201
      %2203 = vdwg.mxu0
      %2204 = vrot.lane.b32.xlu0 %v2070, 120
      %v2205 = vpop.permute.xlu0 %2204
      %2206 = vrot.lane.b32.xlu0 %v2073, 120
      %v2207 = vpop.permute.xlu0 %2206
      %2208 = vrot.lane.b32.xlu0 %v2070, 88
      %v2209 = vpop.permute.xlu0 %2208
      %2210 = vrot.lane.b32.xlu0 %v2073, 88
      %v2211 = vpop.permute.xlu0 %2210
      %v2212 = vsel %vm1145, %v2205, 0
      %v2214 = vsel %vm1145, %v2207, 0
      %v2216 = vsel %vm1145, %v2209, 0
      %v2218 = vsel %vm1145, %v2211, 0
      %2220 = vmatpush.xpose.msra.mxu0 0.0
      %2221 = vmatpush.xpose.msra.mxu0 0.0
      %2222 = vmatpush.xpose.msra.mxu0 0.0
      %2223 = vmatpush.xpose.msra.mxu0 0.0
      %2224 = vmatpush.xpose.msra.mxu0 0.0
      %2225 = vmatpush.xpose.msra.mxu0 0.0
      %2226 = vmatpush.xpose.msra.mxu0 0.0
      %2227 = vmatpush.xpose.msra.mxu0 0.0
      %2228 = vmatpush.xpose.msra.mxu0 0.0
      %2229 = vmatpush.xpose.msra.mxu0 0.0
      %2230 = vmatpush.xpose.msra.mxu0 0.0
      %2231 = vmatpush.xpose.msra.mxu0 0.0
      %2232 = vmatpush.xpose.msra.mxu0 0.0
      %2233 = vmatpush.xpose.msra.mxu0 0.0
      %2234 = vmatpush.xpose.msra.mxu0 %v2218
      %2235 = vmatpush.xpose.msra.mxu0 %v2216
      %2236 = vmatmul.f32.gmra.mxu0 %v2212
      %v2237 = vpop.f32.mrf.mxu0
      %v2238 = vadd.f32 0.0, %v2237
      %2239 = vmatmul.f32.gmra.mxu0 %v2214
      %v2240 = vpop.f32.mrf.mxu0
      %v2241 = vadd.f32 0.0, %v2240
      %2242 = vdwg.mxu0
      %v2243 = vmul.f32 %v2238, 0.35355338
      %v2244 = vmul.f32 %v2241, 0.35355338
      %v2245 = vsel %vm1179, -1e+09, %v2243
      %v2246 = vsel %vm1180, -1e+09, %v2244
      %v2247 = vsel %vm1183, %v2245, -inf
      %2248 = vmax.xlane.f32.xlu0 %v2247
      %v2249 = vpop.xlane.xlu0 %2248
      %v2250 = vsel %vm1183, %v2246, -inf
      %2251 = vmax.xlane.f32.xlu0 %v2250
      %v2252 = vpop.xlane.xlu0 %2251
      %v2253 = vsub.f32 %v2245, %v2249
      %v2254 = vsub.f32 %v2246, %v2252
      %v2255 = vmul.f32 %v2253, 1.442695
      %v2256 = vpow.pop %v2255
      %v2257 = vmul.f32 %v2254, 1.442695
      %v2258 = vpow.pop %v2257
      %v2259 = vsel %vm1183, %v2256, 0.0
      %2260 = vadd.xlane.f32.xlu0 %v2259
      %v2261 = vpop.xlane.xlu0 %2260
      %v2262 = vsel %vm1183, %v2258, 0.0
      %2263 = vadd.xlane.f32.xlu0 %v2262
      %v2264 = vpop.xlane.xlu0 %2263
      %v2265 = vrcp.pop %v2261
      %v2266 = vmul.f32 %v2261, %v2265
      %v2267 = vsub.f32 1.0, %v2266
      %v2268 = vmul.f32 %v2265, %v2267
      %v2269 = vadd.f32 %v2265, %v2268
      %vm2270 = vweird.f32 %v2261
      %vm2271 = vweird.f32 %v2265
      %vm2272 = vmor %vm2270, %vm2271
      %v2273 = vsel %vm2272, %v2265, %v2269
      %v2274 = vand.u32 2147483647, %v2261
      %vm2275 = vcmp.eq.f32.partialorder %v2274, 8.507059e+37
      %v2276 = vand.u32 %v2261, 2147483648
      %v2277 = vor.u32 1.1754944e-38, %v2276
      %v2278 = vsel %vm2275, %v2277, %v2273
      %v2279 = vrcp.pop %v2264
      %v2280 = vmul.f32 %v2264, %v2279
      %v2281 = vsub.f32 1.0, %v2280
      %v2282 = vmul.f32 %v2279, %v2281
      %v2283 = vadd.f32 %v2279, %v2282
      %vm2284 = vweird.f32 %v2264
      %vm2285 = vweird.f32 %v2279
      %vm2286 = vmor %vm2284, %vm2285
      %v2287 = vsel %vm2286, %v2279, %v2283
      %v2288 = vand.u32 2147483647, %v2264
      %vm2289 = vcmp.eq.f32.partialorder %v2288, 8.507059e+37
      %v2290 = vand.u32 %v2264, 2147483648
      %v2291 = vor.u32 1.1754944e-38, %v2290
      %v2292 = vsel %vm2289, %v2291, %v2287
      %v2293 = vmul.f32 %v2256, %v2278
      %v2294 = vmul.f32 %v2258, %v2292
      %2295 = vrot.lane.b32.xlu0 %v2070, 56
      %v2296 = vpop.permute.xlu0 %2295
      %2297 = vrot.lane.b32.xlu0 %v2073, 56
      %v2298 = vpop.permute.xlu0 %2297
      %v2302 = vsel %vm1183, %v2293, 0
      %v2305 = vsel %vm1183, %v2294, 0
      %2307 = vmatpush.msra.mxu0 0.0
      %2308 = vmatpush.msra.mxu0 0.0
      %2309 = vmatpush.msra.mxu0 0.0
      %2310 = vmatpush.msra.mxu0 0.0
      %2311 = vmatpush.msra.mxu0 0.0
      %2312 = vmatpush.msra.mxu0 0.0
      %2313 = vmatpush.msra.mxu0 0.0
      %2314 = vmatpush.msra.mxu0 0.0
      %2315 = vmatpush.msra.mxu0 0.0
      %2316 = vmatpush.msra.mxu0 0.0
      %2317 = vmatpush.msra.mxu0 0.0
      %2318 = vmatpush.msra.mxu0 0.0
      %2319 = vmatpush.msra.mxu0 0.0
      %2320 = vmatpush.msra.mxu0 0.0
      %2321 = vmatpush.msra.mxu0 %v2298
      %2322 = vmatpush.msra.mxu0 %v2296
      %2323 = vmatmul.f32.gmra.mxu0 %v2302
      %v2324 = vpop.f32.mrf.mxu0
      %v2325 = vadd.f32 0.0, %v2324
      %2326 = vmatmul.f32.gmra.mxu0 %v2305
      %v2327 = vpop.f32.mrf.mxu0
      %v2328 = vadd.f32 0.0, %v2327
      %2329 = vdwg.mxu0
      %v2331 = vsel %vm1145, %v2325, 0
      %v2334 = vsel %vm1145, %v2328, 0
      %2336 = vmatpush.msra.mxu0 0.0
      %2337 = vmatpush.msra.mxu0 0.0
      %2338 = vmatpush.msra.mxu0 0.0
      %2339 = vmatpush.msra.mxu0 0.0
      %2340 = vmatpush.msra.mxu0 0.0
      %2341 = vmatpush.msra.mxu0 0.0
      %2342 = vmatpush.msra.mxu0 0.0
      %2343 = vmatpush.msra.mxu0 0.0
      %2344 = vmatpush.msra.mxu0 0.0
      %2345 = vmatpush.msra.mxu0 0.0
      %2346 = vmatpush.msra.mxu0 0.0
      %2347 = vmatpush.msra.mxu0 0.0
      %2348 = vmatpush.msra.mxu0 0.0
      %2349 = vmatpush.msra.mxu0 0.0
      %2350 = vmatpush.msra.mxu0 0.0
      %2351 = vmatpush.msra.mxu0 %v2077
      %2352 = vmatmul.f32.gmra.mxu0 %v2331
      %v2353 = vpop.f32.mrf.mxu0
      %v2354 = vadd.f32 0.0, %v2353
      %2355 = vmatmul.f32.gmra.mxu0 %v2334
      %v2356 = vpop.f32.mrf.mxu0
      %v2357 = vadd.f32 0.0, %v2356
      %2358 = vdwg.mxu0
      %v2360 = vsel %vm1145, %v2199, 0
      %v2363 = vsel %vm1145, %v2202, 0
      %2365 = vmatpush.msra.mxu0 0.0
      %2366 = vmatpush.msra.mxu0 0.0
      %2367 = vmatpush.msra.mxu0 0.0
      %2368 = vmatpush.msra.mxu0 0.0
      %2369 = vmatpush.msra.mxu0 0.0
      %2370 = vmatpush.msra.mxu0 0.0
      %2371 = vmatpush.msra.mxu0 0.0
      %2372 = vmatpush.msra.mxu0 0.0
      %2373 = vmatpush.msra.mxu0 0.0
      %2374 = vmatpush.msra.mxu0 0.0
      %2375 = vmatpush.msra.mxu0 0.0
      %2376 = vmatpush.msra.mxu0 0.0
      %2377 = vmatpush.msra.mxu0 0.0
      %2378 = vmatpush.msra.mxu0 0.0
      %2379 = vmatpush.msra.mxu0 0.0
      %2380 = vmatpush.msra.mxu0 %v2076
      %2381 = vmatmul.f32.gmra.mxu0 %v2360
      %v2382 = vpop.f32.mrf.mxu0
      %v2383 = vadd.f32 %v2354, %v2382
      %2384 = vmatmul.f32.gmra.mxu0 %v2363
      %v2385 = vpop.f32.mrf.mxu0
      %v2386 = vadd.f32 %v2357, %v2385
      %2387 = vdwg.mxu0
      %2388 = vrot.lane.b32.xlu0 %v2070, 112
      %v2389 = vpop.permute.xlu0 %2388
      %2390 = vrot.lane.b32.xlu0 %v2073, 112
      %v2391 = vpop.permute.xlu0 %2390
      %2392 = vrot.lane.b32.xlu0 %v2070, 80
      %v2393 = vpop.permute.xlu0 %2392
      %2394 = vrot.lane.b32.xlu0 %v2073, 80
      %v2395 = vpop.permute.xlu0 %2394
      %v2396 = vsel %vm1145, %v2389, 0
      %v2398 = vsel %vm1145, %v2391, 0
      %v2400 = vsel %vm1145, %v2393, 0
      %v2402 = vsel %vm1145, %v2395, 0
      %2404 = vmatpush.xpose.msra.mxu0 0.0
      %2405 = vmatpush.xpose.msra.mxu0 0.0
      %2406 = vmatpush.xpose.msra.mxu0 0.0
      %2407 = vmatpush.xpose.msra.mxu0 0.0
      %2408 = vmatpush.xpose.msra.mxu0 0.0
      %2409 = vmatpush.xpose.msra.mxu0 0.0
      %2410 = vmatpush.xpose.msra.mxu0 0.0
      %2411 = vmatpush.xpose.msra.mxu0 0.0
      %2412 = vmatpush.xpose.msra.mxu0 0.0
      %2413 = vmatpush.xpose.msra.mxu0 0.0
      %2414 = vmatpush.xpose.msra.mxu0 0.0
      %2415 = vmatpush.xpose.msra.mxu0 0.0
      %2416 = vmatpush.xpose.msra.mxu0 0.0
      %2417 = vmatpush.xpose.msra.mxu0 0.0
      %2418 = vmatpush.xpose.msra.mxu0 %v2402
      %2419 = vmatpush.xpose.msra.mxu0 %v2400
      %2420 = vmatmul.f32.gmra.mxu0 %v2396
      %v2421 = vpop.f32.mrf.mxu0
      %v2422 = vadd.f32 0.0, %v2421
      %2423 = vmatmul.f32.gmra.mxu0 %v2398
      %v2424 = vpop.f32.mrf.mxu0
      %v2425 = vadd.f32 0.0, %v2424
      %2426 = vdwg.mxu0
      %v2427 = vmul.f32 %v2422, 0.35355338
      %v2428 = vmul.f32 %v2425, 0.35355338
      %v2429 = vsel %vm1179, -1e+09, %v2427
      %v2430 = vsel %vm1180, -1e+09, %v2428
      %v2431 = vsel %vm1183, %v2429, -inf
      %2432 = vmax.xlane.f32.xlu0 %v2431
      %v2433 = vpop.xlane.xlu0 %2432
      %v2434 = vsel %vm1183, %v2430, -inf
      %2435 = vmax.xlane.f32.xlu0 %v2434
      %v2436 = vpop.xlane.xlu0 %2435
      %v2437 = vsub.f32 %v2429, %v2433
      %v2438 = vsub.f32 %v2430, %v2436
      %v2439 = vmul.f32 %v2437, 1.442695
      %v2440 = vpow.pop %v2439
      %v2441 = vmul.f32 %v2438, 1.442695
      %v2442 = vpow.pop %v2441
      %v2443 = vsel %vm1183, %v2440, 0.0
      %2444 = vadd.xlane.f32.xlu0 %v2443
      %v2445 = vpop.xlane.xlu0 %2444
      %v2446 = vsel %vm1183, %v2442, 0.0
      %2447 = vadd.xlane.f32.xlu0 %v2446
      %v2448 = vpop.xlane.xlu0 %2447
      %v2449 = vrcp.pop %v2445
      %v2450 = vmul.f32 %v2445, %v2449
      %v2451 = vsub.f32 1.0, %v2450
      %v2452 = vmul.f32 %v2449, %v2451
      %v2453 = vadd.f32 %v2449, %v2452
      %vm2454 = vweird.f32 %v2445
      %vm2455 = vweird.f32 %v2449
      %vm2456 = vmor %vm2454, %vm2455
      %v2457 = vsel %vm2456, %v2449, %v2453
      %v2458 = vand.u32 2147483647, %v2445
      %vm2459 = vcmp.eq.f32.partialorder %v2458, 8.507059e+37
      %v2460 = vand.u32 %v2445, 2147483648
      %v2461 = vor.u32 1.1754944e-38, %v2460
      %v2462 = vsel %vm2459, %v2461, %v2457
      %v2463 = vrcp.pop %v2448
      %v2464 = vmul.f32 %v2448, %v2463
      %v2465 = vsub.f32 1.0, %v2464
      %v2466 = vmul.f32 %v2463, %v2465
      %v2467 = vadd.f32 %v2463, %v2466
      %vm2468 = vweird.f32 %v2448
      %vm2469 = vweird.f32 %v2463
      %vm2470 = vmor %vm2468, %vm2469
      %v2471 = vsel %vm2470, %v2463, %v2467
      %v2472 = vand.u32 2147483647, %v2448
      %vm2473 = vcmp.eq.f32.partialorder %v2472, 8.507059e+37
      %v2474 = vand.u32 %v2448, 2147483648
      %v2475 = vor.u32 1.1754944e-38, %v2474
      %v2476 = vsel %vm2473, %v2475, %v2471
      %v2477 = vmul.f32 %v2440, %v2462
      %v2478 = vmul.f32 %v2442, %v2476
      %2479 = vrot.lane.b32.xlu0 %v2070, 48
      %v2480 = vpop.permute.xlu0 %2479
      %2481 = vrot.lane.b32.xlu0 %v2073, 48
      %v2482 = vpop.permute.xlu0 %2481
      %v2486 = vsel %vm1183, %v2477, 0
      %v2489 = vsel %vm1183, %v2478, 0
      %2491 = vmatpush.msra.mxu0 0.0
      %2492 = vmatpush.msra.mxu0 0.0
      %2493 = vmatpush.msra.mxu0 0.0
      %2494 = vmatpush.msra.mxu0 0.0
      %2495 = vmatpush.msra.mxu0 0.0
      %2496 = vmatpush.msra.mxu0 0.0
      %2497 = vmatpush.msra.mxu0 0.0
      %2498 = vmatpush.msra.mxu0 0.0
      %2499 = vmatpush.msra.mxu0 0.0
      %2500 = vmatpush.msra.mxu0 0.0
      %2501 = vmatpush.msra.mxu0 0.0
      %2502 = vmatpush.msra.mxu0 0.0
      %2503 = vmatpush.msra.mxu0 0.0
      %2504 = vmatpush.msra.mxu0 0.0
      %2505 = vmatpush.msra.mxu0 %v2482
      %2506 = vmatpush.msra.mxu0 %v2480
      %2507 = vmatmul.f32.gmra.mxu0 %v2486
      %v2508 = vpop.f32.mrf.mxu0
      %v2509 = vadd.f32 0.0, %v2508
      %2510 = vmatmul.f32.gmra.mxu0 %v2489
      %v2511 = vpop.f32.mrf.mxu0
      %v2512 = vadd.f32 0.0, %v2511
      %2513 = vdwg.mxu0
      %v2515 = vsel %vm1145, %v2509, 0
      %v2518 = vsel %vm1145, %v2512, 0
      %2520 = vmatpush.msra.mxu0 0.0
      %2521 = vmatpush.msra.mxu0 0.0
      %2522 = vmatpush.msra.mxu0 0.0
      %2523 = vmatpush.msra.mxu0 0.0
      %2524 = vmatpush.msra.mxu0 0.0
      %2525 = vmatpush.msra.mxu0 0.0
      %2526 = vmatpush.msra.mxu0 0.0
      %2527 = vmatpush.msra.mxu0 0.0
      %2528 = vmatpush.msra.mxu0 0.0
      %2529 = vmatpush.msra.mxu0 0.0
      %2530 = vmatpush.msra.mxu0 0.0
      %2531 = vmatpush.msra.mxu0 0.0
      %2532 = vmatpush.msra.mxu0 0.0
      %2533 = vmatpush.msra.mxu0 0.0
      %2534 = vmatpush.msra.mxu0 0.0
      %2535 = vmatpush.msra.mxu0 %v2078
      %2536 = vmatmul.f32.gmra.mxu0 %v2515
      %v2537 = vpop.f32.mrf.mxu0
      %v2538 = vadd.f32 0.0, %v2537
      %2539 = vmatmul.f32.gmra.mxu0 %v2518
      %v2540 = vpop.f32.mrf.mxu0
      %v2541 = vadd.f32 0.0, %v2540
      %2542 = vdwg.mxu0
      %v2543 = vadd.f32 %v2383, %v2538
      %v2544 = vadd.f32 %v2386, %v2541
      %2545 = vrot.lane.b32.xlu0 %v2070, 104
      %v2546 = vpop.permute.xlu0 %2545
      %2547 = vrot.lane.b32.xlu0 %v2073, 104
      %v2548 = vpop.permute.xlu0 %2547
      %2549 = vrot.lane.b32.xlu0 %v2070, 72
      %v2550 = vpop.permute.xlu0 %2549
      %2551 = vrot.lane.b32.xlu0 %v2073, 72
      %v2552 = vpop.permute.xlu0 %2551
      %v2553 = vsel %vm1145, %v2546, 0
      %v2555 = vsel %vm1145, %v2548, 0
      %v2557 = vsel %vm1145, %v2550, 0
      %v2559 = vsel %vm1145, %v2552, 0
      %2561 = vmatpush.xpose.msra.mxu0 0.0
      %2562 = vmatpush.xpose.msra.mxu0 0.0
      %2563 = vmatpush.xpose.msra.mxu0 0.0
      %2564 = vmatpush.xpose.msra.mxu0 0.0
      %2565 = vmatpush.xpose.msra.mxu0 0.0
      %2566 = vmatpush.xpose.msra.mxu0 0.0
      %2567 = vmatpush.xpose.msra.mxu0 0.0
      %2568 = vmatpush.xpose.msra.mxu0 0.0
      %2569 = vmatpush.xpose.msra.mxu0 0.0
      %2570 = vmatpush.xpose.msra.mxu0 0.0
      %2571 = vmatpush.xpose.msra.mxu0 0.0
      %2572 = vmatpush.xpose.msra.mxu0 0.0
      %2573 = vmatpush.xpose.msra.mxu0 0.0
      %2574 = vmatpush.xpose.msra.mxu0 0.0
      %2575 = vmatpush.xpose.msra.mxu0 %v2559
      %2576 = vmatpush.xpose.msra.mxu0 %v2557
      %2577 = vmatmul.f32.gmra.mxu0 %v2553
      %v2578 = vpop.f32.mrf.mxu0
      %v2579 = vadd.f32 0.0, %v2578
      %2580 = vmatmul.f32.gmra.mxu0 %v2555
      %v2581 = vpop.f32.mrf.mxu0
      %v2582 = vadd.f32 0.0, %v2581
      %2583 = vdwg.mxu0
      %v2584 = vmul.f32 %v2579, 0.35355338
      %v2585 = vmul.f32 %v2582, 0.35355338
      %v2586 = vsel %vm1179, -1e+09, %v2584
      %v2587 = vsel %vm1180, -1e+09, %v2585
      %v2588 = vsel %vm1183, %v2586, -inf
      %2589 = vmax.xlane.f32.xlu0 %v2588
      %v2590 = vpop.xlane.xlu0 %2589
      %v2591 = vsel %vm1183, %v2587, -inf
      %2592 = vmax.xlane.f32.xlu0 %v2591
      %v2593 = vpop.xlane.xlu0 %2592
      %v2594 = vsub.f32 %v2586, %v2590
      %v2595 = vsub.f32 %v2587, %v2593
      %v2596 = vmul.f32 %v2594, 1.442695
      %v2597 = vpow.pop %v2596
      %v2598 = vmul.f32 %v2595, 1.442695
      %v2599 = vpow.pop %v2598
      %v2600 = vsel %vm1183, %v2597, 0.0
      %2601 = vadd.xlane.f32.xlu0 %v2600
      %v2602 = vpop.xlane.xlu0 %2601
      %v2603 = vsel %vm1183, %v2599, 0.0
      %2604 = vadd.xlane.f32.xlu0 %v2603
      %v2605 = vpop.xlane.xlu0 %2604
      %v2606 = vrcp.pop %v2602
      %v2607 = vmul.f32 %v2602, %v2606
      %v2608 = vsub.f32 1.0, %v2607
      %v2609 = vmul.f32 %v2606, %v2608
      %v2610 = vadd.f32 %v2606, %v2609
      %vm2611 = vweird.f32 %v2602
      %vm2612 = vweird.f32 %v2606
      %vm2613 = vmor %vm2611, %vm2612
      %v2614 = vsel %vm2613, %v2606, %v2610
      %v2615 = vand.u32 2147483647, %v2602
      %vm2616 = vcmp.eq.f32.partialorder %v2615, 8.507059e+37
      %v2617 = vand.u32 %v2602, 2147483648
      %v2618 = vor.u32 1.1754944e-38, %v2617
      %v2619 = vsel %vm2616, %v2618, %v2614
      %v2620 = vrcp.pop %v2605
      %v2621 = vmul.f32 %v2605, %v2620
      %v2622 = vsub.f32 1.0, %v2621
      %v2623 = vmul.f32 %v2620, %v2622
      %v2624 = vadd.f32 %v2620, %v2623
      %vm2625 = vweird.f32 %v2605
      %vm2626 = vweird.f32 %v2620
      %vm2627 = vmor %vm2625, %vm2626
      %v2628 = vsel %vm2627, %v2620, %v2624
      %v2629 = vand.u32 2147483647, %v2605
      %vm2630 = vcmp.eq.f32.partialorder %v2629, 8.507059e+37
      %v2631 = vand.u32 %v2605, 2147483648
      %v2632 = vor.u32 1.1754944e-38, %v2631
      %v2633 = vsel %vm2630, %v2632, %v2628
      %v2634 = vmul.f32 %v2597, %v2619
      %v2635 = vmul.f32 %v2599, %v2633
      %2636 = vrot.lane.b32.xlu0 %v2070, 40
      %v2637 = vpop.permute.xlu0 %2636
      %2638 = vrot.lane.b32.xlu0 %v2073, 40
      %v2639 = vpop.permute.xlu0 %2638
      %v2643 = vsel %vm1183, %v2634, 0
      %v2646 = vsel %vm1183, %v2635, 0
      %2648 = vmatpush.msra.mxu0 0.0
      %2649 = vmatpush.msra.mxu0 0.0
      %2650 = vmatpush.msra.mxu0 0.0
      %2651 = vmatpush.msra.mxu0 0.0
      %2652 = vmatpush.msra.mxu0 0.0
      %2653 = vmatpush.msra.mxu0 0.0
      %2654 = vmatpush.msra.mxu0 0.0
      %2655 = vmatpush.msra.mxu0 0.0
      %2656 = vmatpush.msra.mxu0 0.0
      %2657 = vmatpush.msra.mxu0 0.0
      %2658 = vmatpush.msra.mxu0 0.0
      %2659 = vmatpush.msra.mxu0 0.0
      %2660 = vmatpush.msra.mxu0 0.0
      %2661 = vmatpush.msra.mxu0 0.0
      %2662 = vmatpush.msra.mxu0 %v2639
      %2663 = vmatpush.msra.mxu0 %v2637
      %2664 = vmatmul.f32.gmra.mxu0 %v2643
      %v2665 = vpop.f32.mrf.mxu0
      %v2666 = vadd.f32 0.0, %v2665
      %2667 = vmatmul.f32.gmra.mxu0 %v2646
      %v2668 = vpop.f32.mrf.mxu0
      %v2669 = vadd.f32 0.0, %v2668
      %2670 = vdwg.mxu0
      %v2672 = vsel %vm1145, %v2666, 0
      %v2675 = vsel %vm1145, %v2669, 0
      %2677 = vmatpush.msra.mxu0 0.0
      %2678 = vmatpush.msra.mxu0 0.0
      %2679 = vmatpush.msra.mxu0 0.0
      %2680 = vmatpush.msra.mxu0 0.0
      %2681 = vmatpush.msra.mxu0 0.0
      %2682 = vmatpush.msra.mxu0 0.0
      %2683 = vmatpush.msra.mxu0 0.0
      %2684 = vmatpush.msra.mxu0 0.0
      %2685 = vmatpush.msra.mxu0 0.0
      %2686 = vmatpush.msra.mxu0 0.0
      %2687 = vmatpush.msra.mxu0 0.0
      %2688 = vmatpush.msra.mxu0 0.0
      %2689 = vmatpush.msra.mxu0 0.0
      %2690 = vmatpush.msra.mxu0 0.0
      %2691 = vmatpush.msra.mxu0 0.0
      %2692 = vmatpush.msra.mxu0 %v2079
      %2693 = vmatmul.f32.gmra.mxu0 %v2672
      %v2694 = vpop.f32.mrf.mxu0
      %v2695 = vadd.f32 0.0, %v2694
      %2696 = vmatmul.f32.gmra.mxu0 %v2675
      %v2697 = vpop.f32.mrf.mxu0
      %v2698 = vadd.f32 0.0, %v2697
      %2699 = vdwg.mxu0
      %v2700 = vadd.f32 %v2543, %v2695
      %v2701 = vadd.f32 %v2544, %v2698
      %v2702 = vadd.f32 %v1944, %v2700
      %v2703 = vadd.f32 %v1945, %v2701
      %s2704 = scalar_lea.vmem %s894, 1
      %v2705 = vld [vmem:[%s2704] sm:$0x1]
      %v2707 = vperm.slane %v2705, 0
      %v2709 = vadd.f32 %v2702, %v2707
      %v2710 = vadd.f32 %v2703, %v2707
      %s2711 = scalar_lea.vmem %s924, 1
      %v2712 = vld [vmem:[%s2711] sm:$0x1]
      %s2713 = scalar_lea.vmem %s928, 1
      %v2714 = vld [vmem:[%s2713] sm:$0x1]
      %v2715 = vsel %vm997, %v2709, 0.0
      %2716 = vadd.xlane.f32.xlu0 %v2715
      %v2717 = vpop.xlane.xlu0 %2716
      %v2718 = vsel %vm997, %v2710, 0.0
      %2719 = vadd.xlane.f32.xlu0 %v2718
      %v2720 = vpop.xlane.xlu0 %2719
      %v2721 = vmul.f32 %v2717, %v1010
      %v2722 = vmul.f32 %v2720, %v1010
      %v2723 = vsub.f32 %v2709, %v2721
      %v2724 = vsub.f32 %v2710, %v2722
      %v2725 = vmul.f32 %v2723, %v2723
      %v2726 = vmul.f32 %v2724, %v2724
      %v2727 = vsel %vm997, %v2725, 0.0
      %2728 = vadd.xlane.f32.xlu0 %v2727
      %v2729 = vpop.xlane.xlu0 %2728
      %v2730 = vsel %vm997, %v2726, 0.0
      %2731 = vadd.xlane.f32.xlu0 %v2730
      %v2732 = vpop.xlane.xlu0 %2731
      %v2733 = vmul.f32 %v2729, %v1029
      %v2734 = vmul.f32 %v2732, %v1029
      %v2736 = vperm.slane %v2712, 0
      %v2738 = vmul.f32 %v2736, %v2723
      %v2739 = vmul.f32 %v2736, %v2724
      %v2740 = vrsqrt.pop %v2733
      %v2741 = vmul.f32 %v2740, %v2733
      %v2742 = vmul.f32 %v2741, %v2740
      %v2743 = vmul.f32 0.5, %v2742
      %v2744 = vsub.f32 1.5, %v2743
      %v2745 = vmul.f32 %v2740, %v2744
      %v2746 = vmul.f32 %v2733, %v2745
      %vm2747 = vcmp.eq.f32.partialorder %v2733, inf
      %v2748 = vsel %vm2747, %v2733, %v2746
      %vm2749 = vcmp.eq.f32.partialorder %v2733, 0.0
      %v2750 = vand.u32 %v2733, 2147483648
      %v2751 = vsel %vm2749, %v2750, %v2748
      %v2752 = vrsqrt.pop %v2734
      %v2753 = vmul.f32 %v2752, %v2734
      %v2754 = vmul.f32 %v2753, %v2752
      %v2755 = vmul.f32 0.5, %v2754
      %v2756 = vsub.f32 1.5, %v2755
      %v2757 = vmul.f32 %v2752, %v2756
      %v2758 = vmul.f32 %v2734, %v2757
      %vm2759 = vcmp.eq.f32.partialorder %v2734, inf
      %v2760 = vsel %vm2759, %v2734, %v2758
      %vm2761 = vcmp.eq.f32.partialorder %v2734, 0.0
      %v2762 = vand.u32 %v2734, 2147483648
      %v2763 = vsel %vm2761, %v2762, %v2760
      %v2764 = vadd.f32 %v2751, 1e-06
      %v2765 = vadd.f32 %v2763, 1e-06
      %v2766 = vrcp.pop %v2764
      %v2767 = vmul.f32 %v2764, %v2766
      %v2768 = vsub.f32 1.0, %v2767
      %v2769 = vmul.f32 %v2766, %v2768
      %v2770 = vadd.f32 %v2766, %v2769
      %vm2771 = vweird.f32 %v2764
      %vm2772 = vweird.f32 %v2766
      %vm2773 = vmor %vm2771, %vm2772
      %v2774 = vsel %vm2773, %v2766, %v2770
      %v2775 = vand.u32 2147483647, %v2764
      %vm2776 = vcmp.eq.f32.partialorder %v2775, 8.507059e+37
      %v2777 = vand.u32 %v2764, 2147483648
      %v2778 = vor.u32 1.1754944e-38, %v2777
      %v2779 = vsel %vm2776, %v2778, %v2774
      %v2780 = vmul.f32 %v2738, %v2779
      %v2781 = vrcp.pop %v2765
      %v2782 = vmul.f32 %v2765, %v2781
      %v2783 = vsub.f32 1.0, %v2782
      %v2784 = vmul.f32 %v2781, %v2783
      %v2785 = vadd.f32 %v2781, %v2784
      %vm2786 = vweird.f32 %v2765
      %vm2787 = vweird.f32 %v2781
      %vm2788 = vmor %vm2786, %vm2787
      %v2789 = vsel %vm2788, %v2781, %v2785
      %v2790 = vand.u32 2147483647, %v2765
      %vm2791 = vcmp.eq.f32.partialorder %v2790, 8.507059e+37
      %v2792 = vand.u32 %v2765, 2147483648
      %v2793 = vor.u32 1.1754944e-38, %v2792
      %v2794 = vsel %vm2791, %v2793, %v2789
      %v2795 = vmul.f32 %v2739, %v2794
      %v2797 = vperm.slane %v2714, 0
      %v2799 = vadd.f32 %v2780, %v2797
      %v2800 = vadd.f32 %v2795, %v2797
      %s2801 = scalar_lea.vmem %s899, 32
      %v2802 = vld [vmem:[%s2801] sm:$0xff]
      %v2803 = vld [vmem:[%s2801 + $0x8] sm:$0xff]
      %v2804 = vld [vmem:[%s2801 + $0x10] sm:$0xff]
      %v2805 = vld [vmem:[%s2801 + $0x18] sm:$0xff]
      %s2806 = scalar_lea.vmem %s903, 1
      %v2807 = vld [vmem:[%s2806] sm:$0x1]
      %v2809 = vperm.slane %v2807, 0
      %v2812 = vsel %vm997, %v2799, 0
      %v2815 = vsel %vm997, %v2800, 0
      %2817 = vmatpush.msra.mxu0 0.0
      %2818 = vmatpush.msra.mxu0 0.0
      %2819 = vmatpush.msra.mxu0 0.0
      %2820 = vmatpush.msra.mxu0 0.0
      %2821 = vmatpush.msra.mxu0 0.0
      %2822 = vmatpush.msra.mxu0 0.0
      %2823 = vmatpush.msra.mxu0 0.0
      %2824 = vmatpush.msra.mxu0 0.0
      %2825 = vmatpush.msra.mxu0 0.0
      %2826 = vmatpush.msra.mxu0 0.0
      %2827 = vmatpush.msra.mxu0 0.0
      %2828 = vmatpush.msra.mxu0 0.0
      %2829 = vmatpush.msra.mxu0 %v2805
      %2830 = vmatpush.msra.mxu0 %v2804
      %2831 = vmatpush.msra.mxu0 %v2803
      %2832 = vmatpush.msra.mxu0 %v2802
      %2833 = vmatmul.f32.gmra.mxu0 %v2812
      %v2834 = vpop.f32.mrf.mxu0
      %v2835 = vadd.f32 %v2809, %v2834
      %2836 = vmatmul.f32.gmra.mxu0 %v2815
      %v2837 = vpop.f32.mrf.mxu0
      %v2838 = vadd.f32 %v2809, %v2837
      %2839 = vdwg.mxu0
      %v2840 = vmax.f32 %v2835, 0.0
      %v2841 = vmax.f32 %v2838, 0.0
      %s2842 = scalar_lea.vmem %s908, 64
      %v2843 = vld [vmem:[%s2842] sm:$0xff]
      %v2844 = vld [vmem:[%s2842 + $0x8] sm:$0xff]
      %v2845 = vld [vmem:[%s2842 + $0x10] sm:$0xff]
      %v2846 = vld [vmem:[%s2842 + $0x18] sm:$0xff]
      %v2847 = vld [vmem:[%s2842 + $0x20] sm:$0xff]
      %v2848 = vld [vmem:[%s2842 + $0x28] sm:$0xff]
      %v2849 = vld [vmem:[%s2842 + $0x30] sm:$0xff]
      %v2850 = vld [vmem:[%s2842 + $0x38] sm:$0xff]
      %v2852 = vsel %vm1908, %v2840, 0
      %v2855 = vsel %vm1908, %v2841, 0
      %2857 = vmatpush.msra.mxu0 0.0
      %2858 = vmatpush.msra.mxu0 0.0
      %2859 = vmatpush.msra.mxu0 0.0
      %2860 = vmatpush.msra.mxu0 0.0
      %2861 = vmatpush.msra.mxu0 0.0
      %2862 = vmatpush.msra.mxu0 0.0
      %2863 = vmatpush.msra.mxu0 0.0
      %2864 = vmatpush.msra.mxu0 0.0
      %2865 = vmatpush.msra.mxu0 %v2850
      %2866 = vmatpush.msra.mxu0 %v2849
      %2867 = vmatpush.msra.mxu0 %v2848
      %2868 = vmatpush.msra.mxu0 %v2847
      %2869 = vmatpush.msra.mxu0 %v2846
      %2870 = vmatpush.msra.mxu0 %v2845
      %2871 = vmatpush.msra.mxu0 %v2844
      %2872 = vmatpush.msra.mxu0 %v2843
      %2873 = vmatmul.f32.gmra.mxu0 %v2852
      %v2874 = vpop.f32.mrf.mxu0
      %v2875 = vadd.f32 0.0, %v2874
      %2876 = vmatmul.f32.gmra.mxu0 %v2855
      %v2877 = vpop.f32.mrf.mxu0
      %v2878 = vadd.f32 0.0, %v2877
      %2879 = vdwg.mxu0
      %v2880 = vadd.f32 %v2709, %v2875
      %v2881 = vadd.f32 %v2710, %v2878
      %s2882 = scalar_lea.vmem %s912, 1
      %v2883 = vld [vmem:[%s2882] sm:$0x1]
      %v2885 = vperm.slane %v2883, 0
      %v2887 = vadd.f32 %v2880, %v2885
      %v2888 = vadd.f32 %v2881, %v2885
      %v2889 = vld [vmem:[%s931] sm:$0x1]
      %v2890 = vld [vmem:[%s934] sm:$0x1]
      %v2891 = vsel %vm997, %v2887, 0.0
      %2892 = vadd.xlane.f32.xlu0 %v2891
      %v2893 = vpop.xlane.xlu0 %2892
      %v2894 = vsel %vm997, %v2888, 0.0
      %2895 = vadd.xlane.f32.xlu0 %v2894
      %v2896 = vpop.xlane.xlu0 %2895
      %v2897 = vmul.f32 %v2893, %v1010
      %v2898 = vmul.f32 %v2896, %v1010
      %v2899 = vsub.f32 %v2887, %v2897
      %v2900 = vsub.f32 %v2888, %v2898
      %v2901 = vmul.f32 %v2899, %v2899
      %v2902 = vmul.f32 %v2900, %v2900
      %v2903 = vsel %vm997, %v2901, 0.0
      %2904 = vadd.xlane.f32.xlu0 %v2903
      %v2905 = vpop.xlane.xlu0 %2904
      %v2906 = vsel %vm997, %v2902, 0.0
      %2907 = vadd.xlane.f32.xlu0 %v2906
      %v2908 = vpop.xlane.xlu0 %2907
      %v2909 = vmul.f32 %v2905, %v1029
      %v2910 = vmul.f32 %v2908, %v1029
      %v2912 = vperm.slane %v2889, 0
      %v2914 = vmul.f32 %v2912, %v2899
      %v2915 = vmul.f32 %v2912, %v2900
      %v2916 = vrsqrt.pop %v2909
      %v2917 = vmul.f32 %v2916, %v2909
      %v2918 = vmul.f32 %v2917, %v2916
      %v2919 = vmul.f32 0.5, %v2918
      %v2920 = vsub.f32 1.5, %v2919
      %v2921 = vmul.f32 %v2916, %v2920
      %v2922 = vmul.f32 %v2909, %v2921
      %vm2923 = vcmp.eq.f32.partialorder %v2909, inf
      %v2924 = vsel %vm2923, %v2909, %v2922
      %vm2925 = vcmp.eq.f32.partialorder %v2909, 0.0
      %v2926 = vand.u32 %v2909, 2147483648
      %v2927 = vsel %vm2925, %v2926, %v2924
      %v2928 = vrsqrt.pop %v2910
      %v2929 = vmul.f32 %v2928, %v2910
      %v2930 = vmul.f32 %v2929, %v2928
      %v2931 = vmul.f32 0.5, %v2930
      %v2932 = vsub.f32 1.5, %v2931
      %v2933 = vmul.f32 %v2928, %v2932
      %v2934 = vmul.f32 %v2910, %v2933
      %vm2935 = vcmp.eq.f32.partialorder %v2910, inf
      %v2936 = vsel %vm2935, %v2910, %v2934
      %vm2937 = vcmp.eq.f32.partialorder %v2910, 0.0
      %v2938 = vand.u32 %v2910, 2147483648
      %v2939 = vsel %vm2937, %v2938, %v2936
      %v2940 = vadd.f32 %v2927, 1e-06
      %v2941 = vadd.f32 %v2939, 1e-06
      %v2942 = vrcp.pop %v2940
      %v2943 = vmul.f32 %v2940, %v2942
      %v2944 = vsub.f32 1.0, %v2943
      %v2945 = vmul.f32 %v2942, %v2944
      %v2946 = vadd.f32 %v2942, %v2945
      %vm2947 = vweird.f32 %v2940
      %vm2948 = vweird.f32 %v2942
      %vm2949 = vmor %vm2947, %vm2948
      %v2950 = vsel %vm2949, %v2942, %v2946
      %v2951 = vand.u32 2147483647, %v2940
      %vm2952 = vcmp.eq.f32.partialorder %v2951, 8.507059e+37
      %v2953 = vand.u32 %v2940, 2147483648
      %v2954 = vor.u32 1.1754944e-38, %v2953
      %v2955 = vsel %vm2952, %v2954, %v2950
      %v2956 = vmul.f32 %v2914, %v2955
      %v2957 = vrcp.pop %v2941
      %v2958 = vmul.f32 %v2941, %v2957
      %v2959 = vsub.f32 1.0, %v2958
      %v2960 = vmul.f32 %v2957, %v2959
      %v2961 = vadd.f32 %v2957, %v2960
      %vm2962 = vweird.f32 %v2941
      %vm2963 = vweird.f32 %v2957
      %vm2964 = vmor %vm2962, %vm2963
      %v2965 = vsel %vm2964, %v2957, %v2961
      %v2966 = vand.u32 2147483647, %v2941
      %vm2967 = vcmp.eq.f32.partialorder %v2966, 8.507059e+37
      %v2968 = vand.u32 %v2941, 2147483648
      %v2969 = vor.u32 1.1754944e-38, %v2968
      %v2970 = vsel %vm2967, %v2969, %v2965
      %v2971 = vmul.f32 %v2915, %v2970
      %v2973 = vperm.slane %v2890, 0
      %v2975 = vadd.f32 %v2956, %v2973
      %v2976 = vadd.f32 %v2971, %v2973
      %v2977 = vld [vmem:[%s939] sm:$0xff]
      %v2978 = vld [vmem:[%s939 + $0x8] sm:$0xff]
      %v2979 = vld [vmem:[%s939 + $0x10] sm:$0xff]
      %v2980 = vld [vmem:[%s939 + $0x18] sm:$0xff]
      %v2981 = vld [vmem:[%s942] sm:$0x1]
      %v2983 = vperm.slane %v2981, 0
      %v2986 = vsel %vm997, %v2975, 0
      %v2989 = vsel %vm997, %v2976, 0
      %2991 = vmatpush.msra.mxu0 0.0
      %2992 = vmatpush.msra.mxu0 0.0
      %2993 = vmatpush.msra.mxu0 0.0
      %2994 = vmatpush.msra.mxu0 0.0
      %2995 = vmatpush.msra.mxu0 0.0
      %2996 = vmatpush.msra.mxu0 0.0
      %2997 = vmatpush.msra.mxu0 0.0
      %2998 = vmatpush.msra.mxu0 0.0
      %2999 = vmatpush.msra.mxu0 0.0
      %3000 = vmatpush.msra.mxu0 0.0
      %3001 = vmatpush.msra.mxu0 0.0
      %3002 = vmatpush.msra.mxu0 0.0
      %3003 = vmatpush.msra.mxu0 %v2980
      %3004 = vmatpush.msra.mxu0 %v2979
      %3005 = vmatpush.msra.mxu0 %v2978
      %3006 = vmatpush.msra.mxu0 %v2977
      %3007 = vmatmul.f32.gmra.mxu0 %v2986
      %v3008 = vpop.f32.mrf.mxu0
      %v3009 = vadd.f32 %v2983, %v3008
      %3010 = vmatmul.f32.gmra.mxu0 %v2989
      %v3011 = vpop.f32.mrf.mxu0
      %v3012 = vadd.f32 %v2983, %v3011
      %3013 = vdwg.mxu0
      %3014 = vst [vmem:[%s947] sm:$0xff] %v3009
      %3015 = vst [vmem:[%s947 + $0x8] sm:$0xff] %v3012
      %p3016 = scmp.lt.s32.totalorder %s31, 1
      %s3017 = scalar_select %p3016, %s31, 1
      %s3018 = smul.addr %s3017, 2
      %s3019 = smul.addr %s3018, 8
      %s3020 = scalar_lea.vmem %s20, %s3019
      // Predicated region
      $region101: #{transformer_decoder_fr_forward.1} parent=99 // pred_check
        %p3021 = pneg %p564
      $region102: #{transformer_decoder_fr_forward.1} parent=99 // pred_check_branch
        %3023 = sbr.rel (%p3021) target = $region104
      $region103: #{transformer_decoder_fr_forward.1} parent=99 // pred_region
        _
      $region104: #{transformer_decoder_fr_forward.1} parent=99 // pred_fallthru
        _
    $region100: #{transformer_decoder_fr_forward.1} parent=5 // pred_fallthru
      _
    %p3024 = scmp.le.s32.totalorder 2, %s26
    // Predicated region
    $region105: #{transformer_decoder_fr_forward.1} parent=5 // pred_check
      %p3025 = pneg %p3024
    $region106: #{transformer_decoder_fr_forward.1} parent=5 // pred_check_branch
      %3027 = sbr.rel (%p3025) target = $region108
    $region107: #{transformer_decoder_fr_forward.1} parent=5 // pred_region
      %s3028 = ssub.s32 %s26, 2
      // Predicated region
      $region109: #{transformer_decoder_fr_forward.1} parent=107 // pred_check
        %p3029 = pneg %p570
      $region110: #{transformer_decoder_fr_forward.1} parent=107 // pred_check_branch
        %3031 = sbr.rel (%p3029) target = $region112
      $region111: #{transformer_decoder_fr_forward.1} parent=107 // pred_region
        %p3032 = scmp.lt.s32.totalorder %s32, 1
        %s3033 = scalar_select %p3032, %s32, 1
        %s3034 = smul.addr %s3033, 2
        %s3035 = smul.addr %s3034, 8
        %s3036 = scalar_lea.vmem %s20, %s3035
      $region112: #{transformer_decoder_fr_forward.1} parent=107 // pred_fallthru
        _
    $region108: #{transformer_decoder_fr_forward.1} parent=5 // pred_fallthru
      _
  $region6: #{transformer_decoder_fr_forward.1} parent=0 // loop_footer
    %s30 = sadd.s32 1, %s26
  $region7: #{transformer_decoder_fr_forward.1} parent=0 // loop_footer_branch
    %25 = sbr.rel target = $region3
  $region8: #{transformer_decoder_fr_forward.1} parent=0 // loop_exit
    _

</llo_original>
